<compile_context>
chip_gen: v5e
topology: v5e:2x2
jax: 0.10.0
libtpu: 0.0.40
codegen_flags: <defaults>
</compile_context>

<pallas_src>
import functools

import jax
import jax.numpy as jnp
from jax.experimental import pallas as pl
from jax.experimental.pallas import tpu as pltpu  # noqa: F401  (TPU backend assumed)

# ---- model hyper-parameters (transformerInfo) -------------------------------
EMBED = 32           # embedSize
HEADS = 4            # heads
HEAD_DIM = EMBED // HEADS
FWD_EXP = 2          # forwardExpansion
N_LAYERS = 2         # decoderLayersNum
MAX_LEN = 64         # length of decoderPositionalEmbedding table


# ---------------------------- fused Pallas kernel -----------------------------

def _decoder_kernel(seq_ref, pos_ref, enc_ref, emb_w_ref, emb_b_ref,
                    swqkv_ref, sbqkv_ref, swo_ref, sbo_ref,
                    cwq_ref, cbq_ref, cwkv_ref, cbkv_ref, cwo_ref, cbo_ref,
                    ln_g_ref, ln_b_ref,
                    ffw1_ref, ffb1_ref, ffw2_ref, ffb2_ref,
                    outw_ref, outb_ref,
                    o_ref,
                    *, n_batch, t_len, s_len, heads, head_dim, n_layers):
    E = heads * head_dim

    def layernorm(y, g, b):
        # LayerNorm, eps=1e-5, biased variance (PyTorch semantics)
        mean = jnp.mean(y, axis=-1, keepdims=True)
        var = jnp.mean((y - mean) ** 2, axis=-1, keepdims=True)
        return (y - mean) * jax.lax.rsqrt(var + 1e-5) * g + b

    def softmax_rows(logits):
        mx = jnp.max(logits, axis=-1, keepdims=True)
        p = jnp.exp(logits - mx)
        denom = jnp.sum(p, axis=-1, keepdims=True)
        return p * pl.reciprocal(denom, approx=True)

    def mha(q, k, v, kv_len, wo, bo, causal_mask):
        # q: (N*Tq, E) (scale already folded into the Q projection weights)
        # k, v: (N*kv_len, E);  wo: (E, E);  bo: (1, E)
        batch_rows = []
        for n in range(n_batch):
            qn = q[n * t_len:(n + 1) * t_len, :]
            kn = k[n * kv_len:(n + 1) * kv_len, :]
            vn = v[n * kv_len:(n + 1) * kv_len, :]
            out_n = None
            for h in range(heads):
                qh = qn[:, h * head_dim:(h + 1) * head_dim]
                kh = kn[:, h * head_dim:(h + 1) * head_dim]
                vh = vn[:, h * head_dim:(h + 1) * head_dim]
                # energy = qh @ kh^T  ('qd,kd->qk')
                energy = jax.lax.dot_general(
                    qh, kh, (((1,), (1,)), ((), ())),
                    preferred_element_type=jnp.float32)
                if causal_mask is not None:
                    energy = jnp.where(causal_mask, energy, jnp.float32(-1e20))
                p = softmax_rows(energy)
                ctx = jnp.dot(p, vh, preferred_element_type=jnp.float32)  # (Tq, D)
                # fused concat-heads + output projection:
                #   concat_h(ctx_h) @ Wo == sum_h ctx_h @ Wo[h*D:(h+1)*D, :]
                contrib = jnp.dot(ctx, wo[h * head_dim:(h + 1) * head_dim, :],
                                  preferred_element_type=jnp.float32)
                out_n = contrib if out_n is None else out_n + contrib
            batch_rows.append(out_n)
        return jnp.concatenate(batch_rows, axis=0) + bo  # (N*Tq, E)

    # --- embeddings: Linear(1, E) broadcast + positional embedding -------------
    # TODO(synk): dropout layers are identity here (inference/eval semantics).
    x = seq_ref[...] * emb_w_ref[...] + emb_b_ref[...] + pos_ref[...]   # (N*T, E)
    enc = enc_ref[...]                                                  # (N*S, E)

    # causal (trg) mask generated in-kernel: row >= col
    row = jax.lax.broadcasted_iota(jnp.int32, (t_len, t_len), 0)
    col = jax.lax.broadcasted_iota(jnp.int32, (t_len, t_len), 1)
    causal = row >= col

    for l in range(n_layers):
        # ---- DecoderBlock: masked self-attention + residual LayerNorm --------
        qkv = jnp.dot(x, swqkv_ref[l],
                      preferred_element_type=jnp.float32) + sbqkv_ref[l]  # (N*T, 3E)
        attn = mha(qkv[:, 0:E], qkv[:, E:2 * E], qkv[:, 2 * E:3 * E],
                   t_len, swo_ref[l], sbo_ref[l], causal)
        xq = layernorm(attn + x, ln_g_ref[3 * l + 0], ln_b_ref[3 * l + 0])

        # ---- TransformerBlock: cross-attention with encoder output (no mask) -
        qc = jnp.dot(xq, cwq_ref[l],
                     preferred_element_type=jnp.float32) + cbq_ref[l]     # (N*T, E)
        kvc = jnp.dot(enc, cwkv_ref[l],
                      preferred_element_type=jnp.float32) + cbkv_ref[l]   # (N*S, 2E)
        attn2 = mha(qc, kvc[:, 0:E], kvc[:, E:2 * E],
                    s_len, cwo_ref[l], cbo_ref[l], None)
        xh = layernorm(attn2 + xq, ln_g_ref[3 * l + 1], ln_b_ref[3 * l + 1])

        # ---- feed-forward: Linear -> LeakyReLU(0.05) -> Linear + res LN -------
        hid = jnp.dot(xh, ffw1_ref[l],
                      preferred_element_type=jnp.float32) + ffb1_ref[l]
        hid = jnp.where(hid >= 0, hid, 0.05 * hid)
        ff = jnp.dot(hid, ffw2_ref[l],
                     preferred_element_type=jnp.float32) + ffb2_ref[l]
        x = layernorm(ff + xh, ln_g_ref[3 * l + 2], ln_b_ref[3 * l + 2])

    # ---- final output projection Linear(E, 1) ---------------------------------
    o_ref[...] = (jnp.dot(x, outw_ref[...],
                          preferred_element_type=jnp.float32) + outb_ref[...])


# ---------------------------- parameter packing (glue) ------------------------

def _pack_params(params):
    E = EMBED
    F = FWD_EXP * E
    s = 1.0 / (float(E) ** 0.5)   # softmax scale folded into the Q projections

    def stack(fn):
        return jnp.stack([fn(lp) for lp in params["layers"]], axis=0)

    return dict(
        emb_w=params["emb_w"].reshape(1, E),
        emb_b=params["emb_b"].reshape(1, E),
        # self-attention: merged [q | k | v] projection (scale folded into q)
        swqkv=stack(lambda lp: jnp.concatenate(
            [lp["self_attn"]["wq"] * s, lp["self_attn"]["wk"],
             lp["self_attn"]["wv"]], axis=1)),
        sbqkv=stack(lambda lp: jnp.concatenate(
            [lp["self_attn"]["bq"] * s, lp["self_attn"]["bk"],
             lp["self_attn"]["bv"]]).reshape(1, 3 * E)),
        swo=stack(lambda lp: lp["self_attn"]["wo"]),
        sbo=stack(lambda lp: lp["self_attn"]["bo"].reshape(1, E)),
        # cross-attention: q separate, merged [k | v]
        cwq=stack(lambda lp: lp["cross_attn"]["wq"] * s),
        cbq=stack(lambda lp: (lp["cross_attn"]["bq"] * s).reshape(1, E)),
        cwkv=stack(lambda lp: jnp.concatenate(
            [lp["cross_attn"]["wk"], lp["cross_attn"]["wv"]], axis=1)),
        cbkv=stack(lambda lp: jnp.concatenate(
            [lp["cross_attn"]["bk"], lp["cross_attn"]["bv"]]).reshape(1, 2 * E)),
        cwo=stack(lambda lp: lp["cross_attn"]["wo"]),
        cbo=stack(lambda lp: lp["cross_attn"]["bo"].reshape(1, E)),
        # layernorms: (norm, norm1, norm2) per layer -> (3*L, 1, E)
        ln_g=jnp.stack([lp[name].reshape(1, E) for lp in params["layers"]
                        for name in ("norm_g", "norm1_g", "norm2_g")], axis=0),
        ln_b=jnp.stack([lp[name].reshape(1, E) for lp in params["layers"]
                        for name in ("norm_b", "norm1_b", "norm2_b")], axis=0),
        ffw1=stack(lambda lp: lp["ff_w1"]),
        ffb1=stack(lambda lp: lp["ff_b1"].reshape(1, F)),
        ffw2=stack(lambda lp: lp["ff_w2"]),
        ffb2=stack(lambda lp: lp["ff_b2"].reshape(1, E)),
        out_w=params["out_w"],
        out_b=params["out_b"].reshape(1, 1),
    )


@jax.jit
def decoder_forward(params, output_seq, encoder_out):
    """Matches torch Decoder.forward (eval mode), as one fused Pallas kernel."""
    N, T = output_seq.shape
    S = encoder_out.shape[1]
    E = EMBED

    p = _pack_params(params)

    seq = output_seq.reshape(N * T, 1)
    pos = jnp.broadcast_to(params["pos"][:T][None], (N, T, E)).reshape(N * T, E)
    enc = encoder_out.reshape(N * S, E)

    kernel = functools.partial(
        _decoder_kernel, n_batch=N, t_len=T, s_len=S,
        heads=HEADS, head_dim=HEAD_DIM, n_layers=N_LAYERS)

    out = pl.pallas_call(
        kernel,
        out_shape=jax.ShapeDtypeStruct((N * T, 1), jnp.float32),
    )(seq, pos, enc,
      p["emb_w"], p["emb_b"],
      p["swqkv"], p["sbqkv"], p["swo"], p["sbo"],
      p["cwq"], p["cbq"], p["cwkv"], p["cbkv"], p["cwo"], p["cbo"],
      p["ln_g"], p["ln_b"],
      p["ffw1"], p["ffb1"], p["ffw2"], p["ffb2"],
      p["out_w"], p["out_b"])
    return out.reshape(N, T, 1)


# ---------------------------- deterministic init ------------------------------

def _linear_params(key, fan_in, fan_out):
    k1, k2 = jax.random.split(key)
    bound = 1.0 / (fan_in ** 0.5)
    w = jax.random.uniform(k1, (fan_in, fan_out), jnp.float32, -bound, bound)
    b = jax.random.uniform(k2, (fan_out,), jnp.float32, -bound, bound)
    return w, b


def _init_mha(key):
    ks = jax.random.split(key, 4)
    wv, bv = _linear_params(ks[0], EMBED, EMBED)
    wk, bk = _linear_params(ks[1], EMBED, EMBED)
    wq, bq = _linear_params(ks[2], EMBED, EMBED)
    wo, bo = _linear_params(ks[3], EMBED, EMBED)
    return dict(wv=wv, bv=bv, wk=wk, bk=bk, wq=wq, bq=bq, wo=wo, bo=bo)


def init_params(key):
    keys = jax.random.split(key, 3 + N_LAYERS)
    emb_w, emb_b = _linear_params(keys[0], 1, EMBED)
    pos = 0.02 * jax.random.normal(keys[1], (MAX_LEN, EMBED), jnp.float32)
    out_w, out_b = _linear_params(keys[2], EMBED, 1)
    layers = []
    for i in range(N_LAYERS):
        lk = jax.random.split(keys[3 + i], 4)
        ff_w1, ff_b1 = _linear_params(lk[2], EMBED, FWD_EXP * EMBED)
        ff_w2, ff_b2 = _linear_params(lk[3], FWD_EXP * EMBED, EMBED)
        layers.append(dict(
            self_attn=_init_mha(lk[0]),
            cross_attn=_init_mha(lk[1]),
            norm_g=jnp.ones((EMBED,), jnp.float32),
            norm_b=jnp.zeros((EMBED,), jnp.float32),
            norm1_g=jnp.ones((EMBED,), jnp.float32),
            norm1_b=jnp.zeros((EMBED,), jnp.float32),
            norm2_g=jnp.ones((EMBED,), jnp.float32),
            norm2_b=jnp.zeros((EMBED,), jnp.float32),
            ff_w1=ff_w1, ff_b1=ff_b1, ff_w2=ff_w2, ff_b2=ff_b2,
        ))
    return dict(emb_w=emb_w, emb_b=emb_b, pos=pos,
                out_w=out_w, out_b=out_b, layers=layers)


# ---------------------------------- main --------------------------------------

if __name__ == "__main__":
    key = jax.random.PRNGKey(0)
    pkey, k1, k2 = jax.random.split(key, 3)
    params = init_params(pkey)

    N, T, S = 2, 8, 16   # batch, decoder (output) seq len, encoder seq len
    output_seq = jax.random.normal(k1, (N, T), jnp.float32)            # univariate series
    encoder_out = jax.random.normal(k2, (N, S, EMBED), jnp.float32)    # outputOfEncoder

    out = decoder_forward(params, output_seq, encoder_out)
    out = jax.block_until_ready(out)
    assert out.shape == (N, T, 1) and out.dtype == jnp.float32
    assert bool(jnp.all(jnp.isfinite(out)))
    print("KERNEL_OK")
</pallas_src>

<mosaic_0001>
module attributes {stable_mosaic.version = 11 : i64} {
  func.func @_decoder_kernel(%arg0: memref<16x1xf32, #tpu.memory_space<vmem>>, %arg1: memref<16x32xf32, #tpu.memory_space<vmem>>, %arg2: memref<32x32xf32, #tpu.memory_space<vmem>>, %arg3: memref<1x32xf32, #tpu.memory_space<vmem>>, %arg4: memref<1x32xf32, #tpu.memory_space<vmem>>, %arg5: memref<2x32x96xf32, #tpu.memory_space<vmem>>, %arg6: memref<2x1x96xf32, #tpu.memory_space<vmem>>, %arg7: memref<2x32x32xf32, #tpu.memory_space<vmem>>, %arg8: memref<2x1x32xf32, #tpu.memory_space<vmem>>, %arg9: memref<2x32x32xf32, #tpu.memory_space<vmem>>, %arg10: memref<2x1x32xf32, #tpu.memory_space<vmem>>, %arg11: memref<2x32x64xf32, #tpu.memory_space<vmem>>, %arg12: memref<2x1x64xf32, #tpu.memory_space<vmem>>, %arg13: memref<2x32x32xf32, #tpu.memory_space<vmem>>, %arg14: memref<2x1x32xf32, #tpu.memory_space<vmem>>, %arg15: memref<6x1x32xf32, #tpu.memory_space<vmem>>, %arg16: memref<6x1x32xf32, #tpu.memory_space<vmem>>, %arg17: memref<2x32x64xf32, #tpu.memory_space<vmem>>, %arg18: memref<2x1x64xf32, #tpu.memory_space<vmem>>, %arg19: memref<2x64x32xf32, #tpu.memory_space<vmem>>, %arg20: memref<2x1x32xf32, #tpu.memory_space<vmem>>, %arg21: memref<32x1xf32, #tpu.memory_space<vmem>>, %arg22: memref<1x1xf32, #tpu.memory_space<vmem>>, %arg23: memref<16x1xf32, #tpu.memory_space<vmem>>) attributes {dimension_semantics = [], scalar_prefetch = 0 : i64, scratch_operands = 0 : i64, tpu.core_type = #tpu.core_type<tc>} {
    %c0 = arith.constant 0 : index
    %c0_0 = arith.constant 0 : index
    %0 = vector.load %arg0[%c0, %c0_0] : memref<16x1xf32, #tpu.memory_space<vmem>>, vector<16x1xf32>
    %c0_1 = arith.constant 0 : index
    %c0_2 = arith.constant 0 : index
    %1 = vector.load %arg3[%c0_1, %c0_2] : memref<1x32xf32, #tpu.memory_space<vmem>>, vector<1x32xf32>
    %2 = vector.broadcast %0 : vector<16x1xf32> to vector<16x32xf32>
    %3 = vector.broadcast %1 : vector<1x32xf32> to vector<16x32xf32>
    %4 = arith.mulf %2, %3 : vector<16x32xf32>
    %c0_3 = arith.constant 0 : index
    %c0_4 = arith.constant 0 : index
    %5 = vector.load %arg4[%c0_3, %c0_4] : memref<1x32xf32, #tpu.memory_space<vmem>>, vector<1x32xf32>
    %6 = vector.broadcast %5 : vector<1x32xf32> to vector<16x32xf32>
    %7 = arith.addf %4, %6 : vector<16x32xf32>
    %c0_5 = arith.constant 0 : index
    %c0_6 = arith.constant 0 : index
    %8 = vector.load %arg1[%c0_5, %c0_6] : memref<16x32xf32, #tpu.memory_space<vmem>>, vector<16x32xf32>
    %9 = arith.addf %7, %8 : vector<16x32xf32>
    %c0_7 = arith.constant 0 : index
    %c0_8 = arith.constant 0 : index
    %10 = vector.load %arg2[%c0_7, %c0_8] : memref<32x32xf32, #tpu.memory_space<vmem>>, vector<32x32xf32>
    %11 = tpu.iota {dimensions = array<i32: 0>} : vector<8x8xi32>
    %12 = tpu.iota {dimensions = array<i32: 1>} : vector<8x8xi32>
    %13 = arith.cmpi sge, %11, %12 : vector<8x8xi32>
    %c0_9 = arith.constant 0 : index
    %c0_10 = arith.constant 0 : index
    %c0_11 = arith.constant 0 : index
    %14 = vector.load %arg5[%c0_9, %c0_10, %c0_11] : memref<2x32x96xf32, #tpu.memory_space<vmem>>, vector<1x32x96xf32>
    %15 = vector.shape_cast %14 : vector<1x32x96xf32> to vector<32x96xf32>
    %cst = arith.constant dense<0.000000e+00> : vector<16x96xf32>
    %16 = tpu.matmul %9, %15, %cst {dimension_numbers = #tpu.dot_dimension_numbers<[1], [0], [0], [1], [0, 0, 1, 1], [], []>} : vector<16x32xf32>, vector<32x96xf32>, vector<16x96xf32> -> vector<16x96xf32>
    %c0_12 = arith.constant 0 : index
    %c0_13 = arith.constant 0 : index
    %c0_14 = arith.constant 0 : index
    %17 = vector.load %arg6[%c0_12, %c0_13, %c0_14] : memref<2x1x96xf32, #tpu.memory_space<vmem>>, vector<1x1x96xf32>
    %18 = vector.shape_cast %17 : vector<1x1x96xf32> to vector<1x96xf32>
    %19 = vector.broadcast %18 : vector<1x96xf32> to vector<16x96xf32>
    %20 = arith.addf %16, %19 : vector<16x96xf32>
    %21 = vector.extract_strided_slice %20 {offsets = [0, 0], sizes = [16, 32], strides = [1, 1]} : vector<16x96xf32> to vector<16x32xf32>
    %22 = vector.extract_strided_slice %20 {offsets = [0, 32], sizes = [16, 32], strides = [1, 1]} : vector<16x96xf32> to vector<16x32xf32>
    %23 = vector.extract_strided_slice %20 {offsets = [0, 64], sizes = [16, 32], strides = [1, 1]} : vector<16x96xf32> to vector<16x32xf32>
    %c0_15 = arith.constant 0 : index
    %c0_16 = arith.constant 0 : index
    %c0_17 = arith.constant 0 : index
    %24 = vector.load %arg7[%c0_15, %c0_16, %c0_17] : memref<2x32x32xf32, #tpu.memory_space<vmem>>, vector<1x32x32xf32>
    %25 = vector.shape_cast %24 : vector<1x32x32xf32> to vector<32x32xf32>
    %c0_18 = arith.constant 0 : index
    %c0_19 = arith.constant 0 : index
    %c0_20 = arith.constant 0 : index
    %26 = vector.load %arg8[%c0_18, %c0_19, %c0_20] : memref<2x1x32xf32, #tpu.memory_space<vmem>>, vector<1x1x32xf32>
    %27 = vector.shape_cast %26 : vector<1x1x32xf32> to vector<1x32xf32>
    %28 = vector.extract_strided_slice %21 {offsets = [0, 0], sizes = [8, 32], strides = [1, 1]} : vector<16x32xf32> to vector<8x32xf32>
    %29 = vector.extract_strided_slice %22 {offsets = [0, 0], sizes = [8, 32], strides = [1, 1]} : vector<16x32xf32> to vector<8x32xf32>
    %30 = vector.extract_strided_slice %23 {offsets = [0, 0], sizes = [8, 32], strides = [1, 1]} : vector<16x32xf32> to vector<8x32xf32>
    %31 = vector.extract_strided_slice %28 {offsets = [0, 0], sizes = [8, 8], strides = [1, 1]} : vector<8x32xf32> to vector<8x8xf32>
    %32 = vector.extract_strided_slice %29 {offsets = [0, 0], sizes = [8, 8], strides = [1, 1]} : vector<8x32xf32> to vector<8x8xf32>
    %33 = vector.extract_strided_slice %30 {offsets = [0, 0], sizes = [8, 8], strides = [1, 1]} : vector<8x32xf32> to vector<8x8xf32>
    %cst_21 = arith.constant dense<0.000000e+00> : vector<8x8xf32>
    %34 = tpu.matmul %31, %32, %cst_21 {dimension_numbers = #tpu.dot_dimension_numbers<[1], [1], [0], [0], [0, 0, 1, 0], [], []>} : vector<8x8xf32>, vector<8x8xf32>, vector<8x8xf32> -> vector<8x8xf32>
    %cst_22 = arith.constant -1.000000e+20 : f32
    %35 = vector.broadcast %cst_22 : f32 to vector<8x8xf32>
    %36 = arith.select %13, %34, %35 : vector<8x8xi1>, vector<8x8xf32>
    %cst_23 = arith.constant dense<0xFF800000> : vector<8xf32>
    %37 = vector.multi_reduction <maximumf>, %36, %cst_23 [1] : vector<8x8xf32> to vector<8xf32>
    %38 = vector.shape_cast %37 : vector<8xf32> to vector<8x1xf32>
    %39 = vector.broadcast %38 : vector<8x1xf32> to vector<8x8xf32>
    %40 = arith.subf %36, %39 : vector<8x8xf32>
    %41 = math.exp %40 : vector<8x8xf32>
    %cst_24 = arith.constant dense<0.000000e+00> : vector<8xf32>
    %42 = vector.multi_reduction <add>, %41, %cst_24 [1] : vector<8x8xf32> to vector<8xf32>
    %43 = vector.shape_cast %42 : vector<8xf32> to vector<8x1xf32>
    %44 = tpu.reciprocal %43 {approx = true} : vector<8x1xf32> -> vector<8x1xf32>
    %45 = vector.broadcast %44 : vector<8x1xf32> to vector<8x8xf32>
    %46 = arith.mulf %41, %45 : vector<8x8xf32>
    %cst_25 = arith.constant dense<0.000000e+00> : vector<8x8xf32>
    %47 = tpu.matmul %46, %33, %cst_25 {dimension_numbers = #tpu.dot_dimension_numbers<[1], [0], [0], [1], [0, 0, 1, 1], [], []>} : vector<8x8xf32>, vector<8x8xf32>, vector<8x8xf32> -> vector<8x8xf32>
    %48 = vector.extract_strided_slice %25 {offsets = [0, 0], sizes = [8, 32], strides = [1, 1]} : vector<32x32xf32> to vector<8x32xf32>
    %cst_26 = arith.constant dense<0.000000e+00> : vector<8x32xf32>
    %49 = tpu.matmul %47, %48, %cst_26 {dimension_numbers = #tpu.dot_dimension_numbers<[1], [0], [0], [1], [0, 0, 1, 1], [], []>} : vector<8x8xf32>, vector<8x32xf32>, vector<8x32xf32> -> vector<8x32xf32>
    %50 = vector.extract_strided_slice %28 {offsets = [0, 8], sizes = [8, 8], strides = [1, 1]} : vector<8x32xf32> to vector<8x8xf32>
    %51 = vector.extract_strided_slice %29 {offsets = [0, 8], sizes = [8, 8], strides = [1, 1]} : vector<8x32xf32> to vector<8x8xf32>
    %52 = vector.extract_strided_slice %30 {offsets = [0, 8], sizes = [8, 8], strides = [1, 1]} : vector<8x32xf32> to vector<8x8xf32>
    %cst_27 = arith.constant dense<0.000000e+00> : vector<8x8xf32>
    %53 = tpu.matmul %50, %51, %cst_27 {dimension_numbers = #tpu.dot_dimension_numbers<[1], [1], [0], [0], [0, 0, 1, 0], [], []>} : vector<8x8xf32>, vector<8x8xf32>, vector<8x8xf32> -> vector<8x8xf32>
    %cst_28 = arith.constant -1.000000e+20 : f32
    %54 = vector.broadcast %cst_28 : f32 to vector<8x8xf32>
    %55 = arith.select %13, %53, %54 : vector<8x8xi1>, vector<8x8xf32>
    %cst_29 = arith.constant dense<0xFF800000> : vector<8xf32>
    %56 = vector.multi_reduction <maximumf>, %55, %cst_29 [1] : vector<8x8xf32> to vector<8xf32>
    %57 = vector.shape_cast %56 : vector<8xf32> to vector<8x1xf32>
    %58 = vector.broadcast %57 : vector<8x1xf32> to vector<8x8xf32>
    %59 = arith.subf %55, %58 : vector<8x8xf32>
    %60 = math.exp %59 : vector<8x8xf32>
    %cst_30 = arith.constant dense<0.000000e+00> : vector<8xf32>
    %61 = vector.multi_reduction <add>, %60, %cst_30 [1] : vector<8x8xf32> to vector<8xf32>
    %62 = vector.shape_cast %61 : vector<8xf32> to vector<8x1xf32>
    %63 = tpu.reciprocal %62 {approx = true} : vector<8x1xf32> -> vector<8x1xf32>
    %64 = vector.broadcast %63 : vector<8x1xf32> to vector<8x8xf32>
    %65 = arith.mulf %60, %64 : vector<8x8xf32>
    %cst_31 = arith.constant dense<0.000000e+00> : vector<8x8xf32>
    %66 = tpu.matmul %65, %52, %cst_31 {dimension_numbers = #tpu.dot_dimension_numbers<[1], [0], [0], [1], [0, 0, 1, 1], [], []>} : vector<8x8xf32>, vector<8x8xf32>, vector<8x8xf32> -> vector<8x8xf32>
    %67 = vector.extract_strided_slice %25 {offsets = [8, 0], sizes = [8, 32], strides = [1, 1]} : vector<32x32xf32> to vector<8x32xf32>
    %cst_32 = arith.constant dense<0.000000e+00> : vector<8x32xf32>
    %68 = tpu.matmul %66, %67, %cst_32 {dimension_numbers = #tpu.dot_dimension_numbers<[1], [0], [0], [1], [0, 0, 1, 1], [], []>} : vector<8x8xf32>, vector<8x32xf32>, vector<8x32xf32> -> vector<8x32xf32>
    %69 = arith.addf %49, %68 : vector<8x32xf32>
    %70 = vector.extract_strided_slice %28 {offsets = [0, 16], sizes = [8, 8], strides = [1, 1]} : vector<8x32xf32> to vector<8x8xf32>
    %71 = vector.extract_strided_slice %29 {offsets = [0, 16], sizes = [8, 8], strides = [1, 1]} : vector<8x32xf32> to vector<8x8xf32>
    %72 = vector.extract_strided_slice %30 {offsets = [0, 16], sizes = [8, 8], strides = [1, 1]} : vector<8x32xf32> to vector<8x8xf32>
    %cst_33 = arith.constant dense<0.000000e+00> : vector<8x8xf32>
    %73 = tpu.matmul %70, %71, %cst_33 {dimension_numbers = #tpu.dot_dimension_numbers<[1], [1], [0], [0], [0, 0, 1, 0], [], []>} : vector<8x8xf32>, vector<8x8xf32>, vector<8x8xf32> -> vector<8x8xf32>
    %cst_34 = arith.constant -1.000000e+20 : f32
    %74 = vector.broadcast %cst_34 : f32 to vector<8x8xf32>
    %75 = arith.select %13, %73, %74 : vector<8x8xi1>, vector<8x8xf32>
    %cst_35 = arith.constant dense<0xFF800000> : vector<8xf32>
    %76 = vector.multi_reduction <maximumf>, %75, %cst_35 [1] : vector<8x8xf32> to vector<8xf32>
    %77 = vector.shape_cast %76 : vector<8xf32> to vector<8x1xf32>
    %78 = vector.broadcast %77 : vector<8x1xf32> to vector<8x8xf32>
    %79 = arith.subf %75, %78 : vector<8x8xf32>
    %80 = math.exp %79 : vector<8x8xf32>
    %cst_36 = arith.constant dense<0.000000e+00> : vector<8xf32>
    %81 = vector.multi_reduction <add>, %80, %cst_36 [1] : vector<8x8xf32> to vector<8xf32>
    %82 = vector.shape_cast %81 : vector<8xf32> to vector<8x1xf32>
    %83 = tpu.reciprocal %82 {approx = true} : vector<8x1xf32> -> vector<8x1xf32>
    %84 = vector.broadcast %83 : vector<8x1xf32> to vector<8x8xf32>
    %85 = arith.mulf %80, %84 : vector<8x8xf32>
    %cst_37 = arith.constant dense<0.000000e+00> : vector<8x8xf32>
    %86 = tpu.matmul %85, %72, %cst_37 {dimension_numbers = #tpu.dot_dimension_numbers<[1], [0], [0], [1], [0, 0, 1, 1], [], []>} : vector<8x8xf32>, vector<8x8xf32>, vector<8x8xf32> -> vector<8x8xf32>
    %87 = vector.extract_strided_slice %25 {offsets = [16, 0], sizes = [8, 32], strides = [1, 1]} : vector<32x32xf32> to vector<8x32xf32>
    %cst_38 = arith.constant dense<0.000000e+00> : vector<8x32xf32>
    %88 = tpu.matmul %86, %87, %cst_38 {dimension_numbers = #tpu.dot_dimension_numbers<[1], [0], [0], [1], [0, 0, 1, 1], [], []>} : vector<8x8xf32>, vector<8x32xf32>, vector<8x32xf32> -> vector<8x32xf32>
    %89 = arith.addf %69, %88 : vector<8x32xf32>
    %90 = vector.extract_strided_slice %28 {offsets = [0, 24], sizes = [8, 8], strides = [1, 1]} : vector<8x32xf32> to vector<8x8xf32>
    %91 = vector.extract_strided_slice %29 {offsets = [0, 24], sizes = [8, 8], strides = [1, 1]} : vector<8x32xf32> to vector<8x8xf32>
    %92 = vector.extract_strided_slice %30 {offsets = [0, 24], sizes = [8, 8], strides = [1, 1]} : vector<8x32xf32> to vector<8x8xf32>
    %cst_39 = arith.constant dense<0.000000e+00> : vector<8x8xf32>
    %93 = tpu.matmul %90, %91, %cst_39 {dimension_numbers = #tpu.dot_dimension_numbers<[1], [1], [0], [0], [0, 0, 1, 0], [], []>} : vector<8x8xf32>, vector<8x8xf32>, vector<8x8xf32> -> vector<8x8xf32>
    %cst_40 = arith.constant -1.000000e+20 : f32
    %94 = vector.broadcast %cst_40 : f32 to vector<8x8xf32>
    %95 = arith.select %13, %93, %94 : vector<8x8xi1>, vector<8x8xf32>
    %cst_41 = arith.constant dense<0xFF800000> : vector<8xf32>
    %96 = vector.multi_reduction <maximumf>, %95, %cst_41 [1] : vector<8x8xf32> to vector<8xf32>
    %97 = vector.shape_cast %96 : vector<8xf32> to vector<8x1xf32>
    %98 = vector.broadcast %97 : vector<8x1xf32> to vector<8x8xf32>
    %99 = arith.subf %95, %98 : vector<8x8xf32>
    %100 = math.exp %99 : vector<8x8xf32>
    %cst_42 = arith.constant dense<0.000000e+00> : vector<8xf32>
    %101 = vector.multi_reduction <add>, %100, %cst_42 [1] : vector<8x8xf32> to vector<8xf32>
    %102 = vector.shape_cast %101 : vector<8xf32> to vector<8x1xf32>
    %103 = tpu.reciprocal %102 {approx = true} : vector<8x1xf32> -> vector<8x1xf32>
    %104 = vector.broadcast %103 : vector<8x1xf32> to vector<8x8xf32>
    %105 = arith.mulf %100, %104 : vector<8x8xf32>
    %cst_43 = arith.constant dense<0.000000e+00> : vector<8x8xf32>
    %106 = tpu.matmul %105, %92, %cst_43 {dimension_numbers = #tpu.dot_dimension_numbers<[1], [0], [0], [1], [0, 0, 1, 1], [], []>} : vector<8x8xf32>, vector<8x8xf32>, vector<8x8xf32> -> vector<8x8xf32>
    %107 = vector.extract_strided_slice %25 {offsets = [24, 0], sizes = [8, 32], strides = [1, 1]} : vector<32x32xf32> to vector<8x32xf32>
    %cst_44 = arith.constant dense<0.000000e+00> : vector<8x32xf32>
    %108 = tpu.matmul %106, %107, %cst_44 {dimension_numbers = #tpu.dot_dimension_numbers<[1], [0], [0], [1], [0, 0, 1, 1], [], []>} : vector<8x8xf32>, vector<8x32xf32>, vector<8x32xf32> -> vector<8x32xf32>
    %109 = arith.addf %89, %108 : vector<8x32xf32>
    %110 = vector.extract_strided_slice %21 {offsets = [8, 0], sizes = [8, 32], strides = [1, 1]} : vector<16x32xf32> to vector<8x32xf32>
    %111 = vector.extract_strided_slice %22 {offsets = [8, 0], sizes = [8, 32], strides = [1, 1]} : vector<16x32xf32> to vector<8x32xf32>
    %112 = vector.extract_strided_slice %23 {offsets = [8, 0], sizes = [8, 32], strides = [1, 1]} : vector<16x32xf32> to vector<8x32xf32>
    %113 = vector.extract_strided_slice %110 {offsets = [0, 0], sizes = [8, 8], strides = [1, 1]} : vector<8x32xf32> to vector<8x8xf32>
    %114 = vector.extract_strided_slice %111 {offsets = [0, 0], sizes = [8, 8], strides = [1, 1]} : vector<8x32xf32> to vector<8x8xf32>
    %115 = vector.extract_strided_slice %112 {offsets = [0, 0], sizes = [8, 8], strides = [1, 1]} : vector<8x32xf32> to vector<8x8xf32>
    %cst_45 = arith.constant dense<0.000000e+00> : vector<8x8xf32>
    %116 = tpu.matmul %113, %114, %cst_45 {dimension_numbers = #tpu.dot_dimension_numbers<[1], [1], [0], [0], [0, 0, 1, 0], [], []>} : vector<8x8xf32>, vector<8x8xf32>, vector<8x8xf32> -> vector<8x8xf32>
    %cst_46 = arith.constant -1.000000e+20 : f32
    %117 = vector.broadcast %cst_46 : f32 to vector<8x8xf32>
    %118 = arith.select %13, %116, %117 : vector<8x8xi1>, vector<8x8xf32>
    %cst_47 = arith.constant dense<0xFF800000> : vector<8xf32>
    %119 = vector.multi_reduction <maximumf>, %118, %cst_47 [1] : vector<8x8xf32> to vector<8xf32>
    %120 = vector.shape_cast %119 : vector<8xf32> to vector<8x1xf32>
    %121 = vector.broadcast %120 : vector<8x1xf32> to vector<8x8xf32>
    %122 = arith.subf %118, %121 : vector<8x8xf32>
    %123 = math.exp %122 : vector<8x8xf32>
    %cst_48 = arith.constant dense<0.000000e+00> : vector<8xf32>
    %124 = vector.multi_reduction <add>, %123, %cst_48 [1] : vector<8x8xf32> to vector<8xf32>
    %125 = vector.shape_cast %124 : vector<8xf32> to vector<8x1xf32>
    %126 = tpu.reciprocal %125 {approx = true} : vector<8x1xf32> -> vector<8x1xf32>
    %127 = vector.broadcast %126 : vector<8x1xf32> to vector<8x8xf32>
    %128 = arith.mulf %123, %127 : vector<8x8xf32>
    %cst_49 = arith.constant dense<0.000000e+00> : vector<8x8xf32>
    %129 = tpu.matmul %128, %115, %cst_49 {dimension_numbers = #tpu.dot_dimension_numbers<[1], [0], [0], [1], [0, 0, 1, 1], [], []>} : vector<8x8xf32>, vector<8x8xf32>, vector<8x8xf32> -> vector<8x8xf32>
    %130 = vector.extract_strided_slice %25 {offsets = [0, 0], sizes = [8, 32], strides = [1, 1]} : vector<32x32xf32> to vector<8x32xf32>
    %cst_50 = arith.constant dense<0.000000e+00> : vector<8x32xf32>
    %131 = tpu.matmul %129, %130, %cst_50 {dimension_numbers = #tpu.dot_dimension_numbers<[1], [0], [0], [1], [0, 0, 1, 1], [], []>} : vector<8x8xf32>, vector<8x32xf32>, vector<8x32xf32> -> vector<8x32xf32>
    %132 = vector.extract_strided_slice %110 {offsets = [0, 8], sizes = [8, 8], strides = [1, 1]} : vector<8x32xf32> to vector<8x8xf32>
    %133 = vector.extract_strided_slice %111 {offsets = [0, 8], sizes = [8, 8], strides = [1, 1]} : vector<8x32xf32> to vector<8x8xf32>
    %134 = vector.extract_strided_slice %112 {offsets = [0, 8], sizes = [8, 8], strides = [1, 1]} : vector<8x32xf32> to vector<8x8xf32>
    %cst_51 = arith.constant dense<0.000000e+00> : vector<8x8xf32>
    %135 = tpu.matmul %132, %133, %cst_51 {dimension_numbers = #tpu.dot_dimension_numbers<[1], [1], [0], [0], [0, 0, 1, 0], [], []>} : vector<8x8xf32>, vector<8x8xf32>, vector<8x8xf32> -> vector<8x8xf32>
    %cst_52 = arith.constant -1.000000e+20 : f32
    %136 = vector.broadcast %cst_52 : f32 to vector<8x8xf32>
    %137 = arith.select %13, %135, %136 : vector<8x8xi1>, vector<8x8xf32>
    %cst_53 = arith.constant dense<0xFF800000> : vector<8xf32>
    %138 = vector.multi_reduction <maximumf>, %137, %cst_53 [1] : vector<8x8xf32> to vector<8xf32>
    %139 = vector.shape_cast %138 : vector<8xf32> to vector<8x1xf32>
    %140 = vector.broadcast %139 : vector<8x1xf32> to vector<8x8xf32>
    %141 = arith.subf %137, %140 : vector<8x8xf32>
    %142 = math.exp %141 : vector<8x8xf32>
    %cst_54 = arith.constant dense<0.000000e+00> : vector<8xf32>
    %143 = vector.multi_reduction <add>, %142, %cst_54 [1] : vector<8x8xf32> to vector<8xf32>
    %144 = vector.shape_cast %143 : vector<8xf32> to vector<8x1xf32>
    %145 = tpu.reciprocal %144 {approx = true} : vector<8x1xf32> -> vector<8x1xf32>
    %146 = vector.broadcast %145 : vector<8x1xf32> to vector<8x8xf32>
    %147 = arith.mulf %142, %146 : vector<8x8xf32>
    %cst_55 = arith.constant dense<0.000000e+00> : vector<8x8xf32>
    %148 = tpu.matmul %147, %134, %cst_55 {dimension_numbers = #tpu.dot_dimension_numbers<[1], [0], [0], [1], [0, 0, 1, 1], [], []>} : vector<8x8xf32>, vector<8x8xf32>, vector<8x8xf32> -> vector<8x8xf32>
    %149 = vector.extract_strided_slice %25 {offsets = [8, 0], sizes = [8, 32], strides = [1, 1]} : vector<32x32xf32> to vector<8x32xf32>
    %cst_56 = arith.constant dense<0.000000e+00> : vector<8x32xf32>
    %150 = tpu.matmul %148, %149, %cst_56 {dimension_numbers = #tpu.dot_dimension_numbers<[1], [0], [0], [1], [0, 0, 1, 1], [], []>} : vector<8x8xf32>, vector<8x32xf32>, vector<8x32xf32> -> vector<8x32xf32>
    %151 = arith.addf %131, %150 : vector<8x32xf32>
    %152 = vector.extract_strided_slice %110 {offsets = [0, 16], sizes = [8, 8], strides = [1, 1]} : vector<8x32xf32> to vector<8x8xf32>
    %153 = vector.extract_strided_slice %111 {offsets = [0, 16], sizes = [8, 8], strides = [1, 1]} : vector<8x32xf32> to vector<8x8xf32>
    %154 = vector.extract_strided_slice %112 {offsets = [0, 16], sizes = [8, 8], strides = [1, 1]} : vector<8x32xf32> to vector<8x8xf32>
    %cst_57 = arith.constant dense<0.000000e+00> : vector<8x8xf32>
    %155 = tpu.matmul %152, %153, %cst_57 {dimension_numbers = #tpu.dot_dimension_numbers<[1], [1], [0], [0], [0, 0, 1, 0], [], []>} : vector<8x8xf32>, vector<8x8xf32>, vector<8x8xf32> -> vector<8x8xf32>
    %cst_58 = arith.constant -1.000000e+20 : f32
    %156 = vector.broadcast %cst_58 : f32 to vector<8x8xf32>
    %157 = arith.select %13, %155, %156 : vector<8x8xi1>, vector<8x8xf32>
    %cst_59 = arith.constant dense<0xFF800000> : vector<8xf32>
    %158 = vector.multi_reduction <maximumf>, %157, %cst_59 [1] : vector<8x8xf32> to vector<8xf32>
    %159 = vector.shape_cast %158 : vector<8xf32> to vector<8x1xf32>
    %160 = vector.broadcast %159 : vector<8x1xf32> to vector<8x8xf32>
    %161 = arith.subf %157, %160 : vector<8x8xf32>
    %162 = math.exp %161 : vector<8x8xf32>
    %cst_60 = arith.constant dense<0.000000e+00> : vector<8xf32>
    %163 = vector.multi_reduction <add>, %162, %cst_60 [1] : vector<8x8xf32> to vector<8xf32>
    %164 = vector.shape_cast %163 : vector<8xf32> to vector<8x1xf32>
    %165 = tpu.reciprocal %164 {approx = true} : vector<8x1xf32> -> vector<8x1xf32>
    %166 = vector.broadcast %165 : vector<8x1xf32> to vector<8x8xf32>
    %167 = arith.mulf %162, %166 : vector<8x8xf32>
    %cst_61 = arith.constant dense<0.000000e+00> : vector<8x8xf32>
    %168 = tpu.matmul %167, %154, %cst_61 {dimension_numbers = #tpu.dot_dimension_numbers<[1], [0], [0], [1], [0, 0, 1, 1], [], []>} : vector<8x8xf32>, vector<8x8xf32>, vector<8x8xf32> -> vector<8x8xf32>
    %169 = vector.extract_strided_slice %25 {offsets = [16, 0], sizes = [8, 32], strides = [1, 1]} : vector<32x32xf32> to vector<8x32xf32>
    %cst_62 = arith.constant dense<0.000000e+00> : vector<8x32xf32>
    %170 = tpu.matmul %168, %169, %cst_62 {dimension_numbers = #tpu.dot_dimension_numbers<[1], [0], [0], [1], [0, 0, 1, 1], [], []>} : vector<8x8xf32>, vector<8x32xf32>, vector<8x32xf32> -> vector<8x32xf32>
    %171 = arith.addf %151, %170 : vector<8x32xf32>
    %172 = vector.extract_strided_slice %110 {offsets = [0, 24], sizes = [8, 8], strides = [1, 1]} : vector<8x32xf32> to vector<8x8xf32>
    %173 = vector.extract_strided_slice %111 {offsets = [0, 24], sizes = [8, 8], strides = [1, 1]} : vector<8x32xf32> to vector<8x8xf32>
    %174 = vector.extract_strided_slice %112 {offsets = [0, 24], sizes = [8, 8], strides = [1, 1]} : vector<8x32xf32> to vector<8x8xf32>
    %cst_63 = arith.constant dense<0.000000e+00> : vector<8x8xf32>
    %175 = tpu.matmul %172, %173, %cst_63 {dimension_numbers = #tpu.dot_dimension_numbers<[1], [1], [0], [0], [0, 0, 1, 0], [], []>} : vector<8x8xf32>, vector<8x8xf32>, vector<8x8xf32> -> vector<8x8xf32>
    %cst_64 = arith.constant -1.000000e+20 : f32
    %176 = vector.broadcast %cst_64 : f32 to vector<8x8xf32>
    %177 = arith.select %13, %175, %176 : vector<8x8xi1>, vector<8x8xf32>
    %cst_65 = arith.constant dense<0xFF800000> : vector<8xf32>
    %178 = vector.multi_reduction <maximumf>, %177, %cst_65 [1] : vector<8x8xf32> to vector<8xf32>
    %179 = vector.shape_cast %178 : vector<8xf32> to vector<8x1xf32>
    %180 = vector.broadcast %179 : vector<8x1xf32> to vector<8x8xf32>
    %181 = arith.subf %177, %180 : vector<8x8xf32>
    %182 = math.exp %181 : vector<8x8xf32>
    %cst_66 = arith.constant dense<0.000000e+00> : vector<8xf32>
    %183 = vector.multi_reduction <add>, %182, %cst_66 [1] : vector<8x8xf32> to vector<8xf32>
    %184 = vector.shape_cast %183 : vector<8xf32> to vector<8x1xf32>
    %185 = tpu.reciprocal %184 {approx = true} : vector<8x1xf32> -> vector<8x1xf32>
    %186 = vector.broadcast %185 : vector<8x1xf32> to vector<8x8xf32>
    %187 = arith.mulf %182, %186 : vector<8x8xf32>
    %cst_67 = arith.constant dense<0.000000e+00> : vector<8x8xf32>
    %188 = tpu.matmul %187, %174, %cst_67 {dimension_numbers = #tpu.dot_dimension_numbers<[1], [0], [0], [1], [0, 0, 1, 1], [], []>} : vector<8x8xf32>, vector<8x8xf32>, vector<8x8xf32> -> vector<8x8xf32>
    %189 = vector.extract_strided_slice %25 {offsets = [24, 0], sizes = [8, 32], strides = [1, 1]} : vector<32x32xf32> to vector<8x32xf32>
    %cst_68 = arith.constant dense<0.000000e+00> : vector<8x32xf32>
    %190 = tpu.matmul %188, %189, %cst_68 {dimension_numbers = #tpu.dot_dimension_numbers<[1], [0], [0], [1], [0, 0, 1, 1], [], []>} : vector<8x8xf32>, vector<8x32xf32>, vector<8x32xf32> -> vector<8x32xf32>
    %191 = arith.addf %171, %190 : vector<8x32xf32>
    %192 = tpu.concatenate %109, %191 in 0 : vector<8x32xf32>, vector<8x32xf32> -> vector<16x32xf32>
    %193 = vector.broadcast %27 : vector<1x32xf32> to vector<16x32xf32>
    %194 = arith.addf %192, %193 : vector<16x32xf32>
    %195 = arith.addf %194, %9 : vector<16x32xf32>
    %c0_69 = arith.constant 0 : index
    %c0_70 = arith.constant 0 : index
    %c0_71 = arith.constant 0 : index
    %196 = vector.load %arg15[%c0_69, %c0_70, %c0_71] : memref<6x1x32xf32, #tpu.memory_space<vmem>>, vector<1x1x32xf32>
    %197 = vector.shape_cast %196 : vector<1x1x32xf32> to vector<1x32xf32>
    %c0_72 = arith.constant 0 : index
    %c0_73 = arith.constant 0 : index
    %c0_74 = arith.constant 0 : index
    %198 = vector.load %arg16[%c0_72, %c0_73, %c0_74] : memref<6x1x32xf32, #tpu.memory_space<vmem>>, vector<1x1x32xf32>
    %199 = vector.shape_cast %198 : vector<1x1x32xf32> to vector<1x32xf32>
    %cst_75 = arith.constant dense<0.000000e+00> : vector<16xf32>
    %200 = vector.multi_reduction <add>, %195, %cst_75 [1] : vector<16x32xf32> to vector<16xf32>
    %201 = vector.shape_cast %200 : vector<16xf32> to vector<16x1xf32>
    %cst_76 = arith.constant 3.200000e+01 : f32
    %202 = vector.broadcast %cst_76 : f32 to vector<16x1xf32>
    %203 = arith.divf %201, %202 : vector<16x1xf32>
    %204 = vector.broadcast %203 : vector<16x1xf32> to vector<16x32xf32>
    %205 = arith.subf %195, %204 : vector<16x32xf32>
    %206 = arith.mulf %205, %205 : vector<16x32xf32>
    %cst_77 = arith.constant dense<0.000000e+00> : vector<16xf32>
    %207 = vector.multi_reduction <add>, %206, %cst_77 [1] : vector<16x32xf32> to vector<16xf32>
    %208 = vector.shape_cast %207 : vector<16xf32> to vector<16x1xf32>
    %cst_78 = arith.constant 3.200000e+01 : f32
    %209 = vector.broadcast %cst_78 : f32 to vector<16x1xf32>
    %210 = arith.divf %208, %209 : vector<16x1xf32>
    %211 = vector.broadcast %203 : vector<16x1xf32> to vector<16x32xf32>
    %212 = arith.subf %195, %211 : vector<16x32xf32>
    %cst_79 = arith.constant 9.99999974E-6 : f32
    %213 = vector.broadcast %cst_79 : f32 to vector<16x1xf32>
    %214 = arith.addf %210, %213 : vector<16x1xf32>
    %215 = math.rsqrt %214 : vector<16x1xf32>
    %216 = vector.broadcast %215 : vector<16x1xf32> to vector<16x32xf32>
    %217 = arith.mulf %212, %216 : vector<16x32xf32>
    %218 = vector.broadcast %197 : vector<1x32xf32> to vector<16x32xf32>
    %219 = arith.mulf %217, %218 : vector<16x32xf32>
    %220 = vector.broadcast %199 : vector<1x32xf32> to vector<16x32xf32>
    %221 = arith.addf %219, %220 : vector<16x32xf32>
    %c0_80 = arith.constant 0 : index
    %c0_81 = arith.constant 0 : index
    %c0_82 = arith.constant 0 : index
    %222 = vector.load %arg9[%c0_80, %c0_81, %c0_82] : memref<2x32x32xf32, #tpu.memory_space<vmem>>, vector<1x32x32xf32>
    %223 = vector.shape_cast %222 : vector<1x32x32xf32> to vector<32x32xf32>
    %cst_83 = arith.constant dense<0.000000e+00> : vector<16x32xf32>
    %224 = tpu.matmul %221, %223, %cst_83 {dimension_numbers = #tpu.dot_dimension_numbers<[1], [0], [0], [1], [0, 0, 1, 1], [], []>} : vector<16x32xf32>, vector<32x32xf32>, vector<16x32xf32> -> vector<16x32xf32>
    %c0_84 = arith.constant 0 : index
    %c0_85 = arith.constant 0 : index
    %c0_86 = arith.constant 0 : index
    %225 = vector.load %arg10[%c0_84, %c0_85, %c0_86] : memref<2x1x32xf32, #tpu.memory_space<vmem>>, vector<1x1x32xf32>
    %226 = vector.shape_cast %225 : vector<1x1x32xf32> to vector<1x32xf32>
    %227 = vector.broadcast %226 : vector<1x32xf32> to vector<16x32xf32>
    %228 = arith.addf %224, %227 : vector<16x32xf32>
    %c0_87 = arith.constant 0 : index
    %c0_88 = arith.constant 0 : index
    %c0_89 = arith.constant 0 : index
    %229 = vector.load %arg11[%c0_87, %c0_88, %c0_89] : memref<2x32x64xf32, #tpu.memory_space<vmem>>, vector<1x32x64xf32>
    %230 = vector.shape_cast %229 : vector<1x32x64xf32> to vector<32x64xf32>
    %cst_90 = arith.constant dense<0.000000e+00> : vector<32x64xf32>
    %231 = tpu.matmul %10, %230, %cst_90 {dimension_numbers = #tpu.dot_dimension_numbers<[1], [0], [0], [1], [0, 0, 1, 1], [], []>} : vector<32x32xf32>, vector<32x64xf32>, vector<32x64xf32> -> vector<32x64xf32>
    %c0_91 = arith.constant 0 : index
    %c0_92 = arith.constant 0 : index
    %c0_93 = arith.constant 0 : index
    %232 = vector.load %arg12[%c0_91, %c0_92, %c0_93] : memref<2x1x64xf32, #tpu.memory_space<vmem>>, vector<1x1x64xf32>
    %233 = vector.shape_cast %232 : vector<1x1x64xf32> to vector<1x64xf32>
    %234 = vector.broadcast %233 : vector<1x64xf32> to vector<32x64xf32>
    %235 = arith.addf %231, %234 : vector<32x64xf32>
    %236 = vector.extract_strided_slice %235 {offsets = [0, 0], sizes = [32, 32], strides = [1, 1]} : vector<32x64xf32> to vector<32x32xf32>
    %237 = vector.extract_strided_slice %235 {offsets = [0, 32], sizes = [32, 32], strides = [1, 1]} : vector<32x64xf32> to vector<32x32xf32>
    %c0_94 = arith.constant 0 : index
    %c0_95 = arith.constant 0 : index
    %c0_96 = arith.constant 0 : index
    %238 = vector.load %arg13[%c0_94, %c0_95, %c0_96] : memref<2x32x32xf32, #tpu.memory_space<vmem>>, vector<1x32x32xf32>
    %239 = vector.shape_cast %238 : vector<1x32x32xf32> to vector<32x32xf32>
    %c0_97 = arith.constant 0 : index
    %c0_98 = arith.constant 0 : index
    %c0_99 = arith.constant 0 : index
    %240 = vector.load %arg14[%c0_97, %c0_98, %c0_99] : memref<2x1x32xf32, #tpu.memory_space<vmem>>, vector<1x1x32xf32>
    %241 = vector.shape_cast %240 : vector<1x1x32xf32> to vector<1x32xf32>
    %242 = vector.extract_strided_slice %228 {offsets = [0, 0], sizes = [8, 32], strides = [1, 1]} : vector<16x32xf32> to vector<8x32xf32>
    %243 = vector.extract_strided_slice %236 {offsets = [0, 0], sizes = [16, 32], strides = [1, 1]} : vector<32x32xf32> to vector<16x32xf32>
    %244 = vector.extract_strided_slice %237 {offsets = [0, 0], sizes = [16, 32], strides = [1, 1]} : vector<32x32xf32> to vector<16x32xf32>
    %245 = vector.extract_strided_slice %242 {offsets = [0, 0], sizes = [8, 8], strides = [1, 1]} : vector<8x32xf32> to vector<8x8xf32>
    %246 = vector.extract_strided_slice %243 {offsets = [0, 0], sizes = [16, 8], strides = [1, 1]} : vector<16x32xf32> to vector<16x8xf32>
    %247 = vector.extract_strided_slice %244 {offsets = [0, 0], sizes = [16, 8], strides = [1, 1]} : vector<16x32xf32> to vector<16x8xf32>
    %cst_100 = arith.constant dense<0.000000e+00> : vector<8x16xf32>
    %248 = tpu.matmul %245, %246, %cst_100 {dimension_numbers = #tpu.dot_dimension_numbers<[1], [1], [0], [0], [0, 0, 1, 0], [], []>} : vector<8x8xf32>, vector<16x8xf32>, vector<8x16xf32> -> vector<8x16xf32>
    %cst_101 = arith.constant dense<0xFF800000> : vector<8xf32>
    %249 = vector.multi_reduction <maximumf>, %248, %cst_101 [1] : vector<8x16xf32> to vector<8xf32>
    %250 = vector.shape_cast %249 : vector<8xf32> to vector<8x1xf32>
    %251 = vector.broadcast %250 : vector<8x1xf32> to vector<8x16xf32>
    %252 = arith.subf %248, %251 : vector<8x16xf32>
    %253 = math.exp %252 : vector<8x16xf32>
    %cst_102 = arith.constant dense<0.000000e+00> : vector<8xf32>
    %254 = vector.multi_reduction <add>, %253, %cst_102 [1] : vector<8x16xf32> to vector<8xf32>
    %255 = vector.shape_cast %254 : vector<8xf32> to vector<8x1xf32>
    %256 = tpu.reciprocal %255 {approx = true} : vector<8x1xf32> -> vector<8x1xf32>
    %257 = vector.broadcast %256 : vector<8x1xf32> to vector<8x16xf32>
    %258 = arith.mulf %253, %257 : vector<8x16xf32>
    %cst_103 = arith.constant dense<0.000000e+00> : vector<8x8xf32>
    %259 = tpu.matmul %258, %247, %cst_103 {dimension_numbers = #tpu.dot_dimension_numbers<[1], [0], [0], [1], [0, 0, 1, 1], [], []>} : vector<8x16xf32>, vector<16x8xf32>, vector<8x8xf32> -> vector<8x8xf32>
    %260 = vector.extract_strided_slice %239 {offsets = [0, 0], sizes = [8, 32], strides = [1, 1]} : vector<32x32xf32> to vector<8x32xf32>
    %cst_104 = arith.constant dense<0.000000e+00> : vector<8x32xf32>
    %261 = tpu.matmul %259, %260, %cst_104 {dimension_numbers = #tpu.dot_dimension_numbers<[1], [0], [0], [1], [0, 0, 1, 1], [], []>} : vector<8x8xf32>, vector<8x32xf32>, vector<8x32xf32> -> vector<8x32xf32>
    %262 = vector.extract_strided_slice %242 {offsets = [0, 8], sizes = [8, 8], strides = [1, 1]} : vector<8x32xf32> to vector<8x8xf32>
    %263 = vector.extract_strided_slice %243 {offsets = [0, 8], sizes = [16, 8], strides = [1, 1]} : vector<16x32xf32> to vector<16x8xf32>
    %264 = vector.extract_strided_slice %244 {offsets = [0, 8], sizes = [16, 8], strides = [1, 1]} : vector<16x32xf32> to vector<16x8xf32>
    %cst_105 = arith.constant dense<0.000000e+00> : vector<8x16xf32>
    %265 = tpu.matmul %262, %263, %cst_105 {dimension_numbers = #tpu.dot_dimension_numbers<[1], [1], [0], [0], [0, 0, 1, 0], [], []>} : vector<8x8xf32>, vector<16x8xf32>, vector<8x16xf32> -> vector<8x16xf32>
    %cst_106 = arith.constant dense<0xFF800000> : vector<8xf32>
    %266 = vector.multi_reduction <maximumf>, %265, %cst_106 [1] : vector<8x16xf32> to vector<8xf32>
    %267 = vector.shape_cast %266 : vector<8xf32> to vector<8x1xf32>
    %268 = vector.broadcast %267 : vector<8x1xf32> to vector<8x16xf32>
    %269 = arith.subf %265, %268 : vector<8x16xf32>
    %270 = math.exp %269 : vector<8x16xf32>
    %cst_107 = arith.constant dense<0.000000e+00> : vector<8xf32>
    %271 = vector.multi_reduction <add>, %270, %cst_107 [1] : vector<8x16xf32> to vector<8xf32>
    %272 = vector.shape_cast %271 : vector<8xf32> to vector<8x1xf32>
    %273 = tpu.reciprocal %272 {approx = true} : vector<8x1xf32> -> vector<8x1xf32>
    %274 = vector.broadcast %273 : vector<8x1xf32> to vector<8x16xf32>
    %275 = arith.mulf %270, %274 : vector<8x16xf32>
    %cst_108 = arith.constant dense<0.000000e+00> : vector<8x8xf32>
    %276 = tpu.matmul %275, %264, %cst_108 {dimension_numbers = #tpu.dot_dimension_numbers<[1], [0], [0], [1], [0, 0, 1, 1], [], []>} : vector<8x16xf32>, vector<16x8xf32>, vector<8x8xf32> -> vector<8x8xf32>
    %277 = vector.extract_strided_slice %239 {offsets = [8, 0], sizes = [8, 32], strides = [1, 1]} : vector<32x32xf32> to vector<8x32xf32>
    %cst_109 = arith.constant dense<0.000000e+00> : vector<8x32xf32>
    %278 = tpu.matmul %276, %277, %cst_109 {dimension_numbers = #tpu.dot_dimension_numbers<[1], [0], [0], [1], [0, 0, 1, 1], [], []>} : vector<8x8xf32>, vector<8x32xf32>, vector<8x32xf32> -> vector<8x32xf32>
    %279 = arith.addf %261, %278 : vector<8x32xf32>
    %280 = vector.extract_strided_slice %242 {offsets = [0, 16], sizes = [8, 8], strides = [1, 1]} : vector<8x32xf32> to vector<8x8xf32>
    %281 = vector.extract_strided_slice %243 {offsets = [0, 16], sizes = [16, 8], strides = [1, 1]} : vector<16x32xf32> to vector<16x8xf32>
    %282 = vector.extract_strided_slice %244 {offsets = [0, 16], sizes = [16, 8], strides = [1, 1]} : vector<16x32xf32> to vector<16x8xf32>
    %cst_110 = arith.constant dense<0.000000e+00> : vector<8x16xf32>
    %283 = tpu.matmul %280, %281, %cst_110 {dimension_numbers = #tpu.dot_dimension_numbers<[1], [1], [0], [0], [0, 0, 1, 0], [], []>} : vector<8x8xf32>, vector<16x8xf32>, vector<8x16xf32> -> vector<8x16xf32>
    %cst_111 = arith.constant dense<0xFF800000> : vector<8xf32>
    %284 = vector.multi_reduction <maximumf>, %283, %cst_111 [1] : vector<8x16xf32> to vector<8xf32>
    %285 = vector.shape_cast %284 : vector<8xf32> to vector<8x1xf32>
    %286 = vector.broadcast %285 : vector<8x1xf32> to vector<8x16xf32>
    %287 = arith.subf %283, %286 : vector<8x16xf32>
    %288 = math.exp %287 : vector<8x16xf32>
    %cst_112 = arith.constant dense<0.000000e+00> : vector<8xf32>
    %289 = vector.multi_reduction <add>, %288, %cst_112 [1] : vector<8x16xf32> to vector<8xf32>
    %290 = vector.shape_cast %289 : vector<8xf32> to vector<8x1xf32>
    %291 = tpu.reciprocal %290 {approx = true} : vector<8x1xf32> -> vector<8x1xf32>
    %292 = vector.broadcast %291 : vector<8x1xf32> to vector<8x16xf32>
    %293 = arith.mulf %288, %292 : vector<8x16xf32>
    %cst_113 = arith.constant dense<0.000000e+00> : vector<8x8xf32>
    %294 = tpu.matmul %293, %282, %cst_113 {dimension_numbers = #tpu.dot_dimension_numbers<[1], [0], [0], [1], [0, 0, 1, 1], [], []>} : vector<8x16xf32>, vector<16x8xf32>, vector<8x8xf32> -> vector<8x8xf32>
    %295 = vector.extract_strided_slice %239 {offsets = [16, 0], sizes = [8, 32], strides = [1, 1]} : vector<32x32xf32> to vector<8x32xf32>
    %cst_114 = arith.constant dense<0.000000e+00> : vector<8x32xf32>
    %296 = tpu.matmul %294, %295, %cst_114 {dimension_numbers = #tpu.dot_dimension_numbers<[1], [0], [0], [1], [0, 0, 1, 1], [], []>} : vector<8x8xf32>, vector<8x32xf32>, vector<8x32xf32> -> vector<8x32xf32>
    %297 = arith.addf %279, %296 : vector<8x32xf32>
    %298 = vector.extract_strided_slice %242 {offsets = [0, 24], sizes = [8, 8], strides = [1, 1]} : vector<8x32xf32> to vector<8x8xf32>
    %299 = vector.extract_strided_slice %243 {offsets = [0, 24], sizes = [16, 8], strides = [1, 1]} : vector<16x32xf32> to vector<16x8xf32>
    %300 = vector.extract_strided_slice %244 {offsets = [0, 24], sizes = [16, 8], strides = [1, 1]} : vector<16x32xf32> to vector<16x8xf32>
    %cst_115 = arith.constant dense<0.000000e+00> : vector<8x16xf32>
    %301 = tpu.matmul %298, %299, %cst_115 {dimension_numbers = #tpu.dot_dimension_numbers<[1], [1], [0], [0], [0, 0, 1, 0], [], []>} : vector<8x8xf32>, vector<16x8xf32>, vector<8x16xf32> -> vector<8x16xf32>
    %cst_116 = arith.constant dense<0xFF800000> : vector<8xf32>
    %302 = vector.multi_reduction <maximumf>, %301, %cst_116 [1] : vector<8x16xf32> to vector<8xf32>
    %303 = vector.shape_cast %302 : vector<8xf32> to vector<8x1xf32>
    %304 = vector.broadcast %303 : vector<8x1xf32> to vector<8x16xf32>
    %305 = arith.subf %301, %304 : vector<8x16xf32>
    %306 = math.exp %305 : vector<8x16xf32>
    %cst_117 = arith.constant dense<0.000000e+00> : vector<8xf32>
    %307 = vector.multi_reduction <add>, %306, %cst_117 [1] : vector<8x16xf32> to vector<8xf32>
    %308 = vector.shape_cast %307 : vector<8xf32> to vector<8x1xf32>
    %309 = tpu.reciprocal %308 {approx = true} : vector<8x1xf32> -> vector<8x1xf32>
    %310 = vector.broadcast %309 : vector<8x1xf32> to vector<8x16xf32>
    %311 = arith.mulf %306, %310 : vector<8x16xf32>
    %cst_118 = arith.constant dense<0.000000e+00> : vector<8x8xf32>
    %312 = tpu.matmul %311, %300, %cst_118 {dimension_numbers = #tpu.dot_dimension_numbers<[1], [0], [0], [1], [0, 0, 1, 1], [], []>} : vector<8x16xf32>, vector<16x8xf32>, vector<8x8xf32> -> vector<8x8xf32>
    %313 = vector.extract_strided_slice %239 {offsets = [24, 0], sizes = [8, 32], strides = [1, 1]} : vector<32x32xf32> to vector<8x32xf32>
    %cst_119 = arith.constant dense<0.000000e+00> : vector<8x32xf32>
    %314 = tpu.matmul %312, %313, %cst_119 {dimension_numbers = #tpu.dot_dimension_numbers<[1], [0], [0], [1], [0, 0, 1, 1], [], []>} : vector<8x8xf32>, vector<8x32xf32>, vector<8x32xf32> -> vector<8x32xf32>
    %315 = arith.addf %297, %314 : vector<8x32xf32>
    %316 = vector.extract_strided_slice %228 {offsets = [8, 0], sizes = [8, 32], strides = [1, 1]} : vector<16x32xf32> to vector<8x32xf32>
    %317 = vector.extract_strided_slice %236 {offsets = [16, 0], sizes = [16, 32], strides = [1, 1]} : vector<32x32xf32> to vector<16x32xf32>
    %318 = vector.extract_strided_slice %237 {offsets = [16, 0], sizes = [16, 32], strides = [1, 1]} : vector<32x32xf32> to vector<16x32xf32>
    %319 = vector.extract_strided_slice %316 {offsets = [0, 0], sizes = [8, 8], strides = [1, 1]} : vector<8x32xf32> to vector<8x8xf32>
    %320 = vector.extract_strided_slice %317 {offsets = [0, 0], sizes = [16, 8], strides = [1, 1]} : vector<16x32xf32> to vector<16x8xf32>
    %321 = vector.extract_strided_slice %318 {offsets = [0, 0], sizes = [16, 8], strides = [1, 1]} : vector<16x32xf32> to vector<16x8xf32>
    %cst_120 = arith.constant dense<0.000000e+00> : vector<8x16xf32>
    %322 = tpu.matmul %319, %320, %cst_120 {dimension_numbers = #tpu.dot_dimension_numbers<[1], [1], [0], [0], [0, 0, 1, 0], [], []>} : vector<8x8xf32>, vector<16x8xf32>, vector<8x16xf32> -> vector<8x16xf32>
    %cst_121 = arith.constant dense<0xFF800000> : vector<8xf32>
    %323 = vector.multi_reduction <maximumf>, %322, %cst_121 [1] : vector<8x16xf32> to vector<8xf32>
    %324 = vector.shape_cast %323 : vector<8xf32> to vector<8x1xf32>
    %325 = vector.broadcast %324 : vector<8x1xf32> to vector<8x16xf32>
    %326 = arith.subf %322, %325 : vector<8x16xf32>
    %327 = math.exp %326 : vector<8x16xf32>
    %cst_122 = arith.constant dense<0.000000e+00> : vector<8xf32>
    %328 = vector.multi_reduction <add>, %327, %cst_122 [1] : vector<8x16xf32> to vector<8xf32>
    %329 = vector.shape_cast %328 : vector<8xf32> to vector<8x1xf32>
    %330 = tpu.reciprocal %329 {approx = true} : vector<8x1xf32> -> vector<8x1xf32>
    %331 = vector.broadcast %330 : vector<8x1xf32> to vector<8x16xf32>
    %332 = arith.mulf %327, %331 : vector<8x16xf32>
    %cst_123 = arith.constant dense<0.000000e+00> : vector<8x8xf32>
    %333 = tpu.matmul %332, %321, %cst_123 {dimension_numbers = #tpu.dot_dimension_numbers<[1], [0], [0], [1], [0, 0, 1, 1], [], []>} : vector<8x16xf32>, vector<16x8xf32>, vector<8x8xf32> -> vector<8x8xf32>
    %334 = vector.extract_strided_slice %239 {offsets = [0, 0], sizes = [8, 32], strides = [1, 1]} : vector<32x32xf32> to vector<8x32xf32>
    %cst_124 = arith.constant dense<0.000000e+00> : vector<8x32xf32>
    %335 = tpu.matmul %333, %334, %cst_124 {dimension_numbers = #tpu.dot_dimension_numbers<[1], [0], [0], [1], [0, 0, 1, 1], [], []>} : vector<8x8xf32>, vector<8x32xf32>, vector<8x32xf32> -> vector<8x32xf32>
    %336 = vector.extract_strided_slice %316 {offsets = [0, 8], sizes = [8, 8], strides = [1, 1]} : vector<8x32xf32> to vector<8x8xf32>
    %337 = vector.extract_strided_slice %317 {offsets = [0, 8], sizes = [16, 8], strides = [1, 1]} : vector<16x32xf32> to vector<16x8xf32>
    %338 = vector.extract_strided_slice %318 {offsets = [0, 8], sizes = [16, 8], strides = [1, 1]} : vector<16x32xf32> to vector<16x8xf32>
    %cst_125 = arith.constant dense<0.000000e+00> : vector<8x16xf32>
    %339 = tpu.matmul %336, %337, %cst_125 {dimension_numbers = #tpu.dot_dimension_numbers<[1], [1], [0], [0], [0, 0, 1, 0], [], []>} : vector<8x8xf32>, vector<16x8xf32>, vector<8x16xf32> -> vector<8x16xf32>
    %cst_126 = arith.constant dense<0xFF800000> : vector<8xf32>
    %340 = vector.multi_reduction <maximumf>, %339, %cst_126 [1] : vector<8x16xf32> to vector<8xf32>
    %341 = vector.shape_cast %340 : vector<8xf32> to vector<8x1xf32>
    %342 = vector.broadcast %341 : vector<8x1xf32> to vector<8x16xf32>
    %343 = arith.subf %339, %342 : vector<8x16xf32>
    %344 = math.exp %343 : vector<8x16xf32>
    %cst_127 = arith.constant dense<0.000000e+00> : vector<8xf32>
    %345 = vector.multi_reduction <add>, %344, %cst_127 [1] : vector<8x16xf32> to vector<8xf32>
    %346 = vector.shape_cast %345 : vector<8xf32> to vector<8x1xf32>
    %347 = tpu.reciprocal %346 {approx = true} : vector<8x1xf32> -> vector<8x1xf32>
    %348 = vector.broadcast %347 : vector<8x1xf32> to vector<8x16xf32>
    %349 = arith.mulf %344, %348 : vector<8x16xf32>
    %cst_128 = arith.constant dense<0.000000e+00> : vector<8x8xf32>
    %350 = tpu.matmul %349, %338, %cst_128 {dimension_numbers = #tpu.dot_dimension_numbers<[1], [0], [0], [1], [0, 0, 1, 1], [], []>} : vector<8x16xf32>, vector<16x8xf32>, vector<8x8xf32> -> vector<8x8xf32>
    %351 = vector.extract_strided_slice %239 {offsets = [8, 0], sizes = [8, 32], strides = [1, 1]} : vector<32x32xf32> to vector<8x32xf32>
    %cst_129 = arith.constant dense<0.000000e+00> : vector<8x32xf32>
    %352 = tpu.matmul %350, %351, %cst_129 {dimension_numbers = #tpu.dot_dimension_numbers<[1], [0], [0], [1], [0, 0, 1, 1], [], []>} : vector<8x8xf32>, vector<8x32xf32>, vector<8x32xf32> -> vector<8x32xf32>
    %353 = arith.addf %335, %352 : vector<8x32xf32>
    %354 = vector.extract_strided_slice %316 {offsets = [0, 16], sizes = [8, 8], strides = [1, 1]} : vector<8x32xf32> to vector<8x8xf32>
    %355 = vector.extract_strided_slice %317 {offsets = [0, 16], sizes = [16, 8], strides = [1, 1]} : vector<16x32xf32> to vector<16x8xf32>
    %356 = vector.extract_strided_slice %318 {offsets = [0, 16], sizes = [16, 8], strides = [1, 1]} : vector<16x32xf32> to vector<16x8xf32>
    %cst_130 = arith.constant dense<0.000000e+00> : vector<8x16xf32>
    %357 = tpu.matmul %354, %355, %cst_130 {dimension_numbers = #tpu.dot_dimension_numbers<[1], [1], [0], [0], [0, 0, 1, 0], [], []>} : vector<8x8xf32>, vector<16x8xf32>, vector<8x16xf32> -> vector<8x16xf32>
    %cst_131 = arith.constant dense<0xFF800000> : vector<8xf32>
    %358 = vector.multi_reduction <maximumf>, %357, %cst_131 [1] : vector<8x16xf32> to vector<8xf32>
    %359 = vector.shape_cast %358 : vector<8xf32> to vector<8x1xf32>
    %360 = vector.broadcast %359 : vector<8x1xf32> to vector<8x16xf32>
    %361 = arith.subf %357, %360 : vector<8x16xf32>
    %362 = math.exp %361 : vector<8x16xf32>
    %cst_132 = arith.constant dense<0.000000e+00> : vector<8xf32>
    %363 = vector.multi_reduction <add>, %362, %cst_132 [1] : vector<8x16xf32> to vector<8xf32>
    %364 = vector.shape_cast %363 : vector<8xf32> to vector<8x1xf32>
    %365 = tpu.reciprocal %364 {approx = true} : vector<8x1xf32> -> vector<8x1xf32>
    %366 = vector.broadcast %365 : vector<8x1xf32> to vector<8x16xf32>
    %367 = arith.mulf %362, %366 : vector<8x16xf32>
    %cst_133 = arith.constant dense<0.000000e+00> : vector<8x8xf32>
    %368 = tpu.matmul %367, %356, %cst_133 {dimension_numbers = #tpu.dot_dimension_numbers<[1], [0], [0], [1], [0, 0, 1, 1], [], []>} : vector<8x16xf32>, vector<16x8xf32>, vector<8x8xf32> -> vector<8x8xf32>
    %369 = vector.extract_strided_slice %239 {offsets = [16, 0], sizes = [8, 32], strides = [1, 1]} : vector<32x32xf32> to vector<8x32xf32>
    %cst_134 = arith.constant dense<0.000000e+00> : vector<8x32xf32>
    %370 = tpu.matmul %368, %369, %cst_134 {dimension_numbers = #tpu.dot_dimension_numbers<[1], [0], [0], [1], [0, 0, 1, 1], [], []>} : vector<8x8xf32>, vector<8x32xf32>, vector<8x32xf32> -> vector<8x32xf32>
    %371 = arith.addf %353, %370 : vector<8x32xf32>
    %372 = vector.extract_strided_slice %316 {offsets = [0, 24], sizes = [8, 8], strides = [1, 1]} : vector<8x32xf32> to vector<8x8xf32>
    %373 = vector.extract_strided_slice %317 {offsets = [0, 24], sizes = [16, 8], strides = [1, 1]} : vector<16x32xf32> to vector<16x8xf32>
    %374 = vector.extract_strided_slice %318 {offsets = [0, 24], sizes = [16, 8], strides = [1, 1]} : vector<16x32xf32> to vector<16x8xf32>
    %cst_135 = arith.constant dense<0.000000e+00> : vector<8x16xf32>
    %375 = tpu.matmul %372, %373, %cst_135 {dimension_numbers = #tpu.dot_dimension_numbers<[1], [1], [0], [0], [0, 0, 1, 0], [], []>} : vector<8x8xf32>, vector<16x8xf32>, vector<8x16xf32> -> vector<8x16xf32>
    %cst_136 = arith.constant dense<0xFF800000> : vector<8xf32>
    %376 = vector.multi_reduction <maximumf>, %375, %cst_136 [1] : vector<8x16xf32> to vector<8xf32>
    %377 = vector.shape_cast %376 : vector<8xf32> to vector<8x1xf32>
    %378 = vector.broadcast %377 : vector<8x1xf32> to vector<8x16xf32>
    %379 = arith.subf %375, %378 : vector<8x16xf32>
    %380 = math.exp %379 : vector<8x16xf32>
    %cst_137 = arith.constant dense<0.000000e+00> : vector<8xf32>
    %381 = vector.multi_reduction <add>, %380, %cst_137 [1] : vector<8x16xf32> to vector<8xf32>
    %382 = vector.shape_cast %381 : vector<8xf32> to vector<8x1xf32>
    %383 = tpu.reciprocal %382 {approx = true} : vector<8x1xf32> -> vector<8x1xf32>
    %384 = vector.broadcast %383 : vector<8x1xf32> to vector<8x16xf32>
    %385 = arith.mulf %380, %384 : vector<8x16xf32>
    %cst_138 = arith.constant dense<0.000000e+00> : vector<8x8xf32>
    %386 = tpu.matmul %385, %374, %cst_138 {dimension_numbers = #tpu.dot_dimension_numbers<[1], [0], [0], [1], [0, 0, 1, 1], [], []>} : vector<8x16xf32>, vector<16x8xf32>, vector<8x8xf32> -> vector<8x8xf32>
    %387 = vector.extract_strided_slice %239 {offsets = [24, 0], sizes = [8, 32], strides = [1, 1]} : vector<32x32xf32> to vector<8x32xf32>
    %cst_139 = arith.constant dense<0.000000e+00> : vector<8x32xf32>
    %388 = tpu.matmul %386, %387, %cst_139 {dimension_numbers = #tpu.dot_dimension_numbers<[1], [0], [0], [1], [0, 0, 1, 1], [], []>} : vector<8x8xf32>, vector<8x32xf32>, vector<8x32xf32> -> vector<8x32xf32>
    %389 = arith.addf %371, %388 : vector<8x32xf32>
    %390 = tpu.concatenate %315, %389 in 0 : vector<8x32xf32>, vector<8x32xf32> -> vector<16x32xf32>
    %391 = vector.broadcast %241 : vector<1x32xf32> to vector<16x32xf32>
    %392 = arith.addf %390, %391 : vector<16x32xf32>
    %393 = arith.addf %392, %221 : vector<16x32xf32>
    %c1 = arith.constant 1 : index
    %c0_140 = arith.constant 0 : index
    %c0_141 = arith.constant 0 : index
    %394 = vector.load %arg15[%c1, %c0_140, %c0_141] : memref<6x1x32xf32, #tpu.memory_space<vmem>>, vector<1x1x32xf32>
    %395 = vector.shape_cast %394 : vector<1x1x32xf32> to vector<1x32xf32>
    %c1_142 = arith.constant 1 : index
    %c0_143 = arith.constant 0 : index
    %c0_144 = arith.constant 0 : index
    %396 = vector.load %arg16[%c1_142, %c0_143, %c0_144] : memref<6x1x32xf32, #tpu.memory_space<vmem>>, vector<1x1x32xf32>
    %397 = vector.shape_cast %396 : vector<1x1x32xf32> to vector<1x32xf32>
    %cst_145 = arith.constant dense<0.000000e+00> : vector<16xf32>
    %398 = vector.multi_reduction <add>, %393, %cst_145 [1] : vector<16x32xf32> to vector<16xf32>
    %399 = vector.shape_cast %398 : vector<16xf32> to vector<16x1xf32>
    %cst_146 = arith.constant 3.200000e+01 : f32
    %400 = vector.broadcast %cst_146 : f32 to vector<16x1xf32>
    %401 = arith.divf %399, %400 : vector<16x1xf32>
    %402 = vector.broadcast %401 : vector<16x1xf32> to vector<16x32xf32>
    %403 = arith.subf %393, %402 : vector<16x32xf32>
    %404 = arith.mulf %403, %403 : vector<16x32xf32>
    %cst_147 = arith.constant dense<0.000000e+00> : vector<16xf32>
    %405 = vector.multi_reduction <add>, %404, %cst_147 [1] : vector<16x32xf32> to vector<16xf32>
    %406 = vector.shape_cast %405 : vector<16xf32> to vector<16x1xf32>
    %cst_148 = arith.constant 3.200000e+01 : f32
    %407 = vector.broadcast %cst_148 : f32 to vector<16x1xf32>
    %408 = arith.divf %406, %407 : vector<16x1xf32>
    %409 = vector.broadcast %401 : vector<16x1xf32> to vector<16x32xf32>
    %410 = arith.subf %393, %409 : vector<16x32xf32>
    %cst_149 = arith.constant 9.99999974E-6 : f32
    %411 = vector.broadcast %cst_149 : f32 to vector<16x1xf32>
    %412 = arith.addf %408, %411 : vector<16x1xf32>
    %413 = math.rsqrt %412 : vector<16x1xf32>
    %414 = vector.broadcast %413 : vector<16x1xf32> to vector<16x32xf32>
    %415 = arith.mulf %410, %414 : vector<16x32xf32>
    %416 = vector.broadcast %395 : vector<1x32xf32> to vector<16x32xf32>
    %417 = arith.mulf %415, %416 : vector<16x32xf32>
    %418 = vector.broadcast %397 : vector<1x32xf32> to vector<16x32xf32>
    %419 = arith.addf %417, %418 : vector<16x32xf32>
    %c0_150 = arith.constant 0 : index
    %c0_151 = arith.constant 0 : index
    %c0_152 = arith.constant 0 : index
    %420 = vector.load %arg17[%c0_150, %c0_151, %c0_152] : memref<2x32x64xf32, #tpu.memory_space<vmem>>, vector<1x32x64xf32>
    %421 = vector.shape_cast %420 : vector<1x32x64xf32> to vector<32x64xf32>
    %cst_153 = arith.constant dense<0.000000e+00> : vector<16x64xf32>
    %422 = tpu.matmul %419, %421, %cst_153 {dimension_numbers = #tpu.dot_dimension_numbers<[1], [0], [0], [1], [0, 0, 1, 1], [], []>} : vector<16x32xf32>, vector<32x64xf32>, vector<16x64xf32> -> vector<16x64xf32>
    %c0_154 = arith.constant 0 : index
    %c0_155 = arith.constant 0 : index
    %c0_156 = arith.constant 0 : index
    %423 = vector.load %arg18[%c0_154, %c0_155, %c0_156] : memref<2x1x64xf32, #tpu.memory_space<vmem>>, vector<1x1x64xf32>
    %424 = vector.shape_cast %423 : vector<1x1x64xf32> to vector<1x64xf32>
    %425 = vector.broadcast %424 : vector<1x64xf32> to vector<16x64xf32>
    %426 = arith.addf %422, %425 : vector<16x64xf32>
    %cst_157 = arith.constant 0.000000e+00 : f32
    %427 = vector.broadcast %cst_157 : f32 to vector<16x64xf32>
    %428 = arith.cmpf oge, %426, %427 : vector<16x64xf32>
    %cst_158 = arith.constant 5.000000e-02 : f32
    %429 = vector.broadcast %cst_158 : f32 to vector<16x64xf32>
    %430 = arith.mulf %429, %426 : vector<16x64xf32>
    %431 = arith.select %428, %426, %430 : vector<16x64xi1>, vector<16x64xf32>
    %c0_159 = arith.constant 0 : index
    %c0_160 = arith.constant 0 : index
    %c0_161 = arith.constant 0 : index
    %432 = vector.load %arg19[%c0_159, %c0_160, %c0_161] : memref<2x64x32xf32, #tpu.memory_space<vmem>>, vector<1x64x32xf32>
    %433 = vector.shape_cast %432 : vector<1x64x32xf32> to vector<64x32xf32>
    %cst_162 = arith.constant dense<0.000000e+00> : vector<16x32xf32>
    %434 = tpu.matmul %431, %433, %cst_162 {dimension_numbers = #tpu.dot_dimension_numbers<[1], [0], [0], [1], [0, 0, 1, 1], [], []>} : vector<16x64xf32>, vector<64x32xf32>, vector<16x32xf32> -> vector<16x32xf32>
    %c0_163 = arith.constant 0 : index
    %c0_164 = arith.constant 0 : index
    %c0_165 = arith.constant 0 : index
    %435 = vector.load %arg20[%c0_163, %c0_164, %c0_165] : memref<2x1x32xf32, #tpu.memory_space<vmem>>, vector<1x1x32xf32>
    %436 = vector.shape_cast %435 : vector<1x1x32xf32> to vector<1x32xf32>
    %437 = vector.broadcast %436 : vector<1x32xf32> to vector<16x32xf32>
    %438 = arith.addf %434, %437 : vector<16x32xf32>
    %439 = arith.addf %438, %419 : vector<16x32xf32>
    %c2 = arith.constant 2 : index
    %c0_166 = arith.constant 0 : index
    %c0_167 = arith.constant 0 : index
    %440 = vector.load %arg15[%c2, %c0_166, %c0_167] : memref<6x1x32xf32, #tpu.memory_space<vmem>>, vector<1x1x32xf32>
    %441 = vector.shape_cast %440 : vector<1x1x32xf32> to vector<1x32xf32>
    %c2_168 = arith.constant 2 : index
    %c0_169 = arith.constant 0 : index
    %c0_170 = arith.constant 0 : index
    %442 = vector.load %arg16[%c2_168, %c0_169, %c0_170] : memref<6x1x32xf32, #tpu.memory_space<vmem>>, vector<1x1x32xf32>
    %443 = vector.shape_cast %442 : vector<1x1x32xf32> to vector<1x32xf32>
    %cst_171 = arith.constant dense<0.000000e+00> : vector<16xf32>
    %444 = vector.multi_reduction <add>, %439, %cst_171 [1] : vector<16x32xf32> to vector<16xf32>
    %445 = vector.shape_cast %444 : vector<16xf32> to vector<16x1xf32>
    %cst_172 = arith.constant 3.200000e+01 : f32
    %446 = vector.broadcast %cst_172 : f32 to vector<16x1xf32>
    %447 = arith.divf %445, %446 : vector<16x1xf32>
    %448 = vector.broadcast %447 : vector<16x1xf32> to vector<16x32xf32>
    %449 = arith.subf %439, %448 : vector<16x32xf32>
    %450 = arith.mulf %449, %449 : vector<16x32xf32>
    %cst_173 = arith.constant dense<0.000000e+00> : vector<16xf32>
    %451 = vector.multi_reduction <add>, %450, %cst_173 [1] : vector<16x32xf32> to vector<16xf32>
    %452 = vector.shape_cast %451 : vector<16xf32> to vector<16x1xf32>
    %cst_174 = arith.constant 3.200000e+01 : f32
    %453 = vector.broadcast %cst_174 : f32 to vector<16x1xf32>
    %454 = arith.divf %452, %453 : vector<16x1xf32>
    %455 = vector.broadcast %447 : vector<16x1xf32> to vector<16x32xf32>
    %456 = arith.subf %439, %455 : vector<16x32xf32>
    %cst_175 = arith.constant 9.99999974E-6 : f32
    %457 = vector.broadcast %cst_175 : f32 to vector<16x1xf32>
    %458 = arith.addf %454, %457 : vector<16x1xf32>
    %459 = math.rsqrt %458 : vector<16x1xf32>
    %460 = vector.broadcast %459 : vector<16x1xf32> to vector<16x32xf32>
    %461 = arith.mulf %456, %460 : vector<16x32xf32>
    %462 = vector.broadcast %441 : vector<1x32xf32> to vector<16x32xf32>
    %463 = arith.mulf %461, %462 : vector<16x32xf32>
    %464 = vector.broadcast %443 : vector<1x32xf32> to vector<16x32xf32>
    %465 = arith.addf %463, %464 : vector<16x32xf32>
    %c1_176 = arith.constant 1 : index
    %c0_177 = arith.constant 0 : index
    %c0_178 = arith.constant 0 : index
    %466 = vector.load %arg5[%c1_176, %c0_177, %c0_178] : memref<2x32x96xf32, #tpu.memory_space<vmem>>, vector<1x32x96xf32>
    %467 = vector.shape_cast %466 : vector<1x32x96xf32> to vector<32x96xf32>
    %cst_179 = arith.constant dense<0.000000e+00> : vector<16x96xf32>
    %468 = tpu.matmul %465, %467, %cst_179 {dimension_numbers = #tpu.dot_dimension_numbers<[1], [0], [0], [1], [0, 0, 1, 1], [], []>} : vector<16x32xf32>, vector<32x96xf32>, vector<16x96xf32> -> vector<16x96xf32>
    %c1_180 = arith.constant 1 : index
    %c0_181 = arith.constant 0 : index
    %c0_182 = arith.constant 0 : index
    %469 = vector.load %arg6[%c1_180, %c0_181, %c0_182] : memref<2x1x96xf32, #tpu.memory_space<vmem>>, vector<1x1x96xf32>
    %470 = vector.shape_cast %469 : vector<1x1x96xf32> to vector<1x96xf32>
    %471 = vector.broadcast %470 : vector<1x96xf32> to vector<16x96xf32>
    %472 = arith.addf %468, %471 : vector<16x96xf32>
    %473 = vector.extract_strided_slice %472 {offsets = [0, 0], sizes = [16, 32], strides = [1, 1]} : vector<16x96xf32> to vector<16x32xf32>
    %474 = vector.extract_strided_slice %472 {offsets = [0, 32], sizes = [16, 32], strides = [1, 1]} : vector<16x96xf32> to vector<16x32xf32>
    %475 = vector.extract_strided_slice %472 {offsets = [0, 64], sizes = [16, 32], strides = [1, 1]} : vector<16x96xf32> to vector<16x32xf32>
    %c1_183 = arith.constant 1 : index
    %c0_184 = arith.constant 0 : index
    %c0_185 = arith.constant 0 : index
    %476 = vector.load %arg7[%c1_183, %c0_184, %c0_185] : memref<2x32x32xf32, #tpu.memory_space<vmem>>, vector<1x32x32xf32>
    %477 = vector.shape_cast %476 : vector<1x32x32xf32> to vector<32x32xf32>
    %c1_186 = arith.constant 1 : index
    %c0_187 = arith.constant 0 : index
    %c0_188 = arith.constant 0 : index
    %478 = vector.load %arg8[%c1_186, %c0_187, %c0_188] : memref<2x1x32xf32, #tpu.memory_space<vmem>>, vector<1x1x32xf32>
    %479 = vector.shape_cast %478 : vector<1x1x32xf32> to vector<1x32xf32>
    %480 = vector.extract_strided_slice %473 {offsets = [0, 0], sizes = [8, 32], strides = [1, 1]} : vector<16x32xf32> to vector<8x32xf32>
    %481 = vector.extract_strided_slice %474 {offsets = [0, 0], sizes = [8, 32], strides = [1, 1]} : vector<16x32xf32> to vector<8x32xf32>
    %482 = vector.extract_strided_slice %475 {offsets = [0, 0], sizes = [8, 32], strides = [1, 1]} : vector<16x32xf32> to vector<8x32xf32>
    %483 = vector.extract_strided_slice %480 {offsets = [0, 0], sizes = [8, 8], strides = [1, 1]} : vector<8x32xf32> to vector<8x8xf32>
    %484 = vector.extract_strided_slice %481 {offsets = [0, 0], sizes = [8, 8], strides = [1, 1]} : vector<8x32xf32> to vector<8x8xf32>
    %485 = vector.extract_strided_slice %482 {offsets = [0, 0], sizes = [8, 8], strides = [1, 1]} : vector<8x32xf32> to vector<8x8xf32>
    %cst_189 = arith.constant dense<0.000000e+00> : vector<8x8xf32>
    %486 = tpu.matmul %483, %484, %cst_189 {dimension_numbers = #tpu.dot_dimension_numbers<[1], [1], [0], [0], [0, 0, 1, 0], [], []>} : vector<8x8xf32>, vector<8x8xf32>, vector<8x8xf32> -> vector<8x8xf32>
    %cst_190 = arith.constant -1.000000e+20 : f32
    %487 = vector.broadcast %cst_190 : f32 to vector<8x8xf32>
    %488 = arith.select %13, %486, %487 : vector<8x8xi1>, vector<8x8xf32>
    %cst_191 = arith.constant dense<0xFF800000> : vector<8xf32>
    %489 = vector.multi_reduction <maximumf>, %488, %cst_191 [1] : vector<8x8xf32> to vector<8xf32>
    %490 = vector.shape_cast %489 : vector<8xf32> to vector<8x1xf32>
    %491 = vector.broadcast %490 : vector<8x1xf32> to vector<8x8xf32>
    %492 = arith.subf %488, %491 : vector<8x8xf32>
    %493 = math.exp %492 : vector<8x8xf32>
    %cst_192 = arith.constant dense<0.000000e+00> : vector<8xf32>
    %494 = vector.multi_reduction <add>, %493, %cst_192 [1] : vector<8x8xf32> to vector<8xf32>
    %495 = vector.shape_cast %494 : vector<8xf32> to vector<8x1xf32>
    %496 = tpu.reciprocal %495 {approx = true} : vector<8x1xf32> -> vector<8x1xf32>
    %497 = vector.broadcast %496 : vector<8x1xf32> to vector<8x8xf32>
    %498 = arith.mulf %493, %497 : vector<8x8xf32>
    %cst_193 = arith.constant dense<0.000000e+00> : vector<8x8xf32>
    %499 = tpu.matmul %498, %485, %cst_193 {dimension_numbers = #tpu.dot_dimension_numbers<[1], [0], [0], [1], [0, 0, 1, 1], [], []>} : vector<8x8xf32>, vector<8x8xf32>, vector<8x8xf32> -> vector<8x8xf32>
    %500 = vector.extract_strided_slice %477 {offsets = [0, 0], sizes = [8, 32], strides = [1, 1]} : vector<32x32xf32> to vector<8x32xf32>
    %cst_194 = arith.constant dense<0.000000e+00> : vector<8x32xf32>
    %501 = tpu.matmul %499, %500, %cst_194 {dimension_numbers = #tpu.dot_dimension_numbers<[1], [0], [0], [1], [0, 0, 1, 1], [], []>} : vector<8x8xf32>, vector<8x32xf32>, vector<8x32xf32> -> vector<8x32xf32>
    %502 = vector.extract_strided_slice %480 {offsets = [0, 8], sizes = [8, 8], strides = [1, 1]} : vector<8x32xf32> to vector<8x8xf32>
    %503 = vector.extract_strided_slice %481 {offsets = [0, 8], sizes = [8, 8], strides = [1, 1]} : vector<8x32xf32> to vector<8x8xf32>
    %504 = vector.extract_strided_slice %482 {offsets = [0, 8], sizes = [8, 8], strides = [1, 1]} : vector<8x32xf32> to vector<8x8xf32>
    %cst_195 = arith.constant dense<0.000000e+00> : vector<8x8xf32>
    %505 = tpu.matmul %502, %503, %cst_195 {dimension_numbers = #tpu.dot_dimension_numbers<[1], [1], [0], [0], [0, 0, 1, 0], [], []>} : vector<8x8xf32>, vector<8x8xf32>, vector<8x8xf32> -> vector<8x8xf32>
    %cst_196 = arith.constant -1.000000e+20 : f32
    %506 = vector.broadcast %cst_196 : f32 to vector<8x8xf32>
    %507 = arith.select %13, %505, %506 : vector<8x8xi1>, vector<8x8xf32>
    %cst_197 = arith.constant dense<0xFF800000> : vector<8xf32>
    %508 = vector.multi_reduction <maximumf>, %507, %cst_197 [1] : vector<8x8xf32> to vector<8xf32>
    %509 = vector.shape_cast %508 : vector<8xf32> to vector<8x1xf32>
    %510 = vector.broadcast %509 : vector<8x1xf32> to vector<8x8xf32>
    %511 = arith.subf %507, %510 : vector<8x8xf32>
    %512 = math.exp %511 : vector<8x8xf32>
    %cst_198 = arith.constant dense<0.000000e+00> : vector<8xf32>
    %513 = vector.multi_reduction <add>, %512, %cst_198 [1] : vector<8x8xf32> to vector<8xf32>
    %514 = vector.shape_cast %513 : vector<8xf32> to vector<8x1xf32>
    %515 = tpu.reciprocal %514 {approx = true} : vector<8x1xf32> -> vector<8x1xf32>
    %516 = vector.broadcast %515 : vector<8x1xf32> to vector<8x8xf32>
    %517 = arith.mulf %512, %516 : vector<8x8xf32>
    %cst_199 = arith.constant dense<0.000000e+00> : vector<8x8xf32>
    %518 = tpu.matmul %517, %504, %cst_199 {dimension_numbers = #tpu.dot_dimension_numbers<[1], [0], [0], [1], [0, 0, 1, 1], [], []>} : vector<8x8xf32>, vector<8x8xf32>, vector<8x8xf32> -> vector<8x8xf32>
    %519 = vector.extract_strided_slice %477 {offsets = [8, 0], sizes = [8, 32], strides = [1, 1]} : vector<32x32xf32> to vector<8x32xf32>
    %cst_200 = arith.constant dense<0.000000e+00> : vector<8x32xf32>
    %520 = tpu.matmul %518, %519, %cst_200 {dimension_numbers = #tpu.dot_dimension_numbers<[1], [0], [0], [1], [0, 0, 1, 1], [], []>} : vector<8x8xf32>, vector<8x32xf32>, vector<8x32xf32> -> vector<8x32xf32>
    %521 = arith.addf %501, %520 : vector<8x32xf32>
    %522 = vector.extract_strided_slice %480 {offsets = [0, 16], sizes = [8, 8], strides = [1, 1]} : vector<8x32xf32> to vector<8x8xf32>
    %523 = vector.extract_strided_slice %481 {offsets = [0, 16], sizes = [8, 8], strides = [1, 1]} : vector<8x32xf32> to vector<8x8xf32>
    %524 = vector.extract_strided_slice %482 {offsets = [0, 16], sizes = [8, 8], strides = [1, 1]} : vector<8x32xf32> to vector<8x8xf32>
    %cst_201 = arith.constant dense<0.000000e+00> : vector<8x8xf32>
    %525 = tpu.matmul %522, %523, %cst_201 {dimension_numbers = #tpu.dot_dimension_numbers<[1], [1], [0], [0], [0, 0, 1, 0], [], []>} : vector<8x8xf32>, vector<8x8xf32>, vector<8x8xf32> -> vector<8x8xf32>
    %cst_202 = arith.constant -1.000000e+20 : f32
    %526 = vector.broadcast %cst_202 : f32 to vector<8x8xf32>
    %527 = arith.select %13, %525, %526 : vector<8x8xi1>, vector<8x8xf32>
    %cst_203 = arith.constant dense<0xFF800000> : vector<8xf32>
    %528 = vector.multi_reduction <maximumf>, %527, %cst_203 [1] : vector<8x8xf32> to vector<8xf32>
    %529 = vector.shape_cast %528 : vector<8xf32> to vector<8x1xf32>
    %530 = vector.broadcast %529 : vector<8x1xf32> to vector<8x8xf32>
    %531 = arith.subf %527, %530 : vector<8x8xf32>
    %532 = math.exp %531 : vector<8x8xf32>
    %cst_204 = arith.constant dense<0.000000e+00> : vector<8xf32>
    %533 = vector.multi_reduction <add>, %532, %cst_204 [1] : vector<8x8xf32> to vector<8xf32>
    %534 = vector.shape_cast %533 : vector<8xf32> to vector<8x1xf32>
    %535 = tpu.reciprocal %534 {approx = true} : vector<8x1xf32> -> vector<8x1xf32>
    %536 = vector.broadcast %535 : vector<8x1xf32> to vector<8x8xf32>
    %537 = arith.mulf %532, %536 : vector<8x8xf32>
    %cst_205 = arith.constant dense<0.000000e+00> : vector<8x8xf32>
    %538 = tpu.matmul %537, %524, %cst_205 {dimension_numbers = #tpu.dot_dimension_numbers<[1], [0], [0], [1], [0, 0, 1, 1], [], []>} : vector<8x8xf32>, vector<8x8xf32>, vector<8x8xf32> -> vector<8x8xf32>
    %539 = vector.extract_strided_slice %477 {offsets = [16, 0], sizes = [8, 32], strides = [1, 1]} : vector<32x32xf32> to vector<8x32xf32>
    %cst_206 = arith.constant dense<0.000000e+00> : vector<8x32xf32>
    %540 = tpu.matmul %538, %539, %cst_206 {dimension_numbers = #tpu.dot_dimension_numbers<[1], [0], [0], [1], [0, 0, 1, 1], [], []>} : vector<8x8xf32>, vector<8x32xf32>, vector<8x32xf32> -> vector<8x32xf32>
    %541 = arith.addf %521, %540 : vector<8x32xf32>
    %542 = vector.extract_strided_slice %480 {offsets = [0, 24], sizes = [8, 8], strides = [1, 1]} : vector<8x32xf32> to vector<8x8xf32>
    %543 = vector.extract_strided_slice %481 {offsets = [0, 24], sizes = [8, 8], strides = [1, 1]} : vector<8x32xf32> to vector<8x8xf32>
    %544 = vector.extract_strided_slice %482 {offsets = [0, 24], sizes = [8, 8], strides = [1, 1]} : vector<8x32xf32> to vector<8x8xf32>
    %cst_207 = arith.constant dense<0.000000e+00> : vector<8x8xf32>
    %545 = tpu.matmul %542, %543, %cst_207 {dimension_numbers = #tpu.dot_dimension_numbers<[1], [1], [0], [0], [0, 0, 1, 0], [], []>} : vector<8x8xf32>, vector<8x8xf32>, vector<8x8xf32> -> vector<8x8xf32>
    %cst_208 = arith.constant -1.000000e+20 : f32
    %546 = vector.broadcast %cst_208 : f32 to vector<8x8xf32>
    %547 = arith.select %13, %545, %546 : vector<8x8xi1>, vector<8x8xf32>
    %cst_209 = arith.constant dense<0xFF800000> : vector<8xf32>
    %548 = vector.multi_reduction <maximumf>, %547, %cst_209 [1] : vector<8x8xf32> to vector<8xf32>
    %549 = vector.shape_cast %548 : vector<8xf32> to vector<8x1xf32>
    %550 = vector.broadcast %549 : vector<8x1xf32> to vector<8x8xf32>
    %551 = arith.subf %547, %550 : vector<8x8xf32>
    %552 = math.exp %551 : vector<8x8xf32>
    %cst_210 = arith.constant dense<0.000000e+00> : vector<8xf32>
    %553 = vector.multi_reduction <add>, %552, %cst_210 [1] : vector<8x8xf32> to vector<8xf32>
    %554 = vector.shape_cast %553 : vector<8xf32> to vector<8x1xf32>
    %555 = tpu.reciprocal %554 {approx = true} : vector<8x1xf32> -> vector<8x1xf32>
    %556 = vector.broadcast %555 : vector<8x1xf32> to vector<8x8xf32>
    %557 = arith.mulf %552, %556 : vector<8x8xf32>
    %cst_211 = arith.constant dense<0.000000e+00> : vector<8x8xf32>
    %558 = tpu.matmul %557, %544, %cst_211 {dimension_numbers = #tpu.dot_dimension_numbers<[1], [0], [0], [1], [0, 0, 1, 1], [], []>} : vector<8x8xf32>, vector<8x8xf32>, vector<8x8xf32> -> vector<8x8xf32>
    %559 = vector.extract_strided_slice %477 {offsets = [24, 0], sizes = [8, 32], strides = [1, 1]} : vector<32x32xf32> to vector<8x32xf32>
    %cst_212 = arith.constant dense<0.000000e+00> : vector<8x32xf32>
    %560 = tpu.matmul %558, %559, %cst_212 {dimension_numbers = #tpu.dot_dimension_numbers<[1], [0], [0], [1], [0, 0, 1, 1], [], []>} : vector<8x8xf32>, vector<8x32xf32>, vector<8x32xf32> -> vector<8x32xf32>
    %561 = arith.addf %541, %560 : vector<8x32xf32>
    %562 = vector.extract_strided_slice %473 {offsets = [8, 0], sizes = [8, 32], strides = [1, 1]} : vector<16x32xf32> to vector<8x32xf32>
    %563 = vector.extract_strided_slice %474 {offsets = [8, 0], sizes = [8, 32], strides = [1, 1]} : vector<16x32xf32> to vector<8x32xf32>
    %564 = vector.extract_strided_slice %475 {offsets = [8, 0], sizes = [8, 32], strides = [1, 1]} : vector<16x32xf32> to vector<8x32xf32>
    %565 = vector.extract_strided_slice %562 {offsets = [0, 0], sizes = [8, 8], strides = [1, 1]} : vector<8x32xf32> to vector<8x8xf32>
    %566 = vector.extract_strided_slice %563 {offsets = [0, 0], sizes = [8, 8], strides = [1, 1]} : vector<8x32xf32> to vector<8x8xf32>
    %567 = vector.extract_strided_slice %564 {offsets = [0, 0], sizes = [8, 8], strides = [1, 1]} : vector<8x32xf32> to vector<8x8xf32>
    %cst_213 = arith.constant dense<0.000000e+00> : vector<8x8xf32>
    %568 = tpu.matmul %565, %566, %cst_213 {dimension_numbers = #tpu.dot_dimension_numbers<[1], [1], [0], [0], [0, 0, 1, 0], [], []>} : vector<8x8xf32>, vector<8x8xf32>, vector<8x8xf32> -> vector<8x8xf32>
    %cst_214 = arith.constant -1.000000e+20 : f32
    %569 = vector.broadcast %cst_214 : f32 to vector<8x8xf32>
    %570 = arith.select %13, %568, %569 : vector<8x8xi1>, vector<8x8xf32>
    %cst_215 = arith.constant dense<0xFF800000> : vector<8xf32>
    %571 = vector.multi_reduction <maximumf>, %570, %cst_215 [1] : vector<8x8xf32> to vector<8xf32>
    %572 = vector.shape_cast %571 : vector<8xf32> to vector<8x1xf32>
    %573 = vector.broadcast %572 : vector<8x1xf32> to vector<8x8xf32>
    %574 = arith.subf %570, %573 : vector<8x8xf32>
    %575 = math.exp %574 : vector<8x8xf32>
    %cst_216 = arith.constant dense<0.000000e+00> : vector<8xf32>
    %576 = vector.multi_reduction <add>, %575, %cst_216 [1] : vector<8x8xf32> to vector<8xf32>
    %577 = vector.shape_cast %576 : vector<8xf32> to vector<8x1xf32>
    %578 = tpu.reciprocal %577 {approx = true} : vector<8x1xf32> -> vector<8x1xf32>
    %579 = vector.broadcast %578 : vector<8x1xf32> to vector<8x8xf32>
    %580 = arith.mulf %575, %579 : vector<8x8xf32>
    %cst_217 = arith.constant dense<0.000000e+00> : vector<8x8xf32>
    %581 = tpu.matmul %580, %567, %cst_217 {dimension_numbers = #tpu.dot_dimension_numbers<[1], [0], [0], [1], [0, 0, 1, 1], [], []>} : vector<8x8xf32>, vector<8x8xf32>, vector<8x8xf32> -> vector<8x8xf32>
    %582 = vector.extract_strided_slice %477 {offsets = [0, 0], sizes = [8, 32], strides = [1, 1]} : vector<32x32xf32> to vector<8x32xf32>
    %cst_218 = arith.constant dense<0.000000e+00> : vector<8x32xf32>
    %583 = tpu.matmul %581, %582, %cst_218 {dimension_numbers = #tpu.dot_dimension_numbers<[1], [0], [0], [1], [0, 0, 1, 1], [], []>} : vector<8x8xf32>, vector<8x32xf32>, vector<8x32xf32> -> vector<8x32xf32>
    %584 = vector.extract_strided_slice %562 {offsets = [0, 8], sizes = [8, 8], strides = [1, 1]} : vector<8x32xf32> to vector<8x8xf32>
    %585 = vector.extract_strided_slice %563 {offsets = [0, 8], sizes = [8, 8], strides = [1, 1]} : vector<8x32xf32> to vector<8x8xf32>
    %586 = vector.extract_strided_slice %564 {offsets = [0, 8], sizes = [8, 8], strides = [1, 1]} : vector<8x32xf32> to vector<8x8xf32>
    %cst_219 = arith.constant dense<0.000000e+00> : vector<8x8xf32>
    %587 = tpu.matmul %584, %585, %cst_219 {dimension_numbers = #tpu.dot_dimension_numbers<[1], [1], [0], [0], [0, 0, 1, 0], [], []>} : vector<8x8xf32>, vector<8x8xf32>, vector<8x8xf32> -> vector<8x8xf32>
    %cst_220 = arith.constant -1.000000e+20 : f32
    %588 = vector.broadcast %cst_220 : f32 to vector<8x8xf32>
    %589 = arith.select %13, %587, %588 : vector<8x8xi1>, vector<8x8xf32>
    %cst_221 = arith.constant dense<0xFF800000> : vector<8xf32>
    %590 = vector.multi_reduction <maximumf>, %589, %cst_221 [1] : vector<8x8xf32> to vector<8xf32>
    %591 = vector.shape_cast %590 : vector<8xf32> to vector<8x1xf32>
    %592 = vector.broadcast %591 : vector<8x1xf32> to vector<8x8xf32>
    %593 = arith.subf %589, %592 : vector<8x8xf32>
    %594 = math.exp %593 : vector<8x8xf32>
    %cst_222 = arith.constant dense<0.000000e+00> : vector<8xf32>
    %595 = vector.multi_reduction <add>, %594, %cst_222 [1] : vector<8x8xf32> to vector<8xf32>
    %596 = vector.shape_cast %595 : vector<8xf32> to vector<8x1xf32>
    %597 = tpu.reciprocal %596 {approx = true} : vector<8x1xf32> -> vector<8x1xf32>
    %598 = vector.broadcast %597 : vector<8x1xf32> to vector<8x8xf32>
    %599 = arith.mulf %594, %598 : vector<8x8xf32>
    %cst_223 = arith.constant dense<0.000000e+00> : vector<8x8xf32>
    %600 = tpu.matmul %599, %586, %cst_223 {dimension_numbers = #tpu.dot_dimension_numbers<[1], [0], [0], [1], [0, 0, 1, 1], [], []>} : vector<8x8xf32>, vector<8x8xf32>, vector<8x8xf32> -> vector<8x8xf32>
    %601 = vector.extract_strided_slice %477 {offsets = [8, 0], sizes = [8, 32], strides = [1, 1]} : vector<32x32xf32> to vector<8x32xf32>
    %cst_224 = arith.constant dense<0.000000e+00> : vector<8x32xf32>
    %602 = tpu.matmul %600, %601, %cst_224 {dimension_numbers = #tpu.dot_dimension_numbers<[1], [0], [0], [1], [0, 0, 1, 1], [], []>} : vector<8x8xf32>, vector<8x32xf32>, vector<8x32xf32> -> vector<8x32xf32>
    %603 = arith.addf %583, %602 : vector<8x32xf32>
    %604 = vector.extract_strided_slice %562 {offsets = [0, 16], sizes = [8, 8], strides = [1, 1]} : vector<8x32xf32> to vector<8x8xf32>
    %605 = vector.extract_strided_slice %563 {offsets = [0, 16], sizes = [8, 8], strides = [1, 1]} : vector<8x32xf32> to vector<8x8xf32>
    %606 = vector.extract_strided_slice %564 {offsets = [0, 16], sizes = [8, 8], strides = [1, 1]} : vector<8x32xf32> to vector<8x8xf32>
    %cst_225 = arith.constant dense<0.000000e+00> : vector<8x8xf32>
    %607 = tpu.matmul %604, %605, %cst_225 {dimension_numbers = #tpu.dot_dimension_numbers<[1], [1], [0], [0], [0, 0, 1, 0], [], []>} : vector<8x8xf32>, vector<8x8xf32>, vector<8x8xf32> -> vector<8x8xf32>
    %cst_226 = arith.constant -1.000000e+20 : f32
    %608 = vector.broadcast %cst_226 : f32 to vector<8x8xf32>
    %609 = arith.select %13, %607, %608 : vector<8x8xi1>, vector<8x8xf32>
    %cst_227 = arith.constant dense<0xFF800000> : vector<8xf32>
    %610 = vector.multi_reduction <maximumf>, %609, %cst_227 [1] : vector<8x8xf32> to vector<8xf32>
    %611 = vector.shape_cast %610 : vector<8xf32> to vector<8x1xf32>
    %612 = vector.broadcast %611 : vector<8x1xf32> to vector<8x8xf32>
    %613 = arith.subf %609, %612 : vector<8x8xf32>
    %614 = math.exp %613 : vector<8x8xf32>
    %cst_228 = arith.constant dense<0.000000e+00> : vector<8xf32>
    %615 = vector.multi_reduction <add>, %614, %cst_228 [1] : vector<8x8xf32> to vector<8xf32>
    %616 = vector.shape_cast %615 : vector<8xf32> to vector<8x1xf32>
    %617 = tpu.reciprocal %616 {approx = true} : vector<8x1xf32> -> vector<8x1xf32>
    %618 = vector.broadcast %617 : vector<8x1xf32> to vector<8x8xf32>
    %619 = arith.mulf %614, %618 : vector<8x8xf32>
    %cst_229 = arith.constant dense<0.000000e+00> : vector<8x8xf32>
    %620 = tpu.matmul %619, %606, %cst_229 {dimension_numbers = #tpu.dot_dimension_numbers<[1], [0], [0], [1], [0, 0, 1, 1], [], []>} : vector<8x8xf32>, vector<8x8xf32>, vector<8x8xf32> -> vector<8x8xf32>
    %621 = vector.extract_strided_slice %477 {offsets = [16, 0], sizes = [8, 32], strides = [1, 1]} : vector<32x32xf32> to vector<8x32xf32>
    %cst_230 = arith.constant dense<0.000000e+00> : vector<8x32xf32>
    %622 = tpu.matmul %620, %621, %cst_230 {dimension_numbers = #tpu.dot_dimension_numbers<[1], [0], [0], [1], [0, 0, 1, 1], [], []>} : vector<8x8xf32>, vector<8x32xf32>, vector<8x32xf32> -> vector<8x32xf32>
    %623 = arith.addf %603, %622 : vector<8x32xf32>
    %624 = vector.extract_strided_slice %562 {offsets = [0, 24], sizes = [8, 8], strides = [1, 1]} : vector<8x32xf32> to vector<8x8xf32>
    %625 = vector.extract_strided_slice %563 {offsets = [0, 24], sizes = [8, 8], strides = [1, 1]} : vector<8x32xf32> to vector<8x8xf32>
    %626 = vector.extract_strided_slice %564 {offsets = [0, 24], sizes = [8, 8], strides = [1, 1]} : vector<8x32xf32> to vector<8x8xf32>
    %cst_231 = arith.constant dense<0.000000e+00> : vector<8x8xf32>
    %627 = tpu.matmul %624, %625, %cst_231 {dimension_numbers = #tpu.dot_dimension_numbers<[1], [1], [0], [0], [0, 0, 1, 0], [], []>} : vector<8x8xf32>, vector<8x8xf32>, vector<8x8xf32> -> vector<8x8xf32>
    %cst_232 = arith.constant -1.000000e+20 : f32
    %628 = vector.broadcast %cst_232 : f32 to vector<8x8xf32>
    %629 = arith.select %13, %627, %628 : vector<8x8xi1>, vector<8x8xf32>
    %cst_233 = arith.constant dense<0xFF800000> : vector<8xf32>
    %630 = vector.multi_reduction <maximumf>, %629, %cst_233 [1] : vector<8x8xf32> to vector<8xf32>
    %631 = vector.shape_cast %630 : vector<8xf32> to vector<8x1xf32>
    %632 = vector.broadcast %631 : vector<8x1xf32> to vector<8x8xf32>
    %633 = arith.subf %629, %632 : vector<8x8xf32>
    %634 = math.exp %633 : vector<8x8xf32>
    %cst_234 = arith.constant dense<0.000000e+00> : vector<8xf32>
    %635 = vector.multi_reduction <add>, %634, %cst_234 [1] : vector<8x8xf32> to vector<8xf32>
    %636 = vector.shape_cast %635 : vector<8xf32> to vector<8x1xf32>
    %637 = tpu.reciprocal %636 {approx = true} : vector<8x1xf32> -> vector<8x1xf32>
    %638 = vector.broadcast %637 : vector<8x1xf32> to vector<8x8xf32>
    %639 = arith.mulf %634, %638 : vector<8x8xf32>
    %cst_235 = arith.constant dense<0.000000e+00> : vector<8x8xf32>
    %640 = tpu.matmul %639, %626, %cst_235 {dimension_numbers = #tpu.dot_dimension_numbers<[1], [0], [0], [1], [0, 0, 1, 1], [], []>} : vector<8x8xf32>, vector<8x8xf32>, vector<8x8xf32> -> vector<8x8xf32>
    %641 = vector.extract_strided_slice %477 {offsets = [24, 0], sizes = [8, 32], strides = [1, 1]} : vector<32x32xf32> to vector<8x32xf32>
    %cst_236 = arith.constant dense<0.000000e+00> : vector<8x32xf32>
    %642 = tpu.matmul %640, %641, %cst_236 {dimension_numbers = #tpu.dot_dimension_numbers<[1], [0], [0], [1], [0, 0, 1, 1], [], []>} : vector<8x8xf32>, vector<8x32xf32>, vector<8x32xf32> -> vector<8x32xf32>
    %643 = arith.addf %623, %642 : vector<8x32xf32>
    %644 = tpu.concatenate %561, %643 in 0 : vector<8x32xf32>, vector<8x32xf32> -> vector<16x32xf32>
    %645 = vector.broadcast %479 : vector<1x32xf32> to vector<16x32xf32>
    %646 = arith.addf %644, %645 : vector<16x32xf32>
    %647 = arith.addf %646, %465 : vector<16x32xf32>
    %c3 = arith.constant 3 : index
    %c0_237 = arith.constant 0 : index
    %c0_238 = arith.constant 0 : index
    %648 = vector.load %arg15[%c3, %c0_237, %c0_238] : memref<6x1x32xf32, #tpu.memory_space<vmem>>, vector<1x1x32xf32>
    %649 = vector.shape_cast %648 : vector<1x1x32xf32> to vector<1x32xf32>
    %c3_239 = arith.constant 3 : index
    %c0_240 = arith.constant 0 : index
    %c0_241 = arith.constant 0 : index
    %650 = vector.load %arg16[%c3_239, %c0_240, %c0_241] : memref<6x1x32xf32, #tpu.memory_space<vmem>>, vector<1x1x32xf32>
    %651 = vector.shape_cast %650 : vector<1x1x32xf32> to vector<1x32xf32>
    %cst_242 = arith.constant dense<0.000000e+00> : vector<16xf32>
    %652 = vector.multi_reduction <add>, %647, %cst_242 [1] : vector<16x32xf32> to vector<16xf32>
    %653 = vector.shape_cast %652 : vector<16xf32> to vector<16x1xf32>
    %cst_243 = arith.constant 3.200000e+01 : f32
    %654 = vector.broadcast %cst_243 : f32 to vector<16x1xf32>
    %655 = arith.divf %653, %654 : vector<16x1xf32>
    %656 = vector.broadcast %655 : vector<16x1xf32> to vector<16x32xf32>
    %657 = arith.subf %647, %656 : vector<16x32xf32>
    %658 = arith.mulf %657, %657 : vector<16x32xf32>
    %cst_244 = arith.constant dense<0.000000e+00> : vector<16xf32>
    %659 = vector.multi_reduction <add>, %658, %cst_244 [1] : vector<16x32xf32> to vector<16xf32>
    %660 = vector.shape_cast %659 : vector<16xf32> to vector<16x1xf32>
    %cst_245 = arith.constant 3.200000e+01 : f32
    %661 = vector.broadcast %cst_245 : f32 to vector<16x1xf32>
    %662 = arith.divf %660, %661 : vector<16x1xf32>
    %663 = vector.broadcast %655 : vector<16x1xf32> to vector<16x32xf32>
    %664 = arith.subf %647, %663 : vector<16x32xf32>
    %cst_246 = arith.constant 9.99999974E-6 : f32
    %665 = vector.broadcast %cst_246 : f32 to vector<16x1xf32>
    %666 = arith.addf %662, %665 : vector<16x1xf32>
    %667 = math.rsqrt %666 : vector<16x1xf32>
    %668 = vector.broadcast %667 : vector<16x1xf32> to vector<16x32xf32>
    %669 = arith.mulf %664, %668 : vector<16x32xf32>
    %670 = vector.broadcast %649 : vector<1x32xf32> to vector<16x32xf32>
    %671 = arith.mulf %669, %670 : vector<16x32xf32>
    %672 = vector.broadcast %651 : vector<1x32xf32> to vector<16x32xf32>
    %673 = arith.addf %671, %672 : vector<16x32xf32>
    %c1_247 = arith.constant 1 : index
    %c0_248 = arith.constant 0 : index
    %c0_249 = arith.constant 0 : index
    %674 = vector.load %arg9[%c1_247, %c0_248, %c0_249] : memref<2x32x32xf32, #tpu.memory_space<vmem>>, vector<1x32x32xf32>
    %675 = vector.shape_cast %674 : vector<1x32x32xf32> to vector<32x32xf32>
    %cst_250 = arith.constant dense<0.000000e+00> : vector<16x32xf32>
    %676 = tpu.matmul %673, %675, %cst_250 {dimension_numbers = #tpu.dot_dimension_numbers<[1], [0], [0], [1], [0, 0, 1, 1], [], []>} : vector<16x32xf32>, vector<32x32xf32>, vector<16x32xf32> -> vector<16x32xf32>
    %c1_251 = arith.constant 1 : index
    %c0_252 = arith.constant 0 : index
    %c0_253 = arith.constant 0 : index
    %677 = vector.load %arg10[%c1_251, %c0_252, %c0_253] : memref<2x1x32xf32, #tpu.memory_space<vmem>>, vector<1x1x32xf32>
    %678 = vector.shape_cast %677 : vector<1x1x32xf32> to vector<1x32xf32>
    %679 = vector.broadcast %678 : vector<1x32xf32> to vector<16x32xf32>
    %680 = arith.addf %676, %679 : vector<16x32xf32>
    %c1_254 = arith.constant 1 : index
    %c0_255 = arith.constant 0 : index
    %c0_256 = arith.constant 0 : index
    %681 = vector.load %arg11[%c1_254, %c0_255, %c0_256] : memref<2x32x64xf32, #tpu.memory_space<vmem>>, vector<1x32x64xf32>
    %682 = vector.shape_cast %681 : vector<1x32x64xf32> to vector<32x64xf32>
    %cst_257 = arith.constant dense<0.000000e+00> : vector<32x64xf32>
    %683 = tpu.matmul %10, %682, %cst_257 {dimension_numbers = #tpu.dot_dimension_numbers<[1], [0], [0], [1], [0, 0, 1, 1], [], []>} : vector<32x32xf32>, vector<32x64xf32>, vector<32x64xf32> -> vector<32x64xf32>
    %c1_258 = arith.constant 1 : index
    %c0_259 = arith.constant 0 : index
    %c0_260 = arith.constant 0 : index
    %684 = vector.load %arg12[%c1_258, %c0_259, %c0_260] : memref<2x1x64xf32, #tpu.memory_space<vmem>>, vector<1x1x64xf32>
    %685 = vector.shape_cast %684 : vector<1x1x64xf32> to vector<1x64xf32>
    %686 = vector.broadcast %685 : vector<1x64xf32> to vector<32x64xf32>
    %687 = arith.addf %683, %686 : vector<32x64xf32>
    %688 = vector.extract_strided_slice %687 {offsets = [0, 0], sizes = [32, 32], strides = [1, 1]} : vector<32x64xf32> to vector<32x32xf32>
    %689 = vector.extract_strided_slice %687 {offsets = [0, 32], sizes = [32, 32], strides = [1, 1]} : vector<32x64xf32> to vector<32x32xf32>
    %c1_261 = arith.constant 1 : index
    %c0_262 = arith.constant 0 : index
    %c0_263 = arith.constant 0 : index
    %690 = vector.load %arg13[%c1_261, %c0_262, %c0_263] : memref<2x32x32xf32, #tpu.memory_space<vmem>>, vector<1x32x32xf32>
    %691 = vector.shape_cast %690 : vector<1x32x32xf32> to vector<32x32xf32>
    %c1_264 = arith.constant 1 : index
    %c0_265 = arith.constant 0 : index
    %c0_266 = arith.constant 0 : index
    %692 = vector.load %arg14[%c1_264, %c0_265, %c0_266] : memref<2x1x32xf32, #tpu.memory_space<vmem>>, vector<1x1x32xf32>
    %693 = vector.shape_cast %692 : vector<1x1x32xf32> to vector<1x32xf32>
    %694 = vector.extract_strided_slice %680 {offsets = [0, 0], sizes = [8, 32], strides = [1, 1]} : vector<16x32xf32> to vector<8x32xf32>
    %695 = vector.extract_strided_slice %688 {offsets = [0, 0], sizes = [16, 32], strides = [1, 1]} : vector<32x32xf32> to vector<16x32xf32>
    %696 = vector.extract_strided_slice %689 {offsets = [0, 0], sizes = [16, 32], strides = [1, 1]} : vector<32x32xf32> to vector<16x32xf32>
    %697 = vector.extract_strided_slice %694 {offsets = [0, 0], sizes = [8, 8], strides = [1, 1]} : vector<8x32xf32> to vector<8x8xf32>
    %698 = vector.extract_strided_slice %695 {offsets = [0, 0], sizes = [16, 8], strides = [1, 1]} : vector<16x32xf32> to vector<16x8xf32>
    %699 = vector.extract_strided_slice %696 {offsets = [0, 0], sizes = [16, 8], strides = [1, 1]} : vector<16x32xf32> to vector<16x8xf32>
    %cst_267 = arith.constant dense<0.000000e+00> : vector<8x16xf32>
    %700 = tpu.matmul %697, %698, %cst_267 {dimension_numbers = #tpu.dot_dimension_numbers<[1], [1], [0], [0], [0, 0, 1, 0], [], []>} : vector<8x8xf32>, vector<16x8xf32>, vector<8x16xf32> -> vector<8x16xf32>
    %cst_268 = arith.constant dense<0xFF800000> : vector<8xf32>
    %701 = vector.multi_reduction <maximumf>, %700, %cst_268 [1] : vector<8x16xf32> to vector<8xf32>
    %702 = vector.shape_cast %701 : vector<8xf32> to vector<8x1xf32>
    %703 = vector.broadcast %702 : vector<8x1xf32> to vector<8x16xf32>
    %704 = arith.subf %700, %703 : vector<8x16xf32>
    %705 = math.exp %704 : vector<8x16xf32>
    %cst_269 = arith.constant dense<0.000000e+00> : vector<8xf32>
    %706 = vector.multi_reduction <add>, %705, %cst_269 [1] : vector<8x16xf32> to vector<8xf32>
    %707 = vector.shape_cast %706 : vector<8xf32> to vector<8x1xf32>
    %708 = tpu.reciprocal %707 {approx = true} : vector<8x1xf32> -> vector<8x1xf32>
    %709 = vector.broadcast %708 : vector<8x1xf32> to vector<8x16xf32>
    %710 = arith.mulf %705, %709 : vector<8x16xf32>
    %cst_270 = arith.constant dense<0.000000e+00> : vector<8x8xf32>
    %711 = tpu.matmul %710, %699, %cst_270 {dimension_numbers = #tpu.dot_dimension_numbers<[1], [0], [0], [1], [0, 0, 1, 1], [], []>} : vector<8x16xf32>, vector<16x8xf32>, vector<8x8xf32> -> vector<8x8xf32>
    %712 = vector.extract_strided_slice %691 {offsets = [0, 0], sizes = [8, 32], strides = [1, 1]} : vector<32x32xf32> to vector<8x32xf32>
    %cst_271 = arith.constant dense<0.000000e+00> : vector<8x32xf32>
    %713 = tpu.matmul %711, %712, %cst_271 {dimension_numbers = #tpu.dot_dimension_numbers<[1], [0], [0], [1], [0, 0, 1, 1], [], []>} : vector<8x8xf32>, vector<8x32xf32>, vector<8x32xf32> -> vector<8x32xf32>
    %714 = vector.extract_strided_slice %694 {offsets = [0, 8], sizes = [8, 8], strides = [1, 1]} : vector<8x32xf32> to vector<8x8xf32>
    %715 = vector.extract_strided_slice %695 {offsets = [0, 8], sizes = [16, 8], strides = [1, 1]} : vector<16x32xf32> to vector<16x8xf32>
    %716 = vector.extract_strided_slice %696 {offsets = [0, 8], sizes = [16, 8], strides = [1, 1]} : vector<16x32xf32> to vector<16x8xf32>
    %cst_272 = arith.constant dense<0.000000e+00> : vector<8x16xf32>
    %717 = tpu.matmul %714, %715, %cst_272 {dimension_numbers = #tpu.dot_dimension_numbers<[1], [1], [0], [0], [0, 0, 1, 0], [], []>} : vector<8x8xf32>, vector<16x8xf32>, vector<8x16xf32> -> vector<8x16xf32>
    %cst_273 = arith.constant dense<0xFF800000> : vector<8xf32>
    %718 = vector.multi_reduction <maximumf>, %717, %cst_273 [1] : vector<8x16xf32> to vector<8xf32>
    %719 = vector.shape_cast %718 : vector<8xf32> to vector<8x1xf32>
    %720 = vector.broadcast %719 : vector<8x1xf32> to vector<8x16xf32>
    %721 = arith.subf %717, %720 : vector<8x16xf32>
    %722 = math.exp %721 : vector<8x16xf32>
    %cst_274 = arith.constant dense<0.000000e+00> : vector<8xf32>
    %723 = vector.multi_reduction <add>, %722, %cst_274 [1] : vector<8x16xf32> to vector<8xf32>
    %724 = vector.shape_cast %723 : vector<8xf32> to vector<8x1xf32>
    %725 = tpu.reciprocal %724 {approx = true} : vector<8x1xf32> -> vector<8x1xf32>
    %726 = vector.broadcast %725 : vector<8x1xf32> to vector<8x16xf32>
    %727 = arith.mulf %722, %726 : vector<8x16xf32>
    %cst_275 = arith.constant dense<0.000000e+00> : vector<8x8xf32>
    %728 = tpu.matmul %727, %716, %cst_275 {dimension_numbers = #tpu.dot_dimension_numbers<[1], [0], [0], [1], [0, 0, 1, 1], [], []>} : vector<8x16xf32>, vector<16x8xf32>, vector<8x8xf32> -> vector<8x8xf32>
    %729 = vector.extract_strided_slice %691 {offsets = [8, 0], sizes = [8, 32], strides = [1, 1]} : vector<32x32xf32> to vector<8x32xf32>
    %cst_276 = arith.constant dense<0.000000e+00> : vector<8x32xf32>
    %730 = tpu.matmul %728, %729, %cst_276 {dimension_numbers = #tpu.dot_dimension_numbers<[1], [0], [0], [1], [0, 0, 1, 1], [], []>} : vector<8x8xf32>, vector<8x32xf32>, vector<8x32xf32> -> vector<8x32xf32>
    %731 = arith.addf %713, %730 : vector<8x32xf32>
    %732 = vector.extract_strided_slice %694 {offsets = [0, 16], sizes = [8, 8], strides = [1, 1]} : vector<8x32xf32> to vector<8x8xf32>
    %733 = vector.extract_strided_slice %695 {offsets = [0, 16], sizes = [16, 8], strides = [1, 1]} : vector<16x32xf32> to vector<16x8xf32>
    %734 = vector.extract_strided_slice %696 {offsets = [0, 16], sizes = [16, 8], strides = [1, 1]} : vector<16x32xf32> to vector<16x8xf32>
    %cst_277 = arith.constant dense<0.000000e+00> : vector<8x16xf32>
    %735 = tpu.matmul %732, %733, %cst_277 {dimension_numbers = #tpu.dot_dimension_numbers<[1], [1], [0], [0], [0, 0, 1, 0], [], []>} : vector<8x8xf32>, vector<16x8xf32>, vector<8x16xf32> -> vector<8x16xf32>
    %cst_278 = arith.constant dense<0xFF800000> : vector<8xf32>
    %736 = vector.multi_reduction <maximumf>, %735, %cst_278 [1] : vector<8x16xf32> to vector<8xf32>
    %737 = vector.shape_cast %736 : vector<8xf32> to vector<8x1xf32>
    %738 = vector.broadcast %737 : vector<8x1xf32> to vector<8x16xf32>
    %739 = arith.subf %735, %738 : vector<8x16xf32>
    %740 = math.exp %739 : vector<8x16xf32>
    %cst_279 = arith.constant dense<0.000000e+00> : vector<8xf32>
    %741 = vector.multi_reduction <add>, %740, %cst_279 [1] : vector<8x16xf32> to vector<8xf32>
    %742 = vector.shape_cast %741 : vector<8xf32> to vector<8x1xf32>
    %743 = tpu.reciprocal %742 {approx = true} : vector<8x1xf32> -> vector<8x1xf32>
    %744 = vector.broadcast %743 : vector<8x1xf32> to vector<8x16xf32>
    %745 = arith.mulf %740, %744 : vector<8x16xf32>
    %cst_280 = arith.constant dense<0.000000e+00> : vector<8x8xf32>
    %746 = tpu.matmul %745, %734, %cst_280 {dimension_numbers = #tpu.dot_dimension_numbers<[1], [0], [0], [1], [0, 0, 1, 1], [], []>} : vector<8x16xf32>, vector<16x8xf32>, vector<8x8xf32> -> vector<8x8xf32>
    %747 = vector.extract_strided_slice %691 {offsets = [16, 0], sizes = [8, 32], strides = [1, 1]} : vector<32x32xf32> to vector<8x32xf32>
    %cst_281 = arith.constant dense<0.000000e+00> : vector<8x32xf32>
    %748 = tpu.matmul %746, %747, %cst_281 {dimension_numbers = #tpu.dot_dimension_numbers<[1], [0], [0], [1], [0, 0, 1, 1], [], []>} : vector<8x8xf32>, vector<8x32xf32>, vector<8x32xf32> -> vector<8x32xf32>
    %749 = arith.addf %731, %748 : vector<8x32xf32>
    %750 = vector.extract_strided_slice %694 {offsets = [0, 24], sizes = [8, 8], strides = [1, 1]} : vector<8x32xf32> to vector<8x8xf32>
    %751 = vector.extract_strided_slice %695 {offsets = [0, 24], sizes = [16, 8], strides = [1, 1]} : vector<16x32xf32> to vector<16x8xf32>
    %752 = vector.extract_strided_slice %696 {offsets = [0, 24], sizes = [16, 8], strides = [1, 1]} : vector<16x32xf32> to vector<16x8xf32>
    %cst_282 = arith.constant dense<0.000000e+00> : vector<8x16xf32>
    %753 = tpu.matmul %750, %751, %cst_282 {dimension_numbers = #tpu.dot_dimension_numbers<[1], [1], [0], [0], [0, 0, 1, 0], [], []>} : vector<8x8xf32>, vector<16x8xf32>, vector<8x16xf32> -> vector<8x16xf32>
    %cst_283 = arith.constant dense<0xFF800000> : vector<8xf32>
    %754 = vector.multi_reduction <maximumf>, %753, %cst_283 [1] : vector<8x16xf32> to vector<8xf32>
    %755 = vector.shape_cast %754 : vector<8xf32> to vector<8x1xf32>
    %756 = vector.broadcast %755 : vector<8x1xf32> to vector<8x16xf32>
    %757 = arith.subf %753, %756 : vector<8x16xf32>
    %758 = math.exp %757 : vector<8x16xf32>
    %cst_284 = arith.constant dense<0.000000e+00> : vector<8xf32>
    %759 = vector.multi_reduction <add>, %758, %cst_284 [1] : vector<8x16xf32> to vector<8xf32>
    %760 = vector.shape_cast %759 : vector<8xf32> to vector<8x1xf32>
    %761 = tpu.reciprocal %760 {approx = true} : vector<8x1xf32> -> vector<8x1xf32>
    %762 = vector.broadcast %761 : vector<8x1xf32> to vector<8x16xf32>
    %763 = arith.mulf %758, %762 : vector<8x16xf32>
    %cst_285 = arith.constant dense<0.000000e+00> : vector<8x8xf32>
    %764 = tpu.matmul %763, %752, %cst_285 {dimension_numbers = #tpu.dot_dimension_numbers<[1], [0], [0], [1], [0, 0, 1, 1], [], []>} : vector<8x16xf32>, vector<16x8xf32>, vector<8x8xf32> -> vector<8x8xf32>
    %765 = vector.extract_strided_slice %691 {offsets = [24, 0], sizes = [8, 32], strides = [1, 1]} : vector<32x32xf32> to vector<8x32xf32>
    %cst_286 = arith.constant dense<0.000000e+00> : vector<8x32xf32>
    %766 = tpu.matmul %764, %765, %cst_286 {dimension_numbers = #tpu.dot_dimension_numbers<[1], [0], [0], [1], [0, 0, 1, 1], [], []>} : vector<8x8xf32>, vector<8x32xf32>, vector<8x32xf32> -> vector<8x32xf32>
    %767 = arith.addf %749, %766 : vector<8x32xf32>
    %768 = vector.extract_strided_slice %680 {offsets = [8, 0], sizes = [8, 32], strides = [1, 1]} : vector<16x32xf32> to vector<8x32xf32>
    %769 = vector.extract_strided_slice %688 {offsets = [16, 0], sizes = [16, 32], strides = [1, 1]} : vector<32x32xf32> to vector<16x32xf32>
    %770 = vector.extract_strided_slice %689 {offsets = [16, 0], sizes = [16, 32], strides = [1, 1]} : vector<32x32xf32> to vector<16x32xf32>
    %771 = vector.extract_strided_slice %768 {offsets = [0, 0], sizes = [8, 8], strides = [1, 1]} : vector<8x32xf32> to vector<8x8xf32>
    %772 = vector.extract_strided_slice %769 {offsets = [0, 0], sizes = [16, 8], strides = [1, 1]} : vector<16x32xf32> to vector<16x8xf32>
    %773 = vector.extract_strided_slice %770 {offsets = [0, 0], sizes = [16, 8], strides = [1, 1]} : vector<16x32xf32> to vector<16x8xf32>
    %cst_287 = arith.constant dense<0.000000e+00> : vector<8x16xf32>
    %774 = tpu.matmul %771, %772, %cst_287 {dimension_numbers = #tpu.dot_dimension_numbers<[1], [1], [0], [0], [0, 0, 1, 0], [], []>} : vector<8x8xf32>, vector<16x8xf32>, vector<8x16xf32> -> vector<8x16xf32>
    %cst_288 = arith.constant dense<0xFF800000> : vector<8xf32>
    %775 = vector.multi_reduction <maximumf>, %774, %cst_288 [1] : vector<8x16xf32> to vector<8xf32>
    %776 = vector.shape_cast %775 : vector<8xf32> to vector<8x1xf32>
    %777 = vector.broadcast %776 : vector<8x1xf32> to vector<8x16xf32>
    %778 = arith.subf %774, %777 : vector<8x16xf32>
    %779 = math.exp %778 : vector<8x16xf32>
    %cst_289 = arith.constant dense<0.000000e+00> : vector<8xf32>
    %780 = vector.multi_reduction <add>, %779, %cst_289 [1] : vector<8x16xf32> to vector<8xf32>
    %781 = vector.shape_cast %780 : vector<8xf32> to vector<8x1xf32>
    %782 = tpu.reciprocal %781 {approx = true} : vector<8x1xf32> -> vector<8x1xf32>
    %783 = vector.broadcast %782 : vector<8x1xf32> to vector<8x16xf32>
    %784 = arith.mulf %779, %783 : vector<8x16xf32>
    %cst_290 = arith.constant dense<0.000000e+00> : vector<8x8xf32>
    %785 = tpu.matmul %784, %773, %cst_290 {dimension_numbers = #tpu.dot_dimension_numbers<[1], [0], [0], [1], [0, 0, 1, 1], [], []>} : vector<8x16xf32>, vector<16x8xf32>, vector<8x8xf32> -> vector<8x8xf32>
    %786 = vector.extract_strided_slice %691 {offsets = [0, 0], sizes = [8, 32], strides = [1, 1]} : vector<32x32xf32> to vector<8x32xf32>
    %cst_291 = arith.constant dense<0.000000e+00> : vector<8x32xf32>
    %787 = tpu.matmul %785, %786, %cst_291 {dimension_numbers = #tpu.dot_dimension_numbers<[1], [0], [0], [1], [0, 0, 1, 1], [], []>} : vector<8x8xf32>, vector<8x32xf32>, vector<8x32xf32> -> vector<8x32xf32>
    %788 = vector.extract_strided_slice %768 {offsets = [0, 8], sizes = [8, 8], strides = [1, 1]} : vector<8x32xf32> to vector<8x8xf32>
    %789 = vector.extract_strided_slice %769 {offsets = [0, 8], sizes = [16, 8], strides = [1, 1]} : vector<16x32xf32> to vector<16x8xf32>
    %790 = vector.extract_strided_slice %770 {offsets = [0, 8], sizes = [16, 8], strides = [1, 1]} : vector<16x32xf32> to vector<16x8xf32>
    %cst_292 = arith.constant dense<0.000000e+00> : vector<8x16xf32>
    %791 = tpu.matmul %788, %789, %cst_292 {dimension_numbers = #tpu.dot_dimension_numbers<[1], [1], [0], [0], [0, 0, 1, 0], [], []>} : vector<8x8xf32>, vector<16x8xf32>, vector<8x16xf32> -> vector<8x16xf32>
    %cst_293 = arith.constant dense<0xFF800000> : vector<8xf32>
    %792 = vector.multi_reduction <maximumf>, %791, %cst_293 [1] : vector<8x16xf32> to vector<8xf32>
    %793 = vector.shape_cast %792 : vector<8xf32> to vector<8x1xf32>
    %794 = vector.broadcast %793 : vector<8x1xf32> to vector<8x16xf32>
    %795 = arith.subf %791, %794 : vector<8x16xf32>
    %796 = math.exp %795 : vector<8x16xf32>
    %cst_294 = arith.constant dense<0.000000e+00> : vector<8xf32>
    %797 = vector.multi_reduction <add>, %796, %cst_294 [1] : vector<8x16xf32> to vector<8xf32>
    %798 = vector.shape_cast %797 : vector<8xf32> to vector<8x1xf32>
    %799 = tpu.reciprocal %798 {approx = true} : vector<8x1xf32> -> vector<8x1xf32>
    %800 = vector.broadcast %799 : vector<8x1xf32> to vector<8x16xf32>
    %801 = arith.mulf %796, %800 : vector<8x16xf32>
    %cst_295 = arith.constant dense<0.000000e+00> : vector<8x8xf32>
    %802 = tpu.matmul %801, %790, %cst_295 {dimension_numbers = #tpu.dot_dimension_numbers<[1], [0], [0], [1], [0, 0, 1, 1], [], []>} : vector<8x16xf32>, vector<16x8xf32>, vector<8x8xf32> -> vector<8x8xf32>
    %803 = vector.extract_strided_slice %691 {offsets = [8, 0], sizes = [8, 32], strides = [1, 1]} : vector<32x32xf32> to vector<8x32xf32>
    %cst_296 = arith.constant dense<0.000000e+00> : vector<8x32xf32>
    %804 = tpu.matmul %802, %803, %cst_296 {dimension_numbers = #tpu.dot_dimension_numbers<[1], [0], [0], [1], [0, 0, 1, 1], [], []>} : vector<8x8xf32>, vector<8x32xf32>, vector<8x32xf32> -> vector<8x32xf32>
    %805 = arith.addf %787, %804 : vector<8x32xf32>
    %806 = vector.extract_strided_slice %768 {offsets = [0, 16], sizes = [8, 8], strides = [1, 1]} : vector<8x32xf32> to vector<8x8xf32>
    %807 = vector.extract_strided_slice %769 {offsets = [0, 16], sizes = [16, 8], strides = [1, 1]} : vector<16x32xf32> to vector<16x8xf32>
    %808 = vector.extract_strided_slice %770 {offsets = [0, 16], sizes = [16, 8], strides = [1, 1]} : vector<16x32xf32> to vector<16x8xf32>
    %cst_297 = arith.constant dense<0.000000e+00> : vector<8x16xf32>
    %809 = tpu.matmul %806, %807, %cst_297 {dimension_numbers = #tpu.dot_dimension_numbers<[1], [1], [0], [0], [0, 0, 1, 0], [], []>} : vector<8x8xf32>, vector<16x8xf32>, vector<8x16xf32> -> vector<8x16xf32>
    %cst_298 = arith.constant dense<0xFF800000> : vector<8xf32>
    %810 = vector.multi_reduction <maximumf>, %809, %cst_298 [1] : vector<8x16xf32> to vector<8xf32>
    %811 = vector.shape_cast %810 : vector<8xf32> to vector<8x1xf32>
    %812 = vector.broadcast %811 : vector<8x1xf32> to vector<8x16xf32>
    %813 = arith.subf %809, %812 : vector<8x16xf32>
    %814 = math.exp %813 : vector<8x16xf32>
    %cst_299 = arith.constant dense<0.000000e+00> : vector<8xf32>
    %815 = vector.multi_reduction <add>, %814, %cst_299 [1] : vector<8x16xf32> to vector<8xf32>
    %816 = vector.shape_cast %815 : vector<8xf32> to vector<8x1xf32>
    %817 = tpu.reciprocal %816 {approx = true} : vector<8x1xf32> -> vector<8x1xf32>
    %818 = vector.broadcast %817 : vector<8x1xf32> to vector<8x16xf32>
    %819 = arith.mulf %814, %818 : vector<8x16xf32>
    %cst_300 = arith.constant dense<0.000000e+00> : vector<8x8xf32>
    %820 = tpu.matmul %819, %808, %cst_300 {dimension_numbers = #tpu.dot_dimension_numbers<[1], [0], [0], [1], [0, 0, 1, 1], [], []>} : vector<8x16xf32>, vector<16x8xf32>, vector<8x8xf32> -> vector<8x8xf32>
    %821 = vector.extract_strided_slice %691 {offsets = [16, 0], sizes = [8, 32], strides = [1, 1]} : vector<32x32xf32> to vector<8x32xf32>
    %cst_301 = arith.constant dense<0.000000e+00> : vector<8x32xf32>
    %822 = tpu.matmul %820, %821, %cst_301 {dimension_numbers = #tpu.dot_dimension_numbers<[1], [0], [0], [1], [0, 0, 1, 1], [], []>} : vector<8x8xf32>, vector<8x32xf32>, vector<8x32xf32> -> vector<8x32xf32>
    %823 = arith.addf %805, %822 : vector<8x32xf32>
    %824 = vector.extract_strided_slice %768 {offsets = [0, 24], sizes = [8, 8], strides = [1, 1]} : vector<8x32xf32> to vector<8x8xf32>
    %825 = vector.extract_strided_slice %769 {offsets = [0, 24], sizes = [16, 8], strides = [1, 1]} : vector<16x32xf32> to vector<16x8xf32>
    %826 = vector.extract_strided_slice %770 {offsets = [0, 24], sizes = [16, 8], strides = [1, 1]} : vector<16x32xf32> to vector<16x8xf32>
    %cst_302 = arith.constant dense<0.000000e+00> : vector<8x16xf32>
    %827 = tpu.matmul %824, %825, %cst_302 {dimension_numbers = #tpu.dot_dimension_numbers<[1], [1], [0], [0], [0, 0, 1, 0], [], []>} : vector<8x8xf32>, vector<16x8xf32>, vector<8x16xf32> -> vector<8x16xf32>
    %cst_303 = arith.constant dense<0xFF800000> : vector<8xf32>
    %828 = vector.multi_reduction <maximumf>, %827, %cst_303 [1] : vector<8x16xf32> to vector<8xf32>
    %829 = vector.shape_cast %828 : vector<8xf32> to vector<8x1xf32>
    %830 = vector.broadcast %829 : vector<8x1xf32> to vector<8x16xf32>
    %831 = arith.subf %827, %830 : vector<8x16xf32>
    %832 = math.exp %831 : vector<8x16xf32>
    %cst_304 = arith.constant dense<0.000000e+00> : vector<8xf32>
    %833 = vector.multi_reduction <add>, %832, %cst_304 [1] : vector<8x16xf32> to vector<8xf32>
    %834 = vector.shape_cast %833 : vector<8xf32> to vector<8x1xf32>
    %835 = tpu.reciprocal %834 {approx = true} : vector<8x1xf32> -> vector<8x1xf32>
    %836 = vector.broadcast %835 : vector<8x1xf32> to vector<8x16xf32>
    %837 = arith.mulf %832, %836 : vector<8x16xf32>
    %cst_305 = arith.constant dense<0.000000e+00> : vector<8x8xf32>
    %838 = tpu.matmul %837, %826, %cst_305 {dimension_numbers = #tpu.dot_dimension_numbers<[1], [0], [0], [1], [0, 0, 1, 1], [], []>} : vector<8x16xf32>, vector<16x8xf32>, vector<8x8xf32> -> vector<8x8xf32>
    %839 = vector.extract_strided_slice %691 {offsets = [24, 0], sizes = [8, 32], strides = [1, 1]} : vector<32x32xf32> to vector<8x32xf32>
    %cst_306 = arith.constant dense<0.000000e+00> : vector<8x32xf32>
    %840 = tpu.matmul %838, %839, %cst_306 {dimension_numbers = #tpu.dot_dimension_numbers<[1], [0], [0], [1], [0, 0, 1, 1], [], []>} : vector<8x8xf32>, vector<8x32xf32>, vector<8x32xf32> -> vector<8x32xf32>
    %841 = arith.addf %823, %840 : vector<8x32xf32>
    %842 = tpu.concatenate %767, %841 in 0 : vector<8x32xf32>, vector<8x32xf32> -> vector<16x32xf32>
    %843 = vector.broadcast %693 : vector<1x32xf32> to vector<16x32xf32>
    %844 = arith.addf %842, %843 : vector<16x32xf32>
    %845 = arith.addf %844, %673 : vector<16x32xf32>
    %c4 = arith.constant 4 : index
    %c0_307 = arith.constant 0 : index
    %c0_308 = arith.constant 0 : index
    %846 = vector.load %arg15[%c4, %c0_307, %c0_308] : memref<6x1x32xf32, #tpu.memory_space<vmem>>, vector<1x1x32xf32>
    %847 = vector.shape_cast %846 : vector<1x1x32xf32> to vector<1x32xf32>
    %c4_309 = arith.constant 4 : index
    %c0_310 = arith.constant 0 : index
    %c0_311 = arith.constant 0 : index
    %848 = vector.load %arg16[%c4_309, %c0_310, %c0_311] : memref<6x1x32xf32, #tpu.memory_space<vmem>>, vector<1x1x32xf32>
    %849 = vector.shape_cast %848 : vector<1x1x32xf32> to vector<1x32xf32>
    %cst_312 = arith.constant dense<0.000000e+00> : vector<16xf32>
    %850 = vector.multi_reduction <add>, %845, %cst_312 [1] : vector<16x32xf32> to vector<16xf32>
    %851 = vector.shape_cast %850 : vector<16xf32> to vector<16x1xf32>
    %cst_313 = arith.constant 3.200000e+01 : f32
    %852 = vector.broadcast %cst_313 : f32 to vector<16x1xf32>
    %853 = arith.divf %851, %852 : vector<16x1xf32>
    %854 = vector.broadcast %853 : vector<16x1xf32> to vector<16x32xf32>
    %855 = arith.subf %845, %854 : vector<16x32xf32>
    %856 = arith.mulf %855, %855 : vector<16x32xf32>
    %cst_314 = arith.constant dense<0.000000e+00> : vector<16xf32>
    %857 = vector.multi_reduction <add>, %856, %cst_314 [1] : vector<16x32xf32> to vector<16xf32>
    %858 = vector.shape_cast %857 : vector<16xf32> to vector<16x1xf32>
    %cst_315 = arith.constant 3.200000e+01 : f32
    %859 = vector.broadcast %cst_315 : f32 to vector<16x1xf32>
    %860 = arith.divf %858, %859 : vector<16x1xf32>
    %861 = vector.broadcast %853 : vector<16x1xf32> to vector<16x32xf32>
    %862 = arith.subf %845, %861 : vector<16x32xf32>
    %cst_316 = arith.constant 9.99999974E-6 : f32
    %863 = vector.broadcast %cst_316 : f32 to vector<16x1xf32>
    %864 = arith.addf %860, %863 : vector<16x1xf32>
    %865 = math.rsqrt %864 : vector<16x1xf32>
    %866 = vector.broadcast %865 : vector<16x1xf32> to vector<16x32xf32>
    %867 = arith.mulf %862, %866 : vector<16x32xf32>
    %868 = vector.broadcast %847 : vector<1x32xf32> to vector<16x32xf32>
    %869 = arith.mulf %867, %868 : vector<16x32xf32>
    %870 = vector.broadcast %849 : vector<1x32xf32> to vector<16x32xf32>
    %871 = arith.addf %869, %870 : vector<16x32xf32>
    %c1_317 = arith.constant 1 : index
    %c0_318 = arith.constant 0 : index
    %c0_319 = arith.constant 0 : index
    %872 = vector.load %arg17[%c1_317, %c0_318, %c0_319] : memref<2x32x64xf32, #tpu.memory_space<vmem>>, vector<1x32x64xf32>
    %873 = vector.shape_cast %872 : vector<1x32x64xf32> to vector<32x64xf32>
    %cst_320 = arith.constant dense<0.000000e+00> : vector<16x64xf32>
    %874 = tpu.matmul %871, %873, %cst_320 {dimension_numbers = #tpu.dot_dimension_numbers<[1], [0], [0], [1], [0, 0, 1, 1], [], []>} : vector<16x32xf32>, vector<32x64xf32>, vector<16x64xf32> -> vector<16x64xf32>
    %c1_321 = arith.constant 1 : index
    %c0_322 = arith.constant 0 : index
    %c0_323 = arith.constant 0 : index
    %875 = vector.load %arg18[%c1_321, %c0_322, %c0_323] : memref<2x1x64xf32, #tpu.memory_space<vmem>>, vector<1x1x64xf32>
    %876 = vector.shape_cast %875 : vector<1x1x64xf32> to vector<1x64xf32>
    %877 = vector.broadcast %876 : vector<1x64xf32> to vector<16x64xf32>
    %878 = arith.addf %874, %877 : vector<16x64xf32>
    %cst_324 = arith.constant 0.000000e+00 : f32
    %879 = vector.broadcast %cst_324 : f32 to vector<16x64xf32>
    %880 = arith.cmpf oge, %878, %879 : vector<16x64xf32>
    %cst_325 = arith.constant 5.000000e-02 : f32
    %881 = vector.broadcast %cst_325 : f32 to vector<16x64xf32>
    %882 = arith.mulf %881, %878 : vector<16x64xf32>
    %883 = arith.select %880, %878, %882 : vector<16x64xi1>, vector<16x64xf32>
    %c1_326 = arith.constant 1 : index
    %c0_327 = arith.constant 0 : index
    %c0_328 = arith.constant 0 : index
    %884 = vector.load %arg19[%c1_326, %c0_327, %c0_328] : memref<2x64x32xf32, #tpu.memory_space<vmem>>, vector<1x64x32xf32>
    %885 = vector.shape_cast %884 : vector<1x64x32xf32> to vector<64x32xf32>
    %cst_329 = arith.constant dense<0.000000e+00> : vector<16x32xf32>
    %886 = tpu.matmul %883, %885, %cst_329 {dimension_numbers = #tpu.dot_dimension_numbers<[1], [0], [0], [1], [0, 0, 1, 1], [], []>} : vector<16x64xf32>, vector<64x32xf32>, vector<16x32xf32> -> vector<16x32xf32>
    %c1_330 = arith.constant 1 : index
    %c0_331 = arith.constant 0 : index
    %c0_332 = arith.constant 0 : index
    %887 = vector.load %arg20[%c1_330, %c0_331, %c0_332] : memref<2x1x32xf32, #tpu.memory_space<vmem>>, vector<1x1x32xf32>
    %888 = vector.shape_cast %887 : vector<1x1x32xf32> to vector<1x32xf32>
    %889 = vector.broadcast %888 : vector<1x32xf32> to vector<16x32xf32>
    %890 = arith.addf %886, %889 : vector<16x32xf32>
    %891 = arith.addf %890, %871 : vector<16x32xf32>
    %c5 = arith.constant 5 : index
    %c0_333 = arith.constant 0 : index
    %c0_334 = arith.constant 0 : index
    %892 = vector.load %arg15[%c5, %c0_333, %c0_334] : memref<6x1x32xf32, #tpu.memory_space<vmem>>, vector<1x1x32xf32>
    %893 = vector.shape_cast %892 : vector<1x1x32xf32> to vector<1x32xf32>
    %c5_335 = arith.constant 5 : index
    %c0_336 = arith.constant 0 : index
    %c0_337 = arith.constant 0 : index
    %894 = vector.load %arg16[%c5_335, %c0_336, %c0_337] : memref<6x1x32xf32, #tpu.memory_space<vmem>>, vector<1x1x32xf32>
    %895 = vector.shape_cast %894 : vector<1x1x32xf32> to vector<1x32xf32>
    %cst_338 = arith.constant dense<0.000000e+00> : vector<16xf32>
    %896 = vector.multi_reduction <add>, %891, %cst_338 [1] : vector<16x32xf32> to vector<16xf32>
    %897 = vector.shape_cast %896 : vector<16xf32> to vector<16x1xf32>
    %cst_339 = arith.constant 3.200000e+01 : f32
    %898 = vector.broadcast %cst_339 : f32 to vector<16x1xf32>
    %899 = arith.divf %897, %898 : vector<16x1xf32>
    %900 = vector.broadcast %899 : vector<16x1xf32> to vector<16x32xf32>
    %901 = arith.subf %891, %900 : vector<16x32xf32>
    %902 = arith.mulf %901, %901 : vector<16x32xf32>
    %cst_340 = arith.constant dense<0.000000e+00> : vector<16xf32>
    %903 = vector.multi_reduction <add>, %902, %cst_340 [1] : vector<16x32xf32> to vector<16xf32>
    %904 = vector.shape_cast %903 : vector<16xf32> to vector<16x1xf32>
    %cst_341 = arith.constant 3.200000e+01 : f32
    %905 = vector.broadcast %cst_341 : f32 to vector<16x1xf32>
    %906 = arith.divf %904, %905 : vector<16x1xf32>
    %907 = vector.broadcast %899 : vector<16x1xf32> to vector<16x32xf32>
    %908 = arith.subf %891, %907 : vector<16x32xf32>
    %cst_342 = arith.constant 9.99999974E-6 : f32
    %909 = vector.broadcast %cst_342 : f32 to vector<16x1xf32>
    %910 = arith.addf %906, %909 : vector<16x1xf32>
    %911 = math.rsqrt %910 : vector<16x1xf32>
    %912 = vector.broadcast %911 : vector<16x1xf32> to vector<16x32xf32>
    %913 = arith.mulf %908, %912 : vector<16x32xf32>
    %914 = vector.broadcast %893 : vector<1x32xf32> to vector<16x32xf32>
    %915 = arith.mulf %913, %914 : vector<16x32xf32>
    %916 = vector.broadcast %895 : vector<1x32xf32> to vector<16x32xf32>
    %917 = arith.addf %915, %916 : vector<16x32xf32>
    %c0_343 = arith.constant 0 : index
    %c0_344 = arith.constant 0 : index
    %918 = vector.load %arg21[%c0_343, %c0_344] : memref<32x1xf32, #tpu.memory_space<vmem>>, vector<32x1xf32>
    %cst_345 = arith.constant dense<0.000000e+00> : vector<16x1xf32>
    %919 = tpu.matmul %917, %918, %cst_345 {dimension_numbers = #tpu.dot_dimension_numbers<[1], [0], [0], [1], [0, 0, 1, 1], [], []>} : vector<16x32xf32>, vector<32x1xf32>, vector<16x1xf32> -> vector<16x1xf32>
    %c0_346 = arith.constant 0 : index
    %c0_347 = arith.constant 0 : index
    %920 = vector.load %arg22[%c0_346, %c0_347] : memref<1x1xf32, #tpu.memory_space<vmem>>, vector<1x1xf32>
    %921 = vector.broadcast %920 : vector<1x1xf32> to vector<16x1xf32>
    %922 = arith.addf %919, %921 : vector<16x1xf32>
    %c0_348 = arith.constant 0 : index
    %c0_349 = arith.constant 0 : index
    %923 = vector.load %arg23[%c0_348, %c0_349] : memref<16x1xf32, #tpu.memory_space<vmem>>, vector<16x1xf32>
    tpu.vector_store %arg23[%c0_348, %c0_349], %922 {strides = array<i32>} : memref<16x1xf32, #tpu.memory_space<vmem>>, vector<16x1xf32>,
    return
  }
}

</mosaic_0001>

<llo_original>
// kernel: decoder_forward.1
$region0: #{decoder_forward.1}
  #allocation0 [shape = 'u32[]', space=smem, size = 0x4, offset = 0x4, fixed_abs, tag = 'smem constant byte address 0x4 - core index']
  #allocation1 [shape = 'u32[72,128]{1,0:T(1,128)}', space=vmem, size = 0x9000, scoped, tag = 'internal scratch']
  #allocation2 [shape = 'f32[1,1]{1,0:T(1,128)S(1)}', space=vmem, size = 0x200, scoped, tag = 'scoped memory for decoder_forward.1']
  %s0 = inlined_call_operand.vmem [shape: f32[16,1], index: 0, kind: input, shape index: {}]
  %s1 = inlined_call_operand.vmem [shape: f32[16,32], index: 1, kind: input, shape index: {}]
  %s2 = inlined_call_operand.vmem [shape: f32[32,32], index: 2, kind: input, shape index: {}]
  %s3 = inlined_call_operand.vmem [shape: f32[1,32], index: 3, kind: input, shape index: {}]
  %s4 = inlined_call_operand.vmem [shape: f32[1,32], index: 4, kind: input, shape index: {}]
  %s5 = inlined_call_operand.vmem [shape: f32[2,32,96], index: 5, kind: input, shape index: {}]
  %s6 = inlined_call_operand.vmem [shape: f32[2,1,96], index: 6, kind: input, shape index: {}]
  %s7 = inlined_call_operand.vmem [shape: f32[2,32,32], index: 7, kind: input, shape index: {}]
  %s8 = inlined_call_operand.vmem [shape: f32[2,1,32], index: 8, kind: input, shape index: {}]
  %s9 = inlined_call_operand.vmem [shape: f32[2,32,32], index: 9, kind: input, shape index: {}]
  %s10 = inlined_call_operand.vmem [shape: f32[2,1,32], index: 10, kind: input, shape index: {}]
  %s11 = inlined_call_operand.vmem [shape: f32[2,32,64], index: 11, kind: input, shape index: {}]
  %s12 = inlined_call_operand.vmem [shape: f32[2,1,64], index: 12, kind: input, shape index: {}]
  %s13 = inlined_call_operand.vmem [shape: f32[2,32,32], index: 13, kind: input, shape index: {}]
  %s14 = inlined_call_operand.vmem [shape: f32[2,1,32], index: 14, kind: input, shape index: {}]
  %s15 = inlined_call_operand.vmem [shape: f32[6,1,32], index: 15, kind: input, shape index: {}]
  %s16 = inlined_call_operand.vmem [shape: f32[6,1,32], index: 16, kind: input, shape index: {}]
  %s17 = inlined_call_operand.vmem [shape: f32[2,32,64], index: 17, kind: input, shape index: {}]
  %s18 = inlined_call_operand.vmem [shape: f32[2,1,64], index: 18, kind: input, shape index: {}]
  %s19 = inlined_call_operand.vmem [shape: f32[2,64,32], index: 19, kind: input, shape index: {}]
  %s20 = inlined_call_operand.vmem [shape: f32[2,1,32], index: 20, kind: input, shape index: {}]
  %s21 = inlined_call_operand.vmem [shape: f32[32,1], index: 21, kind: input, shape index: {}]
  %s22 = inlined_call_operand.<no memory space> [shape: f32[1,1], index: 22, kind: input, shape index: {}]
  %s23 = inlined_call_operand.vmem [shape: f32[16,1], index: 23, kind: output, shape index: {}]
  %s24 = sld [smem:[#allocation0]]
  $region102: #{decoder_forward.1} parent=0
    _
  %s26 = ssub.s32 1, %s24
  %s27 = scalar_select 0, %s26, %s24
  %v28 = vstv %s22
  %29 = vst [vmem:[#allocation2] sm:$0x1] %v28
  // Predicated region
  $region2: #{decoder_forward.1} parent=0 // pred_check
    _
  $region3: #{decoder_forward.1} parent=0 // pred_check_branch
    %31 = sbr.rel (0) target = $region5
  $region4: #{decoder_forward.1} parent=0 // pred_region
    _
  $region5: #{decoder_forward.1} parent=0 // pred_fallthru
    _
  // Predicated region
  $region6: #{decoder_forward.1} parent=0 // pred_check
    _
  $region7: #{decoder_forward.1} parent=0 // pred_check_branch
    %33 = sbr.rel (0) target = $region9
  $region8: #{decoder_forward.1} parent=0 // pred_region
    _
  $region9: #{decoder_forward.1} parent=0 // pred_fallthru
    _
  // Predicated region
  $region10: #{decoder_forward.1} parent=0 // pred_check
    _
  $region11: #{decoder_forward.1} parent=0 // pred_check_branch
    %35 = sbr.rel (0) target = $region13
  $region12: #{decoder_forward.1} parent=0 // pred_region
    _
  $region13: #{decoder_forward.1} parent=0 // pred_fallthru
    _
  // Predicated region
  $region14: #{decoder_forward.1} parent=0 // pred_check
    _
  $region15: #{decoder_forward.1} parent=0 // pred_check_branch
    %37 = sbr.rel (0) target = $region17
  $region16: #{decoder_forward.1} parent=0 // pred_region
    _
  $region17: #{decoder_forward.1} parent=0 // pred_fallthru
    _
  // Predicated region
  $region18: #{decoder_forward.1} parent=0 // pred_check
    _
  $region19: #{decoder_forward.1} parent=0 // pred_check_branch
    %39 = sbr.rel (0) target = $region21
  $region20: #{decoder_forward.1} parent=0 // pred_region
    _
  $region21: #{decoder_forward.1} parent=0 // pred_fallthru
    _
  // Predicated region
  $region22: #{decoder_forward.1} parent=0 // pred_check
    _
  $region23: #{decoder_forward.1} parent=0 // pred_check_branch
    %41 = sbr.rel (0) target = $region25
  $region24: #{decoder_forward.1} parent=0 // pred_region
    _
  $region25: #{decoder_forward.1} parent=0 // pred_fallthru
    _
  // Predicated region
  $region26: #{decoder_forward.1} parent=0 // pred_check
    _
  $region27: #{decoder_forward.1} parent=0 // pred_check_branch
    %43 = sbr.rel (0) target = $region29
  $region28: #{decoder_forward.1} parent=0 // pred_region
    _
  $region29: #{decoder_forward.1} parent=0 // pred_fallthru
    _
  // Predicated region
  $region30: #{decoder_forward.1} parent=0 // pred_check
    _
  $region31: #{decoder_forward.1} parent=0 // pred_check_branch
    %45 = sbr.rel (0) target = $region33
  $region32: #{decoder_forward.1} parent=0 // pred_region
    _
  $region33: #{decoder_forward.1} parent=0 // pred_fallthru
    _
  // Predicated region
  $region34: #{decoder_forward.1} parent=0 // pred_check
    _
  $region35: #{decoder_forward.1} parent=0 // pred_check_branch
    %47 = sbr.rel (0) target = $region37
  $region36: #{decoder_forward.1} parent=0 // pred_region
    _
  $region37: #{decoder_forward.1} parent=0 // pred_fallthru
    _
  // Predicated region
  $region38: #{decoder_forward.1} parent=0 // pred_check
    _
  $region39: #{decoder_forward.1} parent=0 // pred_check_branch
    %49 = sbr.rel (0) target = $region41
  $region40: #{decoder_forward.1} parent=0 // pred_region
    _
  $region41: #{decoder_forward.1} parent=0 // pred_fallthru
    _
  // Predicated region
  $region42: #{decoder_forward.1} parent=0 // pred_check
    _
  $region43: #{decoder_forward.1} parent=0 // pred_check_branch
    %51 = sbr.rel (0) target = $region45
  $region44: #{decoder_forward.1} parent=0 // pred_region
    _
  $region45: #{decoder_forward.1} parent=0 // pred_fallthru
    _
  // Predicated region
  $region46: #{decoder_forward.1} parent=0 // pred_check
    _
  $region47: #{decoder_forward.1} parent=0 // pred_check_branch
    %53 = sbr.rel (0) target = $region49
  $region48: #{decoder_forward.1} parent=0 // pred_region
    _
  $region49: #{decoder_forward.1} parent=0 // pred_fallthru
    _
  // Predicated region
  $region50: #{decoder_forward.1} parent=0 // pred_check
    _
  $region51: #{decoder_forward.1} parent=0 // pred_check_branch
    %55 = sbr.rel (0) target = $region53
  $region52: #{decoder_forward.1} parent=0 // pred_region
    _
  $region53: #{decoder_forward.1} parent=0 // pred_fallthru
    _
  // Predicated region
  $region54: #{decoder_forward.1} parent=0 // pred_check
    _
  $region55: #{decoder_forward.1} parent=0 // pred_check_branch
    %57 = sbr.rel (0) target = $region57
  $region56: #{decoder_forward.1} parent=0 // pred_region
    _
  $region57: #{decoder_forward.1} parent=0 // pred_fallthru
    _
  // Predicated region
  $region58: #{decoder_forward.1} parent=0 // pred_check
    _
  $region59: #{decoder_forward.1} parent=0 // pred_check_branch
    %59 = sbr.rel (0) target = $region61
  $region60: #{decoder_forward.1} parent=0 // pred_region
    _
  $region61: #{decoder_forward.1} parent=0 // pred_fallthru
    _
  // Predicated region
  $region62: #{decoder_forward.1} parent=0 // pred_check
    _
  $region63: #{decoder_forward.1} parent=0 // pred_check_branch
    %61 = sbr.rel (0) target = $region65
  $region64: #{decoder_forward.1} parent=0 // pred_region
    _
  $region65: #{decoder_forward.1} parent=0 // pred_fallthru
    _
  // Predicated region
  $region66: #{decoder_forward.1} parent=0 // pred_check
    _
  $region67: #{decoder_forward.1} parent=0 // pred_check_branch
    %63 = sbr.rel (0) target = $region69
  $region68: #{decoder_forward.1} parent=0 // pred_region
    _
  $region69: #{decoder_forward.1} parent=0 // pred_fallthru
    _
  // Predicated region
  $region70: #{decoder_forward.1} parent=0 // pred_check
    _
  $region71: #{decoder_forward.1} parent=0 // pred_check_branch
    %65 = sbr.rel (0) target = $region73
  $region72: #{decoder_forward.1} parent=0 // pred_region
    _
  $region73: #{decoder_forward.1} parent=0 // pred_fallthru
    _
  // Predicated region
  $region74: #{decoder_forward.1} parent=0 // pred_check
    _
  $region75: #{decoder_forward.1} parent=0 // pred_check_branch
    %67 = sbr.rel (0) target = $region77
  $region76: #{decoder_forward.1} parent=0 // pred_region
    _
  $region77: #{decoder_forward.1} parent=0 // pred_fallthru
    _
  // Predicated region
  $region78: #{decoder_forward.1} parent=0 // pred_check
    _
  $region79: #{decoder_forward.1} parent=0 // pred_check_branch
    %69 = sbr.rel (0) target = $region81
  $region80: #{decoder_forward.1} parent=0 // pred_region
    _
  $region81: #{decoder_forward.1} parent=0 // pred_fallthru
    _
  // Predicated region
  $region82: #{decoder_forward.1} parent=0 // pred_check
    _
  $region83: #{decoder_forward.1} parent=0 // pred_check_branch
    %71 = sbr.rel (0) target = $region85
  $region84: #{decoder_forward.1} parent=0 // pred_region
    _
  $region85: #{decoder_forward.1} parent=0 // pred_fallthru
    _
  // Predicated region
  $region86: #{decoder_forward.1} parent=0 // pred_check
    _
  $region87: #{decoder_forward.1} parent=0 // pred_check_branch
    %73 = sbr.rel (0) target = $region89
  $region88: #{decoder_forward.1} parent=0 // pred_region
    _
  $region89: #{decoder_forward.1} parent=0 // pred_fallthru
    _
  // Predicated region
  $region90: #{decoder_forward.1} parent=0 // pred_check
    _
  $region91: #{decoder_forward.1} parent=0 // pred_check_branch
    %75 = sbr.rel (0) target = $region93
  $region92: #{decoder_forward.1} parent=0 // pred_region
    _
  $region93: #{decoder_forward.1} parent=0 // pred_fallthru
    _
  %v76 = vld [vmem:[%s0] sm:$0xff]
  %v77 = vld [vmem:[%s0 + $0x8] sm:$0xff]
  %v78 = vld [vmem:[%s3] sm:$0x1]
  %80 = vset.pattern.permute.xlu0 0
  %81 = vperm.xlu0 %80, %v76
  %v82 = vpop.permute.xlu0 %81
  %85 = vset.pattern.permute.xlu0 0
  %86 = vperm.xlu0 %85, %v77
  %v87 = vpop.permute.xlu0 %86
  %v90 = vperm.slane %v78, 0
  %v92 = vmul.f32 %v82, %v90
  %v93 = vmul.f32 %v87, %v90
  %v94 = vld [vmem:[%s4] sm:$0x1]
  %v96 = vperm.slane %v94, 0
  %v98 = vadd.f32 %v92, %v96
  %v99 = vadd.f32 %v93, %v96
  %v100 = vld [vmem:[%s1] sm:$0xff]
  %v101 = vld [vmem:[%s1 + $0x8] sm:$0xff]
  %v102 = vadd.f32 %v98, %v100
  %v103 = vadd.f32 %v99, %v101
  %v104 = vld [vmem:[%s2] sm:$0xff]
  %v105 = vld [vmem:[%s2 + $0x8] sm:$0xff]
  %v106 = vld [vmem:[%s2 + $0x10] sm:$0xff]
  %v107 = vld [vmem:[%s2 + $0x18] sm:$0xff]
  %v108 = vlaneseq
  %v109 = vshrl.u32 %v108, 7
  %v110 = vlaneseq
  %v111 = vand.u32 %v110, 127
  %vm112 = vcmp.ge.s32.totalorder %v109, %v111
  %v113 = vld [vmem:[%s5] sm:$0xff]
  %v114 = vld [vmem:[%s5 + $0x8] sm:$0xff]
  %v115 = vld [vmem:[%s5 + $0x10] sm:$0xff]
  %v116 = vld [vmem:[%s5 + $0x18] sm:$0xff]
  %v117 = vld [vmem:[%s6] sm:$0x1]
  %v119 = vperm.slane %v117, 0
  %vm121 = vcmask 261120
  %v123 = vsel %vm121, %v102, 0
  %v126 = vsel %vm121, %v103, 0
  %128 = vmatpush.msra.mxu0 0.0
  %129 = vmatpush.msra.mxu0 0.0
  %130 = vmatpush.msra.mxu0 0.0
  %131 = vmatpush.msra.mxu0 0.0
  %132 = vmatpush.msra.mxu0 0.0
  %133 = vmatpush.msra.mxu0 0.0
  %134 = vmatpush.msra.mxu0 0.0
  %135 = vmatpush.msra.mxu0 0.0
  %136 = vmatpush.msra.mxu0 0.0
  %137 = vmatpush.msra.mxu0 0.0
  %138 = vmatpush.msra.mxu0 0.0
  %139 = vmatpush.msra.mxu0 0.0
  %140 = vmatpush.msra.mxu0 %v116
  %141 = vmatpush.msra.mxu0 %v115
  %142 = vmatpush.msra.mxu0 %v114
  %143 = vmatpush.msra.mxu0 %v113
  %144 = vmatmul.f32.gmra.mxu0 %v123
  %v145 = vpop.f32.mrf.mxu0
  %v146 = vadd.f32 %v119, %v145
  %147 = vmatmul.f32.gmra.mxu0 %v126
  %v148 = vpop.f32.mrf.mxu0
  %v149 = vadd.f32 %v119, %v148
  %150 = vdwg.mxu0
  %v151 = vld [vmem:[%s7] sm:$0xff]
  %v152 = vld [vmem:[%s7 + $0x8] sm:$0xff]
  %v153 = vld [vmem:[%s7 + $0x10] sm:$0xff]
  %v154 = vld [vmem:[%s7 + $0x18] sm:$0xff]
  %v155 = vld [vmem:[%s8] sm:$0x1]
  %157 = vrot.lane.b32.xlu0 %v146, 96
  %v158 = vpop.permute.xlu0 %157
  %vm159 = vcmask 64512
  %v160 = vsel %vm159, %v146, 0
  %v162 = vsel %vm159, %v158, 0
  %164 = vmatpush.xpose.msra.mxu0 0.0
  %165 = vmatpush.xpose.msra.mxu0 0.0
  %166 = vmatpush.xpose.msra.mxu0 0.0
  %167 = vmatpush.xpose.msra.mxu0 0.0
  %168 = vmatpush.xpose.msra.mxu0 0.0
  %169 = vmatpush.xpose.msra.mxu0 0.0
  %170 = vmatpush.xpose.msra.mxu0 0.0
  %171 = vmatpush.xpose.msra.mxu0 0.0
  %172 = vmatpush.xpose.msra.mxu0 0.0
  %173 = vmatpush.xpose.msra.mxu0 0.0
  %174 = vmatpush.xpose.msra.mxu0 0.0
  %175 = vmatpush.xpose.msra.mxu0 0.0
  %176 = vmatpush.xpose.msra.mxu0 0.0
  %177 = vmatpush.xpose.msra.mxu0 0.0
  %178 = vmatpush.xpose.msra.mxu0 0.0
  %179 = vmatpush.xpose.msra.mxu0 %v162
  %180 = vmatmul.f32.gmra.mxu0 %v160
  %v181 = vpop.f32.mrf.mxu0
  %v182 = vadd.f32 0.0, %v181
  %183 = vdwg.mxu0
  %v184 = vsel %vm112, %v182, -1e+20
  %v185 = vsel %vm159, %v184, -inf
  %186 = vmax.xlane.f32.xlu0 %v185
  %v187 = vpop.xlane.xlu0 %186
  %v188 = vsub.f32 %v184, %v187
  %v189 = vmul.f32 %v188, 1.442695
  %v190 = vpow.pop %v189
  %v191 = vsel %vm159, %v190, 0.0
  %192 = vadd.xlane.f32.xlu0 %v191
  %v193 = vpop.xlane.xlu0 %192
  %v194 = vrcp.pop %v193
  %v195 = vmul.f32 %v190, %v194
  %196 = vrot.lane.b32.xlu0 %v146, 64
  %v197 = vpop.permute.xlu0 %196
  %v200 = vsel %vm159, %v195, 0
  %202 = vmatpush.msra.mxu0 0.0
  %203 = vmatpush.msra.mxu0 0.0
  %204 = vmatpush.msra.mxu0 0.0
  %205 = vmatpush.msra.mxu0 0.0
  %206 = vmatpush.msra.mxu0 0.0
  %207 = vmatpush.msra.mxu0 0.0
  %208 = vmatpush.msra.mxu0 0.0
  %209 = vmatpush.msra.mxu0 0.0
  %210 = vmatpush.msra.mxu0 0.0
  %211 = vmatpush.msra.mxu0 0.0
  %212 = vmatpush.msra.mxu0 0.0
  %213 = vmatpush.msra.mxu0 0.0
  %214 = vmatpush.msra.mxu0 0.0
  %215 = vmatpush.msra.mxu0 0.0
  %216 = vmatpush.msra.mxu0 0.0
  %217 = vmatpush.msra.mxu0 %v197
  %218 = vmatmul.f32.gmra.mxu0 %v200
  %v219 = vpop.f32.mrf.mxu0
  %v220 = vadd.f32 0.0, %v219
  %221 = vdwg.mxu0
  %222 = vrot.lane.b32.xlu0 %v146, 120
  %v223 = vpop.permute.xlu0 %222
  %224 = vrot.lane.b32.xlu0 %v146, 88
  %v225 = vpop.permute.xlu0 %224
  %v226 = vsel %vm159, %v223, 0
  %v228 = vsel %vm159, %v225, 0
  %230 = vmatpush.xpose.msra.mxu0 0.0
  %231 = vmatpush.xpose.msra.mxu0 0.0
  %232 = vmatpush.xpose.msra.mxu0 0.0
  %233 = vmatpush.xpose.msra.mxu0 0.0
  %234 = vmatpush.xpose.msra.mxu0 0.0
  %235 = vmatpush.xpose.msra.mxu0 0.0
  %236 = vmatpush.xpose.msra.mxu0 0.0
  %237 = vmatpush.xpose.msra.mxu0 0.0
  %238 = vmatpush.xpose.msra.mxu0 0.0
  %239 = vmatpush.xpose.msra.mxu0 0.0
  %240 = vmatpush.xpose.msra.mxu0 0.0
  %241 = vmatpush.xpose.msra.mxu0 0.0
  %242 = vmatpush.xpose.msra.mxu0 0.0
  %243 = vmatpush.xpose.msra.mxu0 0.0
  %244 = vmatpush.xpose.msra.mxu0 0.0
  %245 = vmatpush.xpose.msra.mxu0 %v228
  %246 = vmatmul.f32.gmra.mxu0 %v226
  %v247 = vpop.f32.mrf.mxu0
  %v248 = vadd.f32 0.0, %v247
  %249 = vdwg.mxu0
  %v250 = vsel %vm112, %v248, -1e+20
  %v251 = vsel %vm159, %v250, -inf
  %252 = vmax.xlane.f32.xlu0 %v251
  %v253 = vpop.xlane.xlu0 %252
  %v254 = vsub.f32 %v250, %v253
  %v255 = vmul.f32 %v254, 1.442695
  %v256 = vpow.pop %v255
  %v257 = vsel %vm159, %v256, 0.0
  %258 = vadd.xlane.f32.xlu0 %v257
  %v259 = vpop.xlane.xlu0 %258
  %v260 = vrcp.pop %v259
  %v261 = vmul.f32 %v256, %v260
  %262 = vrot.lane.b32.xlu0 %v146, 56
  %v263 = vpop.permute.xlu0 %262
  %v266 = vsel %vm159, %v261, 0
  %268 = vmatpush.msra.mxu0 0.0
  %269 = vmatpush.msra.mxu0 0.0
  %270 = vmatpush.msra.mxu0 0.0
  %271 = vmatpush.msra.mxu0 0.0
  %272 = vmatpush.msra.mxu0 0.0
  %273 = vmatpush.msra.mxu0 0.0
  %274 = vmatpush.msra.mxu0 0.0
  %275 = vmatpush.msra.mxu0 0.0
  %276 = vmatpush.msra.mxu0 0.0
  %277 = vmatpush.msra.mxu0 0.0
  %278 = vmatpush.msra.mxu0 0.0
  %279 = vmatpush.msra.mxu0 0.0
  %280 = vmatpush.msra.mxu0 0.0
  %281 = vmatpush.msra.mxu0 0.0
  %282 = vmatpush.msra.mxu0 0.0
  %283 = vmatpush.msra.mxu0 %v263
  %284 = vmatmul.f32.gmra.mxu0 %v266
  %v285 = vpop.f32.mrf.mxu0
  %v286 = vadd.f32 0.0, %v285
  %287 = vdwg.mxu0
  %v289 = vsel %vm159, %v286, 0
  %291 = vmatpush.msra.mxu0 0.0
  %292 = vmatpush.msra.mxu0 0.0
  %293 = vmatpush.msra.mxu0 0.0
  %294 = vmatpush.msra.mxu0 0.0
  %295 = vmatpush.msra.mxu0 0.0
  %296 = vmatpush.msra.mxu0 0.0
  %297 = vmatpush.msra.mxu0 0.0
  %298 = vmatpush.msra.mxu0 0.0
  %299 = vmatpush.msra.mxu0 0.0
  %300 = vmatpush.msra.mxu0 0.0
  %301 = vmatpush.msra.mxu0 0.0
  %302 = vmatpush.msra.mxu0 0.0
  %303 = vmatpush.msra.mxu0 0.0
  %304 = vmatpush.msra.mxu0 0.0
  %305 = vmatpush.msra.mxu0 0.0
  %306 = vmatpush.msra.mxu0 %v152
  %307 = vmatmul.f32.gmra.mxu0 %v289
  %v308 = vpop.f32.mrf.mxu0
  %v309 = vadd.f32 0.0, %v308
  %310 = vdwg.mxu0
  %v312 = vsel %vm159, %v220, 0
  %314 = vmatpush.msra.mxu0 0.0
  %315 = vmatpush.msra.mxu0 0.0
  %316 = vmatpush.msra.mxu0 0.0
  %317 = vmatpush.msra.mxu0 0.0
  %318 = vmatpush.msra.mxu0 0.0
  %319 = vmatpush.msra.mxu0 0.0
  %320 = vmatpush.msra.mxu0 0.0
  %321 = vmatpush.msra.mxu0 0.0
  %322 = vmatpush.msra.mxu0 0.0
  %323 = vmatpush.msra.mxu0 0.0
  %324 = vmatpush.msra.mxu0 0.0
  %325 = vmatpush.msra.mxu0 0.0
  %326 = vmatpush.msra.mxu0 0.0
  %327 = vmatpush.msra.mxu0 0.0
  %328 = vmatpush.msra.mxu0 0.0
  %329 = vmatpush.msra.mxu0 %v151
  %330 = vmatmul.f32.gmra.mxu0 %v312
  %v331 = vpop.f32.mrf.mxu0
  %v332 = vadd.f32 %v309, %v331
  %333 = vdwg.mxu0
  %334 = vrot.lane.b32.xlu0 %v146, 112
  %v335 = vpop.permute.xlu0 %334
  %336 = vrot.lane.b32.xlu0 %v146, 80
  %v337 = vpop.permute.xlu0 %336
  %v338 = vsel %vm159, %v335, 0
  %v340 = vsel %vm159, %v337, 0
  %342 = vmatpush.xpose.msra.mxu0 0.0
  %343 = vmatpush.xpose.msra.mxu0 0.0
  %344 = vmatpush.xpose.msra.mxu0 0.0
  %345 = vmatpush.xpose.msra.mxu0 0.0
  %346 = vmatpush.xpose.msra.mxu0 0.0
  %347 = vmatpush.xpose.msra.mxu0 0.0
  %348 = vmatpush.xpose.msra.mxu0 0.0
  %349 = vmatpush.xpose.msra.mxu0 0.0
  %350 = vmatpush.xpose.msra.mxu0 0.0
  %351 = vmatpush.xpose.msra.mxu0 0.0
  %352 = vmatpush.xpose.msra.mxu0 0.0
  %353 = vmatpush.xpose.msra.mxu0 0.0
  %354 = vmatpush.xpose.msra.mxu0 0.0
  %355 = vmatpush.xpose.msra.mxu0 0.0
  %356 = vmatpush.xpose.msra.mxu0 0.0
  %357 = vmatpush.xpose.msra.mxu0 %v340
  %358 = vmatmul.f32.gmra.mxu0 %v338
  %v359 = vpop.f32.mrf.mxu0
  %v360 = vadd.f32 0.0, %v359
  %361 = vdwg.mxu0
  %v362 = vsel %vm112, %v360, -1e+20
  %v363 = vsel %vm159, %v362, -inf
  %364 = vmax.xlane.f32.xlu0 %v363
  %v365 = vpop.xlane.xlu0 %364
  %v366 = vsub.f32 %v362, %v365
  %v367 = vmul.f32 %v366, 1.442695
  %v368 = vpow.pop %v367
  %v369 = vsel %vm159, %v368, 0.0
  %370 = vadd.xlane.f32.xlu0 %v369
  %v371 = vpop.xlane.xlu0 %370
  %v372 = vrcp.pop %v371
  %v373 = vmul.f32 %v368, %v372
  %374 = vrot.lane.b32.xlu0 %v146, 48
  %v375 = vpop.permute.xlu0 %374
  %v378 = vsel %vm159, %v373, 0
  %380 = vmatpush.msra.mxu0 0.0
  %381 = vmatpush.msra.mxu0 0.0
  %382 = vmatpush.msra.mxu0 0.0
  %383 = vmatpush.msra.mxu0 0.0
  %384 = vmatpush.msra.mxu0 0.0
  %385 = vmatpush.msra.mxu0 0.0
  %386 = vmatpush.msra.mxu0 0.0
  %387 = vmatpush.msra.mxu0 0.0
  %388 = vmatpush.msra.mxu0 0.0
  %389 = vmatpush.msra.mxu0 0.0
  %390 = vmatpush.msra.mxu0 0.0
  %391 = vmatpush.msra.mxu0 0.0
  %392 = vmatpush.msra.mxu0 0.0
  %393 = vmatpush.msra.mxu0 0.0
  %394 = vmatpush.msra.mxu0 0.0
  %395 = vmatpush.msra.mxu0 %v375
  %396 = vmatmul.f32.gmra.mxu0 %v378
  %v397 = vpop.f32.mrf.mxu0
  %v398 = vadd.f32 0.0, %v397
  %399 = vdwg.mxu0
  %v401 = vsel %vm159, %v398, 0
  %403 = vmatpush.msra.mxu0 0.0
  %404 = vmatpush.msra.mxu0 0.0
  %405 = vmatpush.msra.mxu0 0.0
  %406 = vmatpush.msra.mxu0 0.0
  %407 = vmatpush.msra.mxu0 0.0
  %408 = vmatpush.msra.mxu0 0.0
  %409 = vmatpush.msra.mxu0 0.0
  %410 = vmatpush.msra.mxu0 0.0
  %411 = vmatpush.msra.mxu0 0.0
  %412 = vmatpush.msra.mxu0 0.0
  %413 = vmatpush.msra.mxu0 0.0
  %414 = vmatpush.msra.mxu0 0.0
  %415 = vmatpush.msra.mxu0 0.0
  %416 = vmatpush.msra.mxu0 0.0
  %417 = vmatpush.msra.mxu0 0.0
  %418 = vmatpush.msra.mxu0 %v153
  %419 = vmatmul.f32.gmra.mxu0 %v401
  %v420 = vpop.f32.mrf.mxu0
  %v421 = vadd.f32 0.0, %v420
  %422 = vdwg.mxu0
  %v423 = vadd.f32 %v332, %v421
  %424 = vrot.lane.b32.xlu0 %v146, 104
  %v425 = vpop.permute.xlu0 %424
  %426 = vrot.lane.b32.xlu0 %v146, 72
  %v427 = vpop.permute.xlu0 %426
  %v428 = vsel %vm159, %v425, 0
  %v430 = vsel %vm159, %v427, 0
  %432 = vmatpush.xpose.msra.mxu0 0.0
  %433 = vmatpush.xpose.msra.mxu0 0.0
  %434 = vmatpush.xpose.msra.mxu0 0.0
  %435 = vmatpush.xpose.msra.mxu0 0.0
  %436 = vmatpush.xpose.msra.mxu0 0.0
  %437 = vmatpush.xpose.msra.mxu0 0.0
  %438 = vmatpush.xpose.msra.mxu0 0.0
  %439 = vmatpush.xpose.msra.mxu0 0.0
  %440 = vmatpush.xpose.msra.mxu0 0.0
  %441 = vmatpush.xpose.msra.mxu0 0.0
  %442 = vmatpush.xpose.msra.mxu0 0.0
  %443 = vmatpush.xpose.msra.mxu0 0.0
  %444 = vmatpush.xpose.msra.mxu0 0.0
  %445 = vmatpush.xpose.msra.mxu0 0.0
  %446 = vmatpush.xpose.msra.mxu0 0.0
  %447 = vmatpush.xpose.msra.mxu0 %v430
  %448 = vmatmul.f32.gmra.mxu0 %v428
  %v449 = vpop.f32.mrf.mxu0
  %v450 = vadd.f32 0.0, %v449
  %451 = vdwg.mxu0
  %v452 = vsel %vm112, %v450, -1e+20
  %v453 = vsel %vm159, %v452, -inf
  %454 = vmax.xlane.f32.xlu0 %v453
  %v455 = vpop.xlane.xlu0 %454
  %v456 = vsub.f32 %v452, %v455
  %v457 = vmul.f32 %v456, 1.442695
  %v458 = vpow.pop %v457
  %v459 = vsel %vm159, %v458, 0.0
  %460 = vadd.xlane.f32.xlu0 %v459
  %v461 = vpop.xlane.xlu0 %460
  %v462 = vrcp.pop %v461
  %v463 = vmul.f32 %v458, %v462
  %464 = vrot.lane.b32.xlu0 %v146, 40
  %v465 = vpop.permute.xlu0 %464
  %v468 = vsel %vm159, %v463, 0
  %470 = vmatpush.msra.mxu0 0.0
  %471 = vmatpush.msra.mxu0 0.0
  %472 = vmatpush.msra.mxu0 0.0
  %473 = vmatpush.msra.mxu0 0.0
  %474 = vmatpush.msra.mxu0 0.0
  %475 = vmatpush.msra.mxu0 0.0
  %476 = vmatpush.msra.mxu0 0.0
  %477 = vmatpush.msra.mxu0 0.0
  %478 = vmatpush.msra.mxu0 0.0
  %479 = vmatpush.msra.mxu0 0.0
  %480 = vmatpush.msra.mxu0 0.0
  %481 = vmatpush.msra.mxu0 0.0
  %482 = vmatpush.msra.mxu0 0.0
  %483 = vmatpush.msra.mxu0 0.0
  %484 = vmatpush.msra.mxu0 0.0
  %485 = vmatpush.msra.mxu0 %v465
  %486 = vmatmul.f32.gmra.mxu0 %v468
  %v487 = vpop.f32.mrf.mxu0
  %v488 = vadd.f32 0.0, %v487
  %489 = vdwg.mxu0
  %v491 = vsel %vm159, %v488, 0
  %493 = vmatpush.msra.mxu0 0.0
  %494 = vmatpush.msra.mxu0 0.0
  %495 = vmatpush.msra.mxu0 0.0
  %496 = vmatpush.msra.mxu0 0.0
  %497 = vmatpush.msra.mxu0 0.0
  %498 = vmatpush.msra.mxu0 0.0
  %499 = vmatpush.msra.mxu0 0.0
  %500 = vmatpush.msra.mxu0 0.0
  %501 = vmatpush.msra.mxu0 0.0
  %502 = vmatpush.msra.mxu0 0.0
  %503 = vmatpush.msra.mxu0 0.0
  %504 = vmatpush.msra.mxu0 0.0
  %505 = vmatpush.msra.mxu0 0.0
  %506 = vmatpush.msra.mxu0 0.0
  %507 = vmatpush.msra.mxu0 0.0
  %508 = vmatpush.msra.mxu0 %v154
  %509 = vmatmul.f32.gmra.mxu0 %v491
  %v510 = vpop.f32.mrf.mxu0
  %v511 = vadd.f32 0.0, %v510
  %512 = vdwg.mxu0
  %v513 = vadd.f32 %v423, %v511
  %515 = vrot.lane.b32.xlu0 %v149, 96
  %v516 = vpop.permute.xlu0 %515
  %v517 = vsel %vm159, %v149, 0
  %v519 = vsel %vm159, %v516, 0
  %521 = vmatpush.xpose.msra.mxu0 0.0
  %522 = vmatpush.xpose.msra.mxu0 0.0
  %523 = vmatpush.xpose.msra.mxu0 0.0
  %524 = vmatpush.xpose.msra.mxu0 0.0
  %525 = vmatpush.xpose.msra.mxu0 0.0
  %526 = vmatpush.xpose.msra.mxu0 0.0
  %527 = vmatpush.xpose.msra.mxu0 0.0
  %528 = vmatpush.xpose.msra.mxu0 0.0
  %529 = vmatpush.xpose.msra.mxu0 0.0
  %530 = vmatpush.xpose.msra.mxu0 0.0
  %531 = vmatpush.xpose.msra.mxu0 0.0
  %532 = vmatpush.xpose.msra.mxu0 0.0
  %533 = vmatpush.xpose.msra.mxu0 0.0
  %534 = vmatpush.xpose.msra.mxu0 0.0
  %535 = vmatpush.xpose.msra.mxu0 0.0
  %536 = vmatpush.xpose.msra.mxu0 %v519
  %537 = vmatmul.f32.gmra.mxu0 %v517
  %v538 = vpop.f32.mrf.mxu0
  %v539 = vadd.f32 0.0, %v538
  %540 = vdwg.mxu0
  %v541 = vsel %vm112, %v539, -1e+20
  %v542 = vsel %vm159, %v541, -inf
  %543 = vmax.xlane.f32.xlu0 %v542
  %v544 = vpop.xlane.xlu0 %543
  %v545 = vsub.f32 %v541, %v544
  %v546 = vmul.f32 %v545, 1.442695
  %v547 = vpow.pop %v546
  %v548 = vsel %vm159, %v547, 0.0
  %549 = vadd.xlane.f32.xlu0 %v548
  %v550 = vpop.xlane.xlu0 %549
  %v551 = vrcp.pop %v550
  %v552 = vmul.f32 %v547, %v551
  %553 = vrot.lane.b32.xlu0 %v149, 64
  %v554 = vpop.permute.xlu0 %553
  %v557 = vsel %vm159, %v552, 0
  %559 = vmatpush.msra.mxu0 0.0
  %560 = vmatpush.msra.mxu0 0.0
  %561 = vmatpush.msra.mxu0 0.0
  %562 = vmatpush.msra.mxu0 0.0
  %563 = vmatpush.msra.mxu0 0.0
  %564 = vmatpush.msra.mxu0 0.0
  %565 = vmatpush.msra.mxu0 0.0
  %566 = vmatpush.msra.mxu0 0.0
  %567 = vmatpush.msra.mxu0 0.0
  %568 = vmatpush.msra.mxu0 0.0
  %569 = vmatpush.msra.mxu0 0.0
  %570 = vmatpush.msra.mxu0 0.0
  %571 = vmatpush.msra.mxu0 0.0
  %572 = vmatpush.msra.mxu0 0.0
  %573 = vmatpush.msra.mxu0 0.0
  %574 = vmatpush.msra.mxu0 %v554
  %575 = vmatmul.f32.gmra.mxu0 %v557
  %v576 = vpop.f32.mrf.mxu0
  %v577 = vadd.f32 0.0, %v576
  %578 = vdwg.mxu0
  %579 = vrot.lane.b32.xlu0 %v149, 120
  %v580 = vpop.permute.xlu0 %579
  %581 = vrot.lane.b32.xlu0 %v149, 88
  %v582 = vpop.permute.xlu0 %581
  %v583 = vsel %vm159, %v580, 0
  %v585 = vsel %vm159, %v582, 0
  %587 = vmatpush.xpose.msra.mxu0 0.0
  %588 = vmatpush.xpose.msra.mxu0 0.0
  %589 = vmatpush.xpose.msra.mxu0 0.0
  %590 = vmatpush.xpose.msra.mxu0 0.0
  %591 = vmatpush.xpose.msra.mxu0 0.0
  %592 = vmatpush.xpose.msra.mxu0 0.0
  %593 = vmatpush.xpose.msra.mxu0 0.0
  %594 = vmatpush.xpose.msra.mxu0 0.0
  %595 = vmatpush.xpose.msra.mxu0 0.0
  %596 = vmatpush.xpose.msra.mxu0 0.0
  %597 = vmatpush.xpose.msra.mxu0 0.0
  %598 = vmatpush.xpose.msra.mxu0 0.0
  %599 = vmatpush.xpose.msra.mxu0 0.0
  %600 = vmatpush.xpose.msra.mxu0 0.0
  %601 = vmatpush.xpose.msra.mxu0 0.0
  %602 = vmatpush.xpose.msra.mxu0 %v585
  %603 = vmatmul.f32.gmra.mxu0 %v583
  %v604 = vpop.f32.mrf.mxu0
  %v605 = vadd.f32 0.0, %v604
  %606 = vdwg.mxu0
  %v607 = vsel %vm112, %v605, -1e+20
  %v608 = vsel %vm159, %v607, -inf
  %609 = vmax.xlane.f32.xlu0 %v608
  %v610 = vpop.xlane.xlu0 %609
  %v611 = vsub.f32 %v607, %v610
  %v612 = vmul.f32 %v611, 1.442695
  %v613 = vpow.pop %v612
  %v614 = vsel %vm159, %v613, 0.0
  %615 = vadd.xlane.f32.xlu0 %v614
  %v616 = vpop.xlane.xlu0 %615
  %v617 = vrcp.pop %v616
  %v618 = vmul.f32 %v613, %v617
  %619 = vrot.lane.b32.xlu0 %v149, 56
  %v620 = vpop.permute.xlu0 %619
  %v623 = vsel %vm159, %v618, 0
  %625 = vmatpush.msra.mxu0 0.0
  %626 = vmatpush.msra.mxu0 0.0
  %627 = vmatpush.msra.mxu0 0.0
  %628 = vmatpush.msra.mxu0 0.0
  %629 = vmatpush.msra.mxu0 0.0
  %630 = vmatpush.msra.mxu0 0.0
  %631 = vmatpush.msra.mxu0 0.0
  %632 = vmatpush.msra.mxu0 0.0
  %633 = vmatpush.msra.mxu0 0.0
  %634 = vmatpush.msra.mxu0 0.0
  %635 = vmatpush.msra.mxu0 0.0
  %636 = vmatpush.msra.mxu0 0.0
  %637 = vmatpush.msra.mxu0 0.0
  %638 = vmatpush.msra.mxu0 0.0
  %639 = vmatpush.msra.mxu0 0.0
  %640 = vmatpush.msra.mxu0 %v620
  %641 = vmatmul.f32.gmra.mxu0 %v623
  %v642 = vpop.f32.mrf.mxu0
  %v643 = vadd.f32 0.0, %v642
  %644 = vdwg.mxu0
  %v646 = vsel %vm159, %v643, 0
  %648 = vmatpush.msra.mxu0 0.0
  %649 = vmatpush.msra.mxu0 0.0
  %650 = vmatpush.msra.mxu0 0.0
  %651 = vmatpush.msra.mxu0 0.0
  %652 = vmatpush.msra.mxu0 0.0
  %653 = vmatpush.msra.mxu0 0.0
  %654 = vmatpush.msra.mxu0 0.0
  %655 = vmatpush.msra.mxu0 0.0
  %656 = vmatpush.msra.mxu0 0.0
  %657 = vmatpush.msra.mxu0 0.0
  %658 = vmatpush.msra.mxu0 0.0
  %659 = vmatpush.msra.mxu0 0.0
  %660 = vmatpush.msra.mxu0 0.0
  %661 = vmatpush.msra.mxu0 0.0
  %662 = vmatpush.msra.mxu0 0.0
  %663 = vmatpush.msra.mxu0 %v152
  %664 = vmatmul.f32.gmra.mxu0 %v646
  %v665 = vpop.f32.mrf.mxu0
  %v666 = vadd.f32 0.0, %v665
  %667 = vdwg.mxu0
  %v669 = vsel %vm159, %v577, 0
  %671 = vmatpush.msra.mxu0 0.0
  %672 = vmatpush.msra.mxu0 0.0
  %673 = vmatpush.msra.mxu0 0.0
  %674 = vmatpush.msra.mxu0 0.0
  %675 = vmatpush.msra.mxu0 0.0
  %676 = vmatpush.msra.mxu0 0.0
  %677 = vmatpush.msra.mxu0 0.0
  %678 = vmatpush.msra.mxu0 0.0
  %679 = vmatpush.msra.mxu0 0.0
  %680 = vmatpush.msra.mxu0 0.0
  %681 = vmatpush.msra.mxu0 0.0
  %682 = vmatpush.msra.mxu0 0.0
  %683 = vmatpush.msra.mxu0 0.0
  %684 = vmatpush.msra.mxu0 0.0
  %685 = vmatpush.msra.mxu0 0.0
  %686 = vmatpush.msra.mxu0 %v151
  %687 = vmatmul.f32.gmra.mxu0 %v669
  %v688 = vpop.f32.mrf.mxu0
  %v689 = vadd.f32 %v666, %v688
  %690 = vdwg.mxu0
  %691 = vrot.lane.b32.xlu0 %v149, 112
  %v692 = vpop.permute.xlu0 %691
  %693 = vrot.lane.b32.xlu0 %v149, 80
  %v694 = vpop.permute.xlu0 %693
  %v695 = vsel %vm159, %v692, 0
  %v697 = vsel %vm159, %v694, 0
  %699 = vmatpush.xpose.msra.mxu0 0.0
  %700 = vmatpush.xpose.msra.mxu0 0.0
  %701 = vmatpush.xpose.msra.mxu0 0.0
  %702 = vmatpush.xpose.msra.mxu0 0.0
  %703 = vmatpush.xpose.msra.mxu0 0.0
  %704 = vmatpush.xpose.msra.mxu0 0.0
  %705 = vmatpush.xpose.msra.mxu0 0.0
  %706 = vmatpush.xpose.msra.mxu0 0.0
  %707 = vmatpush.xpose.msra.mxu0 0.0
  %708 = vmatpush.xpose.msra.mxu0 0.0
  %709 = vmatpush.xpose.msra.mxu0 0.0
  %710 = vmatpush.xpose.msra.mxu0 0.0
  %711 = vmatpush.xpose.msra.mxu0 0.0
  %712 = vmatpush.xpose.msra.mxu0 0.0
  %713 = vmatpush.xpose.msra.mxu0 0.0
  %714 = vmatpush.xpose.msra.mxu0 %v697
  %715 = vmatmul.f32.gmra.mxu0 %v695
  %v716 = vpop.f32.mrf.mxu0
  %v717 = vadd.f32 0.0, %v716
  %718 = vdwg.mxu0
  %v719 = vsel %vm112, %v717, -1e+20
  %v720 = vsel %vm159, %v719, -inf
  %721 = vmax.xlane.f32.xlu0 %v720
  %v722 = vpop.xlane.xlu0 %721
  %v723 = vsub.f32 %v719, %v722
  %v724 = vmul.f32 %v723, 1.442695
  %v725 = vpow.pop %v724
  %v726 = vsel %vm159, %v725, 0.0
  %727 = vadd.xlane.f32.xlu0 %v726
  %v728 = vpop.xlane.xlu0 %727
  %v729 = vrcp.pop %v728
  %v730 = vmul.f32 %v725, %v729
  %731 = vrot.lane.b32.xlu0 %v149, 48
  %v732 = vpop.permute.xlu0 %731
  %v735 = vsel %vm159, %v730, 0
  %737 = vmatpush.msra.mxu0 0.0
  %738 = vmatpush.msra.mxu0 0.0
  %739 = vmatpush.msra.mxu0 0.0
  %740 = vmatpush.msra.mxu0 0.0
  %741 = vmatpush.msra.mxu0 0.0
  %742 = vmatpush.msra.mxu0 0.0
  %743 = vmatpush.msra.mxu0 0.0
  %744 = vmatpush.msra.mxu0 0.0
  %745 = vmatpush.msra.mxu0 0.0
  %746 = vmatpush.msra.mxu0 0.0
  %747 = vmatpush.msra.mxu0 0.0
  %748 = vmatpush.msra.mxu0 0.0
  %749 = vmatpush.msra.mxu0 0.0
  %750 = vmatpush.msra.mxu0 0.0
  %751 = vmatpush.msra.mxu0 0.0
  %752 = vmatpush.msra.mxu0 %v732
  %753 = vmatmul.f32.gmra.mxu0 %v735
  %v754 = vpop.f32.mrf.mxu0
  %v755 = vadd.f32 0.0, %v754
  %756 = vdwg.mxu0
  %v758 = vsel %vm159, %v755, 0
  %760 = vmatpush.msra.mxu0 0.0
  %761 = vmatpush.msra.mxu0 0.0
  %762 = vmatpush.msra.mxu0 0.0
  %763 = vmatpush.msra.mxu0 0.0
  %764 = vmatpush.msra.mxu0 0.0
  %765 = vmatpush.msra.mxu0 0.0
  %766 = vmatpush.msra.mxu0 0.0
  %767 = vmatpush.msra.mxu0 0.0
  %768 = vmatpush.msra.mxu0 0.0
  %769 = vmatpush.msra.mxu0 0.0
  %770 = vmatpush.msra.mxu0 0.0
  %771 = vmatpush.msra.mxu0 0.0
  %772 = vmatpush.msra.mxu0 0.0
  %773 = vmatpush.msra.mxu0 0.0
  %774 = vmatpush.msra.mxu0 0.0
  %775 = vmatpush.msra.mxu0 %v153
  %776 = vmatmul.f32.gmra.mxu0 %v758
  %v777 = vpop.f32.mrf.mxu0
  %v778 = vadd.f32 0.0, %v777
  %779 = vdwg.mxu0
  %v780 = vadd.f32 %v689, %v778
  %781 = vrot.lane.b32.xlu0 %v149, 104
  %v782 = vpop.permute.xlu0 %781
  %783 = vrot.lane.b32.xlu0 %v149, 72
  %v784 = vpop.permute.xlu0 %783
  %v785 = vsel %vm159, %v782, 0
  %v787 = vsel %vm159, %v784, 0
  %789 = vmatpush.xpose.msra.mxu0 0.0
  %790 = vmatpush.xpose.msra.mxu0 0.0
  %791 = vmatpush.xpose.msra.mxu0 0.0
  %792 = vmatpush.xpose.msra.mxu0 0.0
  %793 = vmatpush.xpose.msra.mxu0 0.0
  %794 = vmatpush.xpose.msra.mxu0 0.0
  %795 = vmatpush.xpose.msra.mxu0 0.0
  %796 = vmatpush.xpose.msra.mxu0 0.0
  %797 = vmatpush.xpose.msra.mxu0 0.0
  %798 = vmatpush.xpose.msra.mxu0 0.0
  %799 = vmatpush.xpose.msra.mxu0 0.0
  %800 = vmatpush.xpose.msra.mxu0 0.0
  %801 = vmatpush.xpose.msra.mxu0 0.0
  %802 = vmatpush.xpose.msra.mxu0 0.0
  %803 = vmatpush.xpose.msra.mxu0 0.0
  %804 = vmatpush.xpose.msra.mxu0 %v787
  %805 = vmatmul.f32.gmra.mxu0 %v785
  %v806 = vpop.f32.mrf.mxu0
  %v807 = vadd.f32 0.0, %v806
  %808 = vdwg.mxu0
  %v809 = vsel %vm112, %v807, -1e+20
  %v810 = vsel %vm159, %v809, -inf
  %811 = vmax.xlane.f32.xlu0 %v810
  %v812 = vpop.xlane.xlu0 %811
  %v813 = vsub.f32 %v809, %v812
  %v814 = vmul.f32 %v813, 1.442695
  %v815 = vpow.pop %v814
  %v816 = vsel %vm159, %v815, 0.0
  %817 = vadd.xlane.f32.xlu0 %v816
  %v818 = vpop.xlane.xlu0 %817
  %v819 = vrcp.pop %v818
  %v820 = vmul.f32 %v815, %v819
  %821 = vrot.lane.b32.xlu0 %v149, 40
  %v822 = vpop.permute.xlu0 %821
  %v825 = vsel %vm159, %v820, 0
  %827 = vmatpush.msra.mxu0 0.0
  %828 = vmatpush.msra.mxu0 0.0
  %829 = vmatpush.msra.mxu0 0.0
  %830 = vmatpush.msra.mxu0 0.0
  %831 = vmatpush.msra.mxu0 0.0
  %832 = vmatpush.msra.mxu0 0.0
  %833 = vmatpush.msra.mxu0 0.0
  %834 = vmatpush.msra.mxu0 0.0
  %835 = vmatpush.msra.mxu0 0.0
  %836 = vmatpush.msra.mxu0 0.0
  %837 = vmatpush.msra.mxu0 0.0
  %838 = vmatpush.msra.mxu0 0.0
  %839 = vmatpush.msra.mxu0 0.0
  %840 = vmatpush.msra.mxu0 0.0
  %841 = vmatpush.msra.mxu0 0.0
  %842 = vmatpush.msra.mxu0 %v822
  %843 = vmatmul.f32.gmra.mxu0 %v825
  %v844 = vpop.f32.mrf.mxu0
  %v845 = vadd.f32 0.0, %v844
  %846 = vdwg.mxu0
  %v848 = vsel %vm159, %v845, 0
  %850 = vmatpush.msra.mxu0 0.0
  %851 = vmatpush.msra.mxu0 0.0
  %852 = vmatpush.msra.mxu0 0.0
  %853 = vmatpush.msra.mxu0 0.0
  %854 = vmatpush.msra.mxu0 0.0
  %855 = vmatpush.msra.mxu0 0.0
  %856 = vmatpush.msra.mxu0 0.0
  %857 = vmatpush.msra.mxu0 0.0
  %858 = vmatpush.msra.mxu0 0.0
  %859 = vmatpush.msra.mxu0 0.0
  %860 = vmatpush.msra.mxu0 0.0
  %861 = vmatpush.msra.mxu0 0.0
  %862 = vmatpush.msra.mxu0 0.0
  %863 = vmatpush.msra.mxu0 0.0
  %864 = vmatpush.msra.mxu0 0.0
  %865 = vmatpush.msra.mxu0 %v154
  %866 = vmatmul.f32.gmra.mxu0 %v848
  %v867 = vpop.f32.mrf.mxu0
  %v868 = vadd.f32 0.0, %v867
  %869 = vdwg.mxu0
  %v870 = vadd.f32 %v780, %v868
  %v872 = vperm.slane %v155, 0
  %v874 = vadd.f32 %v513, %v872
  %v875 = vadd.f32 %v870, %v872
  %v876 = vadd.f32 %v874, %v102
  %v877 = vadd.f32 %v875, %v103
  %v878 = vld [vmem:[%s15] sm:$0x1]
  %v879 = vld [vmem:[%s16] sm:$0x1]
  %v880 = vsel %vm121, %v876, 0.0
  %881 = vadd.xlane.f32.xlu0 %v880
  %v882 = vpop.xlane.xlu0 %881
  %v883 = vsel %vm121, %v877, 0.0
  %884 = vadd.xlane.f32.xlu0 %v883
  %v885 = vpop.xlane.xlu0 %884
  %v886 = vrcp.pop 32.0
  %v887 = vmul.f32 32.0, %v886
  %v888 = vsub.f32 1.0, %v887
  %v889 = vmul.f32 %v886, %v888
  %v890 = vadd.f32 %v886, %v889
  %vm891 = vweird.f32 %v886
  %v892 = vsel %vm891, %v886, %v890
  %v893 = vmul.f32 %v882, %v892
  %v894 = vmul.f32 %v885, %v892
  %v895 = vsub.f32 %v876, %v893
  %v896 = vsub.f32 %v877, %v894
  %v897 = vmul.f32 %v895, %v895
  %v898 = vmul.f32 %v896, %v896
  %v899 = vsel %vm121, %v897, 0.0
  %900 = vadd.xlane.f32.xlu0 %v899
  %v901 = vpop.xlane.xlu0 %900
  %v902 = vsel %vm121, %v898, 0.0
  %903 = vadd.xlane.f32.xlu0 %v902
  %v904 = vpop.xlane.xlu0 %903
  %v905 = vmul.f32 %v901, %v892
  %v906 = vmul.f32 %v904, %v892
  %v907 = vadd.f32 %v905, 1e-05
  %v908 = vadd.f32 %v906, 1e-05
  %v909 = vrsqrt.pop %v907
  %v910 = vmul.f32 %v909, %v907
  %v911 = vmul.f32 %v910, %v909
  %v912 = vmul.f32 0.5, %v911
  %v913 = vsub.f32 1.5, %v912
  %v914 = vmul.f32 %v909, %v913
  %vm915 = vweird.f32 %v907
  %vm916 = vweird.f32 %v909
  %vm917 = vmor %vm915, %vm916
  %v918 = vsel %vm917, %v909, %v914
  %v919 = vrsqrt.pop %v908
  %v920 = vmul.f32 %v919, %v908
  %v921 = vmul.f32 %v920, %v919
  %v922 = vmul.f32 0.5, %v921
  %v923 = vsub.f32 1.5, %v922
  %v924 = vmul.f32 %v919, %v923
  %vm925 = vweird.f32 %v908
  %vm926 = vweird.f32 %v919
  %vm927 = vmor %vm925, %vm926
  %v928 = vsel %vm927, %v919, %v924
  %v929 = vmul.f32 %v895, %v918
  %v930 = vmul.f32 %v896, %v928
  %v932 = vperm.slane %v878, 0
  %v934 = vmul.f32 %v929, %v932
  %v935 = vmul.f32 %v930, %v932
  %v937 = vperm.slane %v879, 0
  %v939 = vadd.f32 %v934, %v937
  %v940 = vadd.f32 %v935, %v937
  %v941 = vld [vmem:[%s9] sm:$0xff]
  %v942 = vld [vmem:[%s9 + $0x8] sm:$0xff]
  %v943 = vld [vmem:[%s9 + $0x10] sm:$0xff]
  %v944 = vld [vmem:[%s9 + $0x18] sm:$0xff]
  %v945 = vld [vmem:[%s10] sm:$0x1]
  %v947 = vperm.slane %v945, 0
  %v950 = vsel %vm121, %v939, 0
  %v953 = vsel %vm121, %v940, 0
  %955 = vmatpush.msra.mxu0 0.0
  %956 = vmatpush.msra.mxu0 0.0
  %957 = vmatpush.msra.mxu0 0.0
  %958 = vmatpush.msra.mxu0 0.0
  %959 = vmatpush.msra.mxu0 0.0
  %960 = vmatpush.msra.mxu0 0.0
  %961 = vmatpush.msra.mxu0 0.0
  %962 = vmatpush.msra.mxu0 0.0
  %963 = vmatpush.msra.mxu0 0.0
  %964 = vmatpush.msra.mxu0 0.0
  %965 = vmatpush.msra.mxu0 0.0
  %966 = vmatpush.msra.mxu0 0.0
  %967 = vmatpush.msra.mxu0 %v944
  %968 = vmatpush.msra.mxu0 %v943
  %969 = vmatpush.msra.mxu0 %v942
  %970 = vmatpush.msra.mxu0 %v941
  %971 = vmatmul.f32.gmra.mxu0 %v950
  %v972 = vpop.f32.mrf.mxu0
  %v973 = vadd.f32 %v947, %v972
  %974 = vmatmul.f32.gmra.mxu0 %v953
  %v975 = vpop.f32.mrf.mxu0
  %v976 = vadd.f32 %v947, %v975
  %977 = vdwg.mxu0
  %v978 = vld [vmem:[%s11] sm:$0xff]
  %v979 = vld [vmem:[%s11 + $0x8] sm:$0xff]
  %v980 = vld [vmem:[%s11 + $0x10] sm:$0xff]
  %v981 = vld [vmem:[%s11 + $0x18] sm:$0xff]
  %v982 = vld [vmem:[%s12] sm:$0x1]
  %v984 = vperm.slane %v982, 0
  %v987 = vsel %vm121, %v104, 0
  %v990 = vsel %vm121, %v105, 0
  %v993 = vsel %vm121, %v106, 0
  %v996 = vsel %vm121, %v107, 0
  %998 = vmatpush.msra.mxu0 0.0
  %999 = vmatpush.msra.mxu0 0.0
  %1000 = vmatpush.msra.mxu0 0.0
  %1001 = vmatpush.msra.mxu0 0.0
  %1002 = vmatpush.msra.mxu0 0.0
  %1003 = vmatpush.msra.mxu0 0.0
  %1004 = vmatpush.msra.mxu0 0.0
  %1005 = vmatpush.msra.mxu0 0.0
  %1006 = vmatpush.msra.mxu0 0.0
  %1007 = vmatpush.msra.mxu0 0.0
  %1008 = vmatpush.msra.mxu0 0.0
  %1009 = vmatpush.msra.mxu0 0.0
  %1010 = vmatpush.msra.mxu0 %v981
  %1011 = vmatpush.msra.mxu0 %v980
  %1012 = vmatpush.msra.mxu0 %v979
  %1013 = vmatpush.msra.mxu0 %v978
  %1014 = vmatmul.f32.gmra.mxu0 %v987
  %v1015 = vpop.f32.mrf.mxu0
  %v1016 = vadd.f32 %v984, %v1015
  %1017 = vmatmul.f32.gmra.mxu0 %v990
  %v1018 = vpop.f32.mrf.mxu0
  %v1019 = vadd.f32 %v984, %v1018
  %1020 = vmatmul.f32.gmra.mxu0 %v993
  %v1021 = vpop.f32.mrf.mxu0
  %v1022 = vadd.f32 %v984, %v1021
  %1023 = vmatmul.f32.gmra.mxu0 %v996
  %v1024 = vpop.f32.mrf.mxu0
  %v1025 = vadd.f32 %v984, %v1024
  %1026 = vdwg.mxu0
  %v1027 = vld [vmem:[%s13] sm:$0xff]
  %v1028 = vld [vmem:[%s13 + $0x8] sm:$0xff]
  %v1029 = vld [vmem:[%s13 + $0x10] sm:$0xff]
  %v1030 = vld [vmem:[%s13 + $0x18] sm:$0xff]
  %v1031 = vld [vmem:[%s14] sm:$0x1]
  %v1033 = vsel %vm159, %v973, 0
  %v1036 = vsel %vm159, %v1016, 0
  %v1039 = vsel %vm159, %v1019, 0
  %1041 = vmatpush.xpose.msra.mxu0 0.0
  %1042 = vmatpush.xpose.msra.mxu0 0.0
  %1043 = vmatpush.xpose.msra.mxu0 0.0
  %1044 = vmatpush.xpose.msra.mxu0 0.0
  %1045 = vmatpush.xpose.msra.mxu0 0.0
  %1046 = vmatpush.xpose.msra.mxu0 0.0
  %1047 = vmatpush.xpose.msra.mxu0 0.0
  %1048 = vmatpush.xpose.msra.mxu0 0.0
  %1049 = vmatpush.xpose.msra.mxu0 0.0
  %1050 = vmatpush.xpose.msra.mxu0 0.0
  %1051 = vmatpush.xpose.msra.mxu0 0.0
  %1052 = vmatpush.xpose.msra.mxu0 0.0
  %1053 = vmatpush.xpose.msra.mxu0 0.0
  %1054 = vmatpush.xpose.msra.mxu0 0.0
  %1055 = vmatpush.xpose.msra.mxu0 %v1039
  %1056 = vmatpush.xpose.msra.mxu0 %v1036
  %1057 = vmatmul.f32.gmra.mxu0 %v1033
  %v1058 = vpop.f32.mrf.mxu0
  %v1059 = vadd.f32 0.0, %v1058
  %1060 = vdwg.mxu0
  %vm1061 = vcmask 130048
  %v1062 = vsel %vm1061, %v1059, -inf
  %1063 = vmax.xlane.f32.xlu0 %v1062
  %v1064 = vpop.xlane.xlu0 %1063
  %v1065 = vsub.f32 %v1059, %v1064
  %v1066 = vmul.f32 %v1065, 1.442695
  %v1067 = vpow.pop %v1066
  %v1068 = vsel %vm1061, %v1067, 0.0
  %1069 = vadd.xlane.f32.xlu0 %v1068
  %v1070 = vpop.xlane.xlu0 %1069
  %v1071 = vrcp.pop %v1070
  %v1072 = vmul.f32 %v1067, %v1071
  %1073 = vrot.lane.b32.xlu0 %v1016, 96
  %v1074 = vpop.permute.xlu0 %1073
  %1075 = vrot.lane.b32.xlu0 %v1019, 96
  %v1076 = vpop.permute.xlu0 %1075
  %v1080 = vsel %vm1061, %v1072, 0
  %1082 = vmatpush.msra.mxu0 0.0
  %1083 = vmatpush.msra.mxu0 0.0
  %1084 = vmatpush.msra.mxu0 0.0
  %1085 = vmatpush.msra.mxu0 0.0
  %1086 = vmatpush.msra.mxu0 0.0
  %1087 = vmatpush.msra.mxu0 0.0
  %1088 = vmatpush.msra.mxu0 0.0
  %1089 = vmatpush.msra.mxu0 0.0
  %1090 = vmatpush.msra.mxu0 0.0
  %1091 = vmatpush.msra.mxu0 0.0
  %1092 = vmatpush.msra.mxu0 0.0
  %1093 = vmatpush.msra.mxu0 0.0
  %1094 = vmatpush.msra.mxu0 0.0
  %1095 = vmatpush.msra.mxu0 0.0
  %1096 = vmatpush.msra.mxu0 %v1076
  %1097 = vmatpush.msra.mxu0 %v1074
  %1098 = vmatmul.f32.gmra.mxu0 %v1080
  %v1099 = vpop.f32.mrf.mxu0
  %v1100 = vadd.f32 0.0, %v1099
  %1101 = vdwg.mxu0
  %1102 = vrot.lane.b32.xlu0 %v973, 120
  %v1103 = vpop.permute.xlu0 %1102
  %1104 = vrot.lane.b32.xlu0 %v1016, 120
  %v1105 = vpop.permute.xlu0 %1104
  %1106 = vrot.lane.b32.xlu0 %v1019, 120
  %v1107 = vpop.permute.xlu0 %1106
  %v1108 = vsel %vm159, %v1103, 0
  %v1110 = vsel %vm159, %v1105, 0
  %v1112 = vsel %vm159, %v1107, 0
  %1114 = vmatpush.xpose.msra.mxu0 0.0
  %1115 = vmatpush.xpose.msra.mxu0 0.0
  %1116 = vmatpush.xpose.msra.mxu0 0.0
  %1117 = vmatpush.xpose.msra.mxu0 0.0
  %1118 = vmatpush.xpose.msra.mxu0 0.0
  %1119 = vmatpush.xpose.msra.mxu0 0.0
  %1120 = vmatpush.xpose.msra.mxu0 0.0
  %1121 = vmatpush.xpose.msra.mxu0 0.0
  %1122 = vmatpush.xpose.msra.mxu0 0.0
  %1123 = vmatpush.xpose.msra.mxu0 0.0
  %1124 = vmatpush.xpose.msra.mxu0 0.0
  %1125 = vmatpush.xpose.msra.mxu0 0.0
  %1126 = vmatpush.xpose.msra.mxu0 0.0
  %1127 = vmatpush.xpose.msra.mxu0 0.0
  %1128 = vmatpush.xpose.msra.mxu0 %v1112
  %1129 = vmatpush.xpose.msra.mxu0 %v1110
  %1130 = vmatmul.f32.gmra.mxu0 %v1108
  %v1131 = vpop.f32.mrf.mxu0
  %v1132 = vadd.f32 0.0, %v1131
  %1133 = vdwg.mxu0
  %v1134 = vsel %vm1061, %v1132, -inf
  %1135 = vmax.xlane.f32.xlu0 %v1134
  %v1136 = vpop.xlane.xlu0 %1135
  %v1137 = vsub.f32 %v1132, %v1136
  %v1138 = vmul.f32 %v1137, 1.442695
  %v1139 = vpow.pop %v1138
  %v1140 = vsel %vm1061, %v1139, 0.0
  %1141 = vadd.xlane.f32.xlu0 %v1140
  %v1142 = vpop.xlane.xlu0 %1141
  %v1143 = vrcp.pop %v1142
  %v1144 = vmul.f32 %v1139, %v1143
  %1145 = vrot.lane.b32.xlu0 %v1016, 88
  %v1146 = vpop.permute.xlu0 %1145
  %1147 = vrot.lane.b32.xlu0 %v1019, 88
  %v1148 = vpop.permute.xlu0 %1147
  %v1152 = vsel %vm1061, %v1144, 0
  %1154 = vmatpush.msra.mxu0 0.0
  %1155 = vmatpush.msra.mxu0 0.0
  %1156 = vmatpush.msra.mxu0 0.0
  %1157 = vmatpush.msra.mxu0 0.0
  %1158 = vmatpush.msra.mxu0 0.0
  %1159 = vmatpush.msra.mxu0 0.0
  %1160 = vmatpush.msra.mxu0 0.0
  %1161 = vmatpush.msra.mxu0 0.0
  %1162 = vmatpush.msra.mxu0 0.0
  %1163 = vmatpush.msra.mxu0 0.0
  %1164 = vmatpush.msra.mxu0 0.0
  %1165 = vmatpush.msra.mxu0 0.0
  %1166 = vmatpush.msra.mxu0 0.0
  %1167 = vmatpush.msra.mxu0 0.0
  %1168 = vmatpush.msra.mxu0 %v1148
  %1169 = vmatpush.msra.mxu0 %v1146
  %1170 = vmatmul.f32.gmra.mxu0 %v1152
  %v1171 = vpop.f32.mrf.mxu0
  %v1172 = vadd.f32 0.0, %v1171
  %1173 = vdwg.mxu0
  %v1175 = vsel %vm159, %v1172, 0
  %1177 = vmatpush.msra.mxu0 0.0
  %1178 = vmatpush.msra.mxu0 0.0
  %1179 = vmatpush.msra.mxu0 0.0
  %1180 = vmatpush.msra.mxu0 0.0
  %1181 = vmatpush.msra.mxu0 0.0
  %1182 = vmatpush.msra.mxu0 0.0
  %1183 = vmatpush.msra.mxu0 0.0
  %1184 = vmatpush.msra.mxu0 0.0
  %1185 = vmatpush.msra.mxu0 0.0
  %1186 = vmatpush.msra.mxu0 0.0
  %1187 = vmatpush.msra.mxu0 0.0
  %1188 = vmatpush.msra.mxu0 0.0
  %1189 = vmatpush.msra.mxu0 0.0
  %1190 = vmatpush.msra.mxu0 0.0
  %1191 = vmatpush.msra.mxu0 0.0
  %1192 = vmatpush.msra.mxu0 %v1028
  %1193 = vmatmul.f32.gmra.mxu0 %v1175
  %v1194 = vpop.f32.mrf.mxu0
  %v1195 = vadd.f32 0.0, %v1194
  %1196 = vdwg.mxu0
  %v1198 = vsel %vm159, %v1100, 0
  %1200 = vmatpush.msra.mxu0 0.0
  %1201 = vmatpush.msra.mxu0 0.0
  %1202 = vmatpush.msra.mxu0 0.0
  %1203 = vmatpush.msra.mxu0 0.0
  %1204 = vmatpush.msra.mxu0 0.0
  %1205 = vmatpush.msra.mxu0 0.0
  %1206 = vmatpush.msra.mxu0 0.0
  %1207 = vmatpush.msra.mxu0 0.0
  %1208 = vmatpush.msra.mxu0 0.0
  %1209 = vmatpush.msra.mxu0 0.0
  %1210 = vmatpush.msra.mxu0 0.0
  %1211 = vmatpush.msra.mxu0 0.0
  %1212 = vmatpush.msra.mxu0 0.0
  %1213 = vmatpush.msra.mxu0 0.0
  %1214 = vmatpush.msra.mxu0 0.0
  %1215 = vmatpush.msra.mxu0 %v1027
  %1216 = vmatmul.f32.gmra.mxu0 %v1198
  %v1217 = vpop.f32.mrf.mxu0
  %v1218 = vadd.f32 %v1195, %v1217
  %1219 = vdwg.mxu0
  %1220 = vrot.lane.b32.xlu0 %v973, 112
  %v1221 = vpop.permute.xlu0 %1220
  %1222 = vrot.lane.b32.xlu0 %v1016, 112
  %v1223 = vpop.permute.xlu0 %1222
  %1224 = vrot.lane.b32.xlu0 %v1019, 112
  %v1225 = vpop.permute.xlu0 %1224
  %v1226 = vsel %vm159, %v1221, 0
  %v1228 = vsel %vm159, %v1223, 0
  %v1230 = vsel %vm159, %v1225, 0
  %1232 = vmatpush.xpose.msra.mxu0 0.0
  %1233 = vmatpush.xpose.msra.mxu0 0.0
  %1234 = vmatpush.xpose.msra.mxu0 0.0
  %1235 = vmatpush.xpose.msra.mxu0 0.0
  %1236 = vmatpush.xpose.msra.mxu0 0.0
  %1237 = vmatpush.xpose.msra.mxu0 0.0
  %1238 = vmatpush.xpose.msra.mxu0 0.0
  %1239 = vmatpush.xpose.msra.mxu0 0.0
  %1240 = vmatpush.xpose.msra.mxu0 0.0
  %1241 = vmatpush.xpose.msra.mxu0 0.0
  %1242 = vmatpush.xpose.msra.mxu0 0.0
  %1243 = vmatpush.xpose.msra.mxu0 0.0
  %1244 = vmatpush.xpose.msra.mxu0 0.0
  %1245 = vmatpush.xpose.msra.mxu0 0.0
  %1246 = vmatpush.xpose.msra.mxu0 %v1230
  %1247 = vmatpush.xpose.msra.mxu0 %v1228
  %1248 = vmatmul.f32.gmra.mxu0 %v1226
  %v1249 = vpop.f32.mrf.mxu0
  %v1250 = vadd.f32 0.0, %v1249
  %1251 = vdwg.mxu0
  %v1252 = vsel %vm1061, %v1250, -inf
  %1253 = vmax.xlane.f32.xlu0 %v1252
  %v1254 = vpop.xlane.xlu0 %1253
  %v1255 = vsub.f32 %v1250, %v1254
  %v1256 = vmul.f32 %v1255, 1.442695
  %v1257 = vpow.pop %v1256
  %v1258 = vsel %vm1061, %v1257, 0.0
  %1259 = vadd.xlane.f32.xlu0 %v1258
  %v1260 = vpop.xlane.xlu0 %1259
  %v1261 = vrcp.pop %v1260
  %v1262 = vmul.f32 %v1257, %v1261
  %1263 = vrot.lane.b32.xlu0 %v1016, 80
  %v1264 = vpop.permute.xlu0 %1263
  %1265 = vrot.lane.b32.xlu0 %v1019, 80
  %v1266 = vpop.permute.xlu0 %1265
  %v1270 = vsel %vm1061, %v1262, 0
  %1272 = vmatpush.msra.mxu0 0.0
  %1273 = vmatpush.msra.mxu0 0.0
  %1274 = vmatpush.msra.mxu0 0.0
  %1275 = vmatpush.msra.mxu0 0.0
  %1276 = vmatpush.msra.mxu0 0.0
  %1277 = vmatpush.msra.mxu0 0.0
  %1278 = vmatpush.msra.mxu0 0.0
  %1279 = vmatpush.msra.mxu0 0.0
  %1280 = vmatpush.msra.mxu0 0.0
  %1281 = vmatpush.msra.mxu0 0.0
  %1282 = vmatpush.msra.mxu0 0.0
  %1283 = vmatpush.msra.mxu0 0.0
  %1284 = vmatpush.msra.mxu0 0.0
  %1285 = vmatpush.msra.mxu0 0.0
  %1286 = vmatpush.msra.mxu0 %v1266
  %1287 = vmatpush.msra.mxu0 %v1264
  %1288 = vmatmul.f32.gmra.mxu0 %v1270
  %v1289 = vpop.f32.mrf.mxu0
  %v1290 = vadd.f32 0.0, %v1289
  %1291 = vdwg.mxu0
  %v1293 = vsel %vm159, %v1290, 0
  %1295 = vmatpush.msra.mxu0 0.0
  %1296 = vmatpush.msra.mxu0 0.0
  %1297 = vmatpush.msra.mxu0 0.0
  %1298 = vmatpush.msra.mxu0 0.0
  %1299 = vmatpush.msra.mxu0 0.0
  %1300 = vmatpush.msra.mxu0 0.0
  %1301 = vmatpush.msra.mxu0 0.0
  %1302 = vmatpush.msra.mxu0 0.0
  %1303 = vmatpush.msra.mxu0 0.0
  %1304 = vmatpush.msra.mxu0 0.0
  %1305 = vmatpush.msra.mxu0 0.0
  %1306 = vmatpush.msra.mxu0 0.0
  %1307 = vmatpush.msra.mxu0 0.0
  %1308 = vmatpush.msra.mxu0 0.0
  %1309 = vmatpush.msra.mxu0 0.0
  %1310 = vmatpush.msra.mxu0 %v1029
  %1311 = vmatmul.f32.gmra.mxu0 %v1293
  %v1312 = vpop.f32.mrf.mxu0
  %v1313 = vadd.f32 0.0, %v1312
  %1314 = vdwg.mxu0
  %v1315 = vadd.f32 %v1218, %v1313
  %1316 = vrot.lane.b32.xlu0 %v973, 104
  %v1317 = vpop.permute.xlu0 %1316
  %1318 = vrot.lane.b32.xlu0 %v1016, 104
  %v1319 = vpop.permute.xlu0 %1318
  %1320 = vrot.lane.b32.xlu0 %v1019, 104
  %v1321 = vpop.permute.xlu0 %1320
  %v1322 = vsel %vm159, %v1317, 0
  %v1324 = vsel %vm159, %v1319, 0
  %v1326 = vsel %vm159, %v1321, 0
  %1328 = vmatpush.xpose.msra.mxu0 0.0
  %1329 = vmatpush.xpose.msra.mxu0 0.0
  %1330 = vmatpush.xpose.msra.mxu0 0.0
  %1331 = vmatpush.xpose.msra.mxu0 0.0
  %1332 = vmatpush.xpose.msra.mxu0 0.0
  %1333 = vmatpush.xpose.msra.mxu0 0.0
  %1334 = vmatpush.xpose.msra.mxu0 0.0
  %1335 = vmatpush.xpose.msra.mxu0 0.0
  %1336 = vmatpush.xpose.msra.mxu0 0.0
  %1337 = vmatpush.xpose.msra.mxu0 0.0
  %1338 = vmatpush.xpose.msra.mxu0 0.0
  %1339 = vmatpush.xpose.msra.mxu0 0.0
  %1340 = vmatpush.xpose.msra.mxu0 0.0
  %1341 = vmatpush.xpose.msra.mxu0 0.0
  %1342 = vmatpush.xpose.msra.mxu0 %v1326
  %1343 = vmatpush.xpose.msra.mxu0 %v1324
  %1344 = vmatmul.f32.gmra.mxu0 %v1322
  %v1345 = vpop.f32.mrf.mxu0
  %v1346 = vadd.f32 0.0, %v1345
  %1347 = vdwg.mxu0
  %v1348 = vsel %vm1061, %v1346, -inf
  %1349 = vmax.xlane.f32.xlu0 %v1348
  %v1350 = vpop.xlane.xlu0 %1349
  %v1351 = vsub.f32 %v1346, %v1350
  %v1352 = vmul.f32 %v1351, 1.442695
  %v1353 = vpow.pop %v1352
  %v1354 = vsel %vm1061, %v1353, 0.0
  %1355 = vadd.xlane.f32.xlu0 %v1354
  %v1356 = vpop.xlane.xlu0 %1355
  %v1357 = vrcp.pop %v1356
  %v1358 = vmul.f32 %v1353, %v1357
  %1359 = vrot.lane.b32.xlu0 %v1016, 72
  %v1360 = vpop.permute.xlu0 %1359
  %1361 = vrot.lane.b32.xlu0 %v1019, 72
  %v1362 = vpop.permute.xlu0 %1361
  %v1366 = vsel %vm1061, %v1358, 0
  %1368 = vmatpush.msra.mxu0 0.0
  %1369 = vmatpush.msra.mxu0 0.0
  %1370 = vmatpush.msra.mxu0 0.0
  %1371 = vmatpush.msra.mxu0 0.0
  %1372 = vmatpush.msra.mxu0 0.0
  %1373 = vmatpush.msra.mxu0 0.0
  %1374 = vmatpush.msra.mxu0 0.0
  %1375 = vmatpush.msra.mxu0 0.0
  %1376 = vmatpush.msra.mxu0 0.0
  %1377 = vmatpush.msra.mxu0 0.0
  %1378 = vmatpush.msra.mxu0 0.0
  %1379 = vmatpush.msra.mxu0 0.0
  %1380 = vmatpush.msra.mxu0 0.0
  %1381 = vmatpush.msra.mxu0 0.0
  %1382 = vmatpush.msra.mxu0 %v1362
  %1383 = vmatpush.msra.mxu0 %v1360
  %1384 = vmatmul.f32.gmra.mxu0 %v1366
  %v1385 = vpop.f32.mrf.mxu0
  %v1386 = vadd.f32 0.0, %v1385
  %1387 = vdwg.mxu0
  %v1389 = vsel %vm159, %v1386, 0
  %1391 = vmatpush.msra.mxu0 0.0
  %1392 = vmatpush.msra.mxu0 0.0
  %1393 = vmatpush.msra.mxu0 0.0
  %1394 = vmatpush.msra.mxu0 0.0
  %1395 = vmatpush.msra.mxu0 0.0
  %1396 = vmatpush.msra.mxu0 0.0
  %1397 = vmatpush.msra.mxu0 0.0
  %1398 = vmatpush.msra.mxu0 0.0
  %1399 = vmatpush.msra.mxu0 0.0
  %1400 = vmatpush.msra.mxu0 0.0
  %1401 = vmatpush.msra.mxu0 0.0
  %1402 = vmatpush.msra.mxu0 0.0
  %1403 = vmatpush.msra.mxu0 0.0
  %1404 = vmatpush.msra.mxu0 0.0
  %1405 = vmatpush.msra.mxu0 0.0
  %1406 = vmatpush.msra.mxu0 %v1030
  %1407 = vmatmul.f32.gmra.mxu0 %v1389
  %v1408 = vpop.f32.mrf.mxu0
  %v1409 = vadd.f32 0.0, %v1408
  %1410 = vdwg.mxu0
  %v1411 = vadd.f32 %v1315, %v1409
  %v1413 = vsel %vm159, %v976, 0
  %v1416 = vsel %vm159, %v1022, 0
  %v1419 = vsel %vm159, %v1025, 0
  %1421 = vmatpush.xpose.msra.mxu0 0.0
  %1422 = vmatpush.xpose.msra.mxu0 0.0
  %1423 = vmatpush.xpose.msra.mxu0 0.0
  %1424 = vmatpush.xpose.msra.mxu0 0.0
  %1425 = vmatpush.xpose.msra.mxu0 0.0
  %1426 = vmatpush.xpose.msra.mxu0 0.0
  %1427 = vmatpush.xpose.msra.mxu0 0.0
  %1428 = vmatpush.xpose.msra.mxu0 0.0
  %1429 = vmatpush.xpose.msra.mxu0 0.0
  %1430 = vmatpush.xpose.msra.mxu0 0.0
  %1431 = vmatpush.xpose.msra.mxu0 0.0
  %1432 = vmatpush.xpose.msra.mxu0 0.0
  %1433 = vmatpush.xpose.msra.mxu0 0.0
  %1434 = vmatpush.xpose.msra.mxu0 0.0
  %1435 = vmatpush.xpose.msra.mxu0 %v1419
  %1436 = vmatpush.xpose.msra.mxu0 %v1416
  %1437 = vmatmul.f32.gmra.mxu0 %v1413
  %v1438 = vpop.f32.mrf.mxu0
  %v1439 = vadd.f32 0.0, %v1438
  %1440 = vdwg.mxu0
  %v1441 = vsel %vm1061, %v1439, -inf
  %1442 = vmax.xlane.f32.xlu0 %v1441
  %v1443 = vpop.xlane.xlu0 %1442
  %v1444 = vsub.f32 %v1439, %v1443
  %v1445 = vmul.f32 %v1444, 1.442695
  %v1446 = vpow.pop %v1445
  %v1447 = vsel %vm1061, %v1446, 0.0
  %1448 = vadd.xlane.f32.xlu0 %v1447
  %v1449 = vpop.xlane.xlu0 %1448
  %v1450 = vrcp.pop %v1449
  %v1451 = vmul.f32 %v1446, %v1450
  %1452 = vrot.lane.b32.xlu0 %v1022, 96
  %v1453 = vpop.permute.xlu0 %1452
  %1454 = vrot.lane.b32.xlu0 %v1025, 96
  %v1455 = vpop.permute.xlu0 %1454
  %v1459 = vsel %vm1061, %v1451, 0
  %1461 = vmatpush.msra.mxu0 0.0
  %1462 = vmatpush.msra.mxu0 0.0
  %1463 = vmatpush.msra.mxu0 0.0
  %1464 = vmatpush.msra.mxu0 0.0
  %1465 = vmatpush.msra.mxu0 0.0
  %1466 = vmatpush.msra.mxu0 0.0
  %1467 = vmatpush.msra.mxu0 0.0
  %1468 = vmatpush.msra.mxu0 0.0
  %1469 = vmatpush.msra.mxu0 0.0
  %1470 = vmatpush.msra.mxu0 0.0
  %1471 = vmatpush.msra.mxu0 0.0
  %1472 = vmatpush.msra.mxu0 0.0
  %1473 = vmatpush.msra.mxu0 0.0
  %1474 = vmatpush.msra.mxu0 0.0
  %1475 = vmatpush.msra.mxu0 %v1455
  %1476 = vmatpush.msra.mxu0 %v1453
  %1477 = vmatmul.f32.gmra.mxu0 %v1459
  %v1478 = vpop.f32.mrf.mxu0
  %v1479 = vadd.f32 0.0, %v1478
  %1480 = vdwg.mxu0
  %1481 = vrot.lane.b32.xlu0 %v976, 120
  %v1482 = vpop.permute.xlu0 %1481
  %1483 = vrot.lane.b32.xlu0 %v1022, 120
  %v1484 = vpop.permute.xlu0 %1483
  %1485 = vrot.lane.b32.xlu0 %v1025, 120
  %v1486 = vpop.permute.xlu0 %1485
  %v1487 = vsel %vm159, %v1482, 0
  %v1489 = vsel %vm159, %v1484, 0
  %v1491 = vsel %vm159, %v1486, 0
  %1493 = vmatpush.xpose.msra.mxu0 0.0
  %1494 = vmatpush.xpose.msra.mxu0 0.0
  %1495 = vmatpush.xpose.msra.mxu0 0.0
  %1496 = vmatpush.xpose.msra.mxu0 0.0
  %1497 = vmatpush.xpose.msra.mxu0 0.0
  %1498 = vmatpush.xpose.msra.mxu0 0.0
  %1499 = vmatpush.xpose.msra.mxu0 0.0
  %1500 = vmatpush.xpose.msra.mxu0 0.0
  %1501 = vmatpush.xpose.msra.mxu0 0.0
  %1502 = vmatpush.xpose.msra.mxu0 0.0
  %1503 = vmatpush.xpose.msra.mxu0 0.0
  %1504 = vmatpush.xpose.msra.mxu0 0.0
  %1505 = vmatpush.xpose.msra.mxu0 0.0
  %1506 = vmatpush.xpose.msra.mxu0 0.0
  %1507 = vmatpush.xpose.msra.mxu0 %v1491
  %1508 = vmatpush.xpose.msra.mxu0 %v1489
  %1509 = vmatmul.f32.gmra.mxu0 %v1487
  %v1510 = vpop.f32.mrf.mxu0
  %v1511 = vadd.f32 0.0, %v1510
  %1512 = vdwg.mxu0
  %v1513 = vsel %vm1061, %v1511, -inf
  %1514 = vmax.xlane.f32.xlu0 %v1513
  %v1515 = vpop.xlane.xlu0 %1514
  %v1516 = vsub.f32 %v1511, %v1515
  %v1517 = vmul.f32 %v1516, 1.442695
  %v1518 = vpow.pop %v1517
  %v1519 = vsel %vm1061, %v1518, 0.0
  %1520 = vadd.xlane.f32.xlu0 %v1519
  %v1521 = vpop.xlane.xlu0 %1520
  %v1522 = vrcp.pop %v1521
  %v1523 = vmul.f32 %v1518, %v1522
  %1524 = vrot.lane.b32.xlu0 %v1022, 88
  %v1525 = vpop.permute.xlu0 %1524
  %1526 = vrot.lane.b32.xlu0 %v1025, 88
  %v1527 = vpop.permute.xlu0 %1526
  %v1531 = vsel %vm1061, %v1523, 0
  %1533 = vmatpush.msra.mxu0 0.0
  %1534 = vmatpush.msra.mxu0 0.0
  %1535 = vmatpush.msra.mxu0 0.0
  %1536 = vmatpush.msra.mxu0 0.0
  %1537 = vmatpush.msra.mxu0 0.0
  %1538 = vmatpush.msra.mxu0 0.0
  %1539 = vmatpush.msra.mxu0 0.0
  %1540 = vmatpush.msra.mxu0 0.0
  %1541 = vmatpush.msra.mxu0 0.0
  %1542 = vmatpush.msra.mxu0 0.0
  %1543 = vmatpush.msra.mxu0 0.0
  %1544 = vmatpush.msra.mxu0 0.0
  %1545 = vmatpush.msra.mxu0 0.0
  %1546 = vmatpush.msra.mxu0 0.0
  %1547 = vmatpush.msra.mxu0 %v1527
  %1548 = vmatpush.msra.mxu0 %v1525
  %1549 = vmatmul.f32.gmra.mxu0 %v1531
  %v1550 = vpop.f32.mrf.mxu0
  %v1551 = vadd.f32 0.0, %v1550
  %1552 = vdwg.mxu0
  %v1554 = vsel %vm159, %v1551, 0
  %1556 = vmatpush.msra.mxu0 0.0
  %1557 = vmatpush.msra.mxu0 0.0
  %1558 = vmatpush.msra.mxu0 0.0
  %1559 = vmatpush.msra.mxu0 0.0
  %1560 = vmatpush.msra.mxu0 0.0
  %1561 = vmatpush.msra.mxu0 0.0
  %1562 = vmatpush.msra.mxu0 0.0
  %1563 = vmatpush.msra.mxu0 0.0
  %1564 = vmatpush.msra.mxu0 0.0
  %1565 = vmatpush.msra.mxu0 0.0
  %1566 = vmatpush.msra.mxu0 0.0
  %1567 = vmatpush.msra.mxu0 0.0
  %1568 = vmatpush.msra.mxu0 0.0
  %1569 = vmatpush.msra.mxu0 0.0
  %1570 = vmatpush.msra.mxu0 0.0
  %1571 = vmatpush.msra.mxu0 %v1028
  %1572 = vmatmul.f32.gmra.mxu0 %v1554
  %v1573 = vpop.f32.mrf.mxu0
  %v1574 = vadd.f32 0.0, %v1573
  %1575 = vdwg.mxu0
  %v1577 = vsel %vm159, %v1479, 0
  %1579 = vmatpush.msra.mxu0 0.0
  %1580 = vmatpush.msra.mxu0 0.0
  %1581 = vmatpush.msra.mxu0 0.0
  %1582 = vmatpush.msra.mxu0 0.0
  %1583 = vmatpush.msra.mxu0 0.0
  %1584 = vmatpush.msra.mxu0 0.0
  %1585 = vmatpush.msra.mxu0 0.0
  %1586 = vmatpush.msra.mxu0 0.0
  %1587 = vmatpush.msra.mxu0 0.0
  %1588 = vmatpush.msra.mxu0 0.0
  %1589 = vmatpush.msra.mxu0 0.0
  %1590 = vmatpush.msra.mxu0 0.0
  %1591 = vmatpush.msra.mxu0 0.0
  %1592 = vmatpush.msra.mxu0 0.0
  %1593 = vmatpush.msra.mxu0 0.0
  %1594 = vmatpush.msra.mxu0 %v1027
  %1595 = vmatmul.f32.gmra.mxu0 %v1577
  %v1596 = vpop.f32.mrf.mxu0
  %v1597 = vadd.f32 %v1574, %v1596
  %1598 = vdwg.mxu0
  %1599 = vrot.lane.b32.xlu0 %v976, 112
  %v1600 = vpop.permute.xlu0 %1599
  %1601 = vrot.lane.b32.xlu0 %v1022, 112
  %v1602 = vpop.permute.xlu0 %1601
  %1603 = vrot.lane.b32.xlu0 %v1025, 112
  %v1604 = vpop.permute.xlu0 %1603
  %v1605 = vsel %vm159, %v1600, 0
  %v1607 = vsel %vm159, %v1602, 0
  %v1609 = vsel %vm159, %v1604, 0
  %1611 = vmatpush.xpose.msra.mxu0 0.0
  %1612 = vmatpush.xpose.msra.mxu0 0.0
  %1613 = vmatpush.xpose.msra.mxu0 0.0
  %1614 = vmatpush.xpose.msra.mxu0 0.0
  %1615 = vmatpush.xpose.msra.mxu0 0.0
  %1616 = vmatpush.xpose.msra.mxu0 0.0
  %1617 = vmatpush.xpose.msra.mxu0 0.0
  %1618 = vmatpush.xpose.msra.mxu0 0.0
  %1619 = vmatpush.xpose.msra.mxu0 0.0
  %1620 = vmatpush.xpose.msra.mxu0 0.0
  %1621 = vmatpush.xpose.msra.mxu0 0.0
  %1622 = vmatpush.xpose.msra.mxu0 0.0
  %1623 = vmatpush.xpose.msra.mxu0 0.0
  %1624 = vmatpush.xpose.msra.mxu0 0.0
  %1625 = vmatpush.xpose.msra.mxu0 %v1609
  %1626 = vmatpush.xpose.msra.mxu0 %v1607
  %1627 = vmatmul.f32.gmra.mxu0 %v1605
  %v1628 = vpop.f32.mrf.mxu0
  %v1629 = vadd.f32 0.0, %v1628
  %1630 = vdwg.mxu0
  %v1631 = vsel %vm1061, %v1629, -inf
  %1632 = vmax.xlane.f32.xlu0 %v1631
  %v1633 = vpop.xlane.xlu0 %1632
  %v1634 = vsub.f32 %v1629, %v1633
  %v1635 = vmul.f32 %v1634, 1.442695
  %v1636 = vpow.pop %v1635
  %v1637 = vsel %vm1061, %v1636, 0.0
  %1638 = vadd.xlane.f32.xlu0 %v1637
  %v1639 = vpop.xlane.xlu0 %1638
  %v1640 = vrcp.pop %v1639
  %v1641 = vmul.f32 %v1636, %v1640
  %1642 = vrot.lane.b32.xlu0 %v1022, 80
  %v1643 = vpop.permute.xlu0 %1642
  %1644 = vrot.lane.b32.xlu0 %v1025, 80
  %v1645 = vpop.permute.xlu0 %1644
  %v1649 = vsel %vm1061, %v1641, 0
  %1651 = vmatpush.msra.mxu0 0.0
  %1652 = vmatpush.msra.mxu0 0.0
  %1653 = vmatpush.msra.mxu0 0.0
  %1654 = vmatpush.msra.mxu0 0.0
  %1655 = vmatpush.msra.mxu0 0.0
  %1656 = vmatpush.msra.mxu0 0.0
  %1657 = vmatpush.msra.mxu0 0.0
  %1658 = vmatpush.msra.mxu0 0.0
  %1659 = vmatpush.msra.mxu0 0.0
  %1660 = vmatpush.msra.mxu0 0.0
  %1661 = vmatpush.msra.mxu0 0.0
  %1662 = vmatpush.msra.mxu0 0.0
  %1663 = vmatpush.msra.mxu0 0.0
  %1664 = vmatpush.msra.mxu0 0.0
  %1665 = vmatpush.msra.mxu0 %v1645
  %1666 = vmatpush.msra.mxu0 %v1643
  %1667 = vmatmul.f32.gmra.mxu0 %v1649
  %v1668 = vpop.f32.mrf.mxu0
  %v1669 = vadd.f32 0.0, %v1668
  %1670 = vdwg.mxu0
  %v1672 = vsel %vm159, %v1669, 0
  %1674 = vmatpush.msra.mxu0 0.0
  %1675 = vmatpush.msra.mxu0 0.0
  %1676 = vmatpush.msra.mxu0 0.0
  %1677 = vmatpush.msra.mxu0 0.0
  %1678 = vmatpush.msra.mxu0 0.0
  %1679 = vmatpush.msra.mxu0 0.0
  %1680 = vmatpush.msra.mxu0 0.0
  %1681 = vmatpush.msra.mxu0 0.0
  %1682 = vmatpush.msra.mxu0 0.0
  %1683 = vmatpush.msra.mxu0 0.0
  %1684 = vmatpush.msra.mxu0 0.0
  %1685 = vmatpush.msra.mxu0 0.0
  %1686 = vmatpush.msra.mxu0 0.0
  %1687 = vmatpush.msra.mxu0 0.0
  %1688 = vmatpush.msra.mxu0 0.0
  %1689 = vmatpush.msra.mxu0 %v1029
  %1690 = vmatmul.f32.gmra.mxu0 %v1672
  %v1691 = vpop.f32.mrf.mxu0
  %v1692 = vadd.f32 0.0, %v1691
  %1693 = vdwg.mxu0
  %v1694 = vadd.f32 %v1597, %v1692
  %1695 = vrot.lane.b32.xlu0 %v976, 104
  %v1696 = vpop.permute.xlu0 %1695
  %1697 = vrot.lane.b32.xlu0 %v1022, 104
  %v1698 = vpop.permute.xlu0 %1697
  %1699 = vrot.lane.b32.xlu0 %v1025, 104
  %v1700 = vpop.permute.xlu0 %1699
  %v1701 = vsel %vm159, %v1696, 0
  %v1703 = vsel %vm159, %v1698, 0
  %v1705 = vsel %vm159, %v1700, 0
  %1707 = vmatpush.xpose.msra.mxu0 0.0
  %1708 = vmatpush.xpose.msra.mxu0 0.0
  %1709 = vmatpush.xpose.msra.mxu0 0.0
  %1710 = vmatpush.xpose.msra.mxu0 0.0
  %1711 = vmatpush.xpose.msra.mxu0 0.0
  %1712 = vmatpush.xpose.msra.mxu0 0.0
  %1713 = vmatpush.xpose.msra.mxu0 0.0
  %1714 = vmatpush.xpose.msra.mxu0 0.0
  %1715 = vmatpush.xpose.msra.mxu0 0.0
  %1716 = vmatpush.xpose.msra.mxu0 0.0
  %1717 = vmatpush.xpose.msra.mxu0 0.0
  %1718 = vmatpush.xpose.msra.mxu0 0.0
  %1719 = vmatpush.xpose.msra.mxu0 0.0
  %1720 = vmatpush.xpose.msra.mxu0 0.0
  %1721 = vmatpush.xpose.msra.mxu0 %v1705
  %1722 = vmatpush.xpose.msra.mxu0 %v1703
  %1723 = vmatmul.f32.gmra.mxu0 %v1701
  %v1724 = vpop.f32.mrf.mxu0
  %v1725 = vadd.f32 0.0, %v1724
  %1726 = vdwg.mxu0
  %v1727 = vsel %vm1061, %v1725, -inf
  %1728 = vmax.xlane.f32.xlu0 %v1727
  %v1729 = vpop.xlane.xlu0 %1728
  %v1730 = vsub.f32 %v1725, %v1729
  %v1731 = vmul.f32 %v1730, 1.442695
  %v1732 = vpow.pop %v1731
  %v1733 = vsel %vm1061, %v1732, 0.0
  %1734 = vadd.xlane.f32.xlu0 %v1733
  %v1735 = vpop.xlane.xlu0 %1734
  %v1736 = vrcp.pop %v1735
  %v1737 = vmul.f32 %v1732, %v1736
  %1738 = vrot.lane.b32.xlu0 %v1022, 72
  %v1739 = vpop.permute.xlu0 %1738
  %1740 = vrot.lane.b32.xlu0 %v1025, 72
  %v1741 = vpop.permute.xlu0 %1740
  %v1745 = vsel %vm1061, %v1737, 0
  %1747 = vmatpush.msra.mxu0 0.0
  %1748 = vmatpush.msra.mxu0 0.0
  %1749 = vmatpush.msra.mxu0 0.0
  %1750 = vmatpush.msra.mxu0 0.0
  %1751 = vmatpush.msra.mxu0 0.0
  %1752 = vmatpush.msra.mxu0 0.0
  %1753 = vmatpush.msra.mxu0 0.0
  %1754 = vmatpush.msra.mxu0 0.0
  %1755 = vmatpush.msra.mxu0 0.0
  %1756 = vmatpush.msra.mxu0 0.0
  %1757 = vmatpush.msra.mxu0 0.0
  %1758 = vmatpush.msra.mxu0 0.0
  %1759 = vmatpush.msra.mxu0 0.0
  %1760 = vmatpush.msra.mxu0 0.0
  %1761 = vmatpush.msra.mxu0 %v1741
  %1762 = vmatpush.msra.mxu0 %v1739
  %1763 = vmatmul.f32.gmra.mxu0 %v1745
  %v1764 = vpop.f32.mrf.mxu0
  %v1765 = vadd.f32 0.0, %v1764
  %1766 = vdwg.mxu0
  %v1768 = vsel %vm159, %v1765, 0
  %1770 = vmatpush.msra.mxu0 0.0
  %1771 = vmatpush.msra.mxu0 0.0
  %1772 = vmatpush.msra.mxu0 0.0
  %1773 = vmatpush.msra.mxu0 0.0
  %1774 = vmatpush.msra.mxu0 0.0
  %1775 = vmatpush.msra.mxu0 0.0
  %1776 = vmatpush.msra.mxu0 0.0
  %1777 = vmatpush.msra.mxu0 0.0
  %1778 = vmatpush.msra.mxu0 0.0
  %1779 = vmatpush.msra.mxu0 0.0
  %1780 = vmatpush.msra.mxu0 0.0
  %1781 = vmatpush.msra.mxu0 0.0
  %1782 = vmatpush.msra.mxu0 0.0
  %1783 = vmatpush.msra.mxu0 0.0
  %1784 = vmatpush.msra.mxu0 0.0
  %1785 = vmatpush.msra.mxu0 %v1030
  %1786 = vmatmul.f32.gmra.mxu0 %v1768
  %v1787 = vpop.f32.mrf.mxu0
  %v1788 = vadd.f32 0.0, %v1787
  %1789 = vdwg.mxu0
  %v1790 = vadd.f32 %v1694, %v1788
  %v1792 = vperm.slane %v1031, 0
  %v1794 = vadd.f32 %v1411, %v1792
  %v1795 = vadd.f32 %v1790, %v1792
  %v1796 = vadd.f32 %v1794, %v939
  %v1797 = vadd.f32 %v1795, %v940
  %s1798 = scalar_lea.vmem %s15, 1
  %v1799 = vld [vmem:[%s1798] sm:$0x1]
  %s1800 = scalar_lea.vmem %s16, 1
  %v1801 = vld [vmem:[%s1800] sm:$0x1]
  %v1802 = vsel %vm121, %v1796, 0.0
  %1803 = vadd.xlane.f32.xlu0 %v1802
  %v1804 = vpop.xlane.xlu0 %1803
  %v1805 = vsel %vm121, %v1797, 0.0
  %1806 = vadd.xlane.f32.xlu0 %v1805
  %v1807 = vpop.xlane.xlu0 %1806
  %v1808 = vmul.f32 %v1804, %v892
  %v1809 = vmul.f32 %v1807, %v892
  %v1810 = vsub.f32 %v1796, %v1808
  %v1811 = vsub.f32 %v1797, %v1809
  %v1812 = vmul.f32 %v1810, %v1810
  %v1813 = vmul.f32 %v1811, %v1811
  %v1814 = vsel %vm121, %v1812, 0.0
  %1815 = vadd.xlane.f32.xlu0 %v1814
  %v1816 = vpop.xlane.xlu0 %1815
  %v1817 = vsel %vm121, %v1813, 0.0
  %1818 = vadd.xlane.f32.xlu0 %v1817
  %v1819 = vpop.xlane.xlu0 %1818
  %v1820 = vmul.f32 %v1816, %v892
  %v1821 = vmul.f32 %v1819, %v892
  %v1822 = vadd.f32 %v1820, 1e-05
  %v1823 = vadd.f32 %v1821, 1e-05
  %v1824 = vrsqrt.pop %v1822
  %v1825 = vmul.f32 %v1824, %v1822
  %v1826 = vmul.f32 %v1825, %v1824
  %v1827 = vmul.f32 0.5, %v1826
  %v1828 = vsub.f32 1.5, %v1827
  %v1829 = vmul.f32 %v1824, %v1828
  %vm1830 = vweird.f32 %v1822
  %vm1831 = vweird.f32 %v1824
  %vm1832 = vmor %vm1830, %vm1831
  %v1833 = vsel %vm1832, %v1824, %v1829
  %v1834 = vrsqrt.pop %v1823
  %v1835 = vmul.f32 %v1834, %v1823
  %v1836 = vmul.f32 %v1835, %v1834
  %v1837 = vmul.f32 0.5, %v1836
  %v1838 = vsub.f32 1.5, %v1837
  %v1839 = vmul.f32 %v1834, %v1838
  %vm1840 = vweird.f32 %v1823
  %vm1841 = vweird.f32 %v1834
  %vm1842 = vmor %vm1840, %vm1841
  %v1843 = vsel %vm1842, %v1834, %v1839
  %v1844 = vmul.f32 %v1810, %v1833
  %v1845 = vmul.f32 %v1811, %v1843
  %v1847 = vperm.slane %v1799, 0
  %v1849 = vmul.f32 %v1844, %v1847
  %v1850 = vmul.f32 %v1845, %v1847
  %v1852 = vperm.slane %v1801, 0
  %v1854 = vadd.f32 %v1849, %v1852
  %v1855 = vadd.f32 %v1850, %v1852
  %v1856 = vld [vmem:[%s17] sm:$0xff]
  %v1857 = vld [vmem:[%s17 + $0x8] sm:$0xff]
  %v1858 = vld [vmem:[%s17 + $0x10] sm:$0xff]
  %v1859 = vld [vmem:[%s17 + $0x18] sm:$0xff]
  %v1860 = vld [vmem:[%s18] sm:$0x1]
  %v1862 = vperm.slane %v1860, 0
  %v1865 = vsel %vm121, %v1854, 0
  %v1868 = vsel %vm121, %v1855, 0
  %1870 = vmatpush.msra.mxu0 0.0
  %1871 = vmatpush.msra.mxu0 0.0
  %1872 = vmatpush.msra.mxu0 0.0
  %1873 = vmatpush.msra.mxu0 0.0
  %1874 = vmatpush.msra.mxu0 0.0
  %1875 = vmatpush.msra.mxu0 0.0
  %1876 = vmatpush.msra.mxu0 0.0
  %1877 = vmatpush.msra.mxu0 0.0
  %1878 = vmatpush.msra.mxu0 0.0
  %1879 = vmatpush.msra.mxu0 0.0
  %1880 = vmatpush.msra.mxu0 0.0
  %1881 = vmatpush.msra.mxu0 0.0
  %1882 = vmatpush.msra.mxu0 %v1859
  %1883 = vmatpush.msra.mxu0 %v1858
  %1884 = vmatpush.msra.mxu0 %v1857
  %1885 = vmatpush.msra.mxu0 %v1856
  %1886 = vmatmul.f32.gmra.mxu0 %v1865
  %v1887 = vpop.f32.mrf.mxu0
  %v1888 = vadd.f32 %v1862, %v1887
  %1889 = vmatmul.f32.gmra.mxu0 %v1868
  %v1890 = vpop.f32.mrf.mxu0
  %v1891 = vadd.f32 %v1862, %v1890
  %1892 = vdwg.mxu0
  %vm1893 = vcmp.ge.f32.partialorder %v1888, 0.0
  %vm1894 = vcmp.ge.f32.partialorder %v1891, 0.0
  %v1895 = vmul.f32 %v1888, 0.05
  %v1896 = vmul.f32 %v1891, 0.05
  %v1897 = vsel %vm1893, %v1888, %v1895
  %v1898 = vsel %vm1894, %v1891, %v1896
  %v1899 = vld [vmem:[%s19] sm:$0xff]
  %v1900 = vld [vmem:[%s19 + $0x8] sm:$0xff]
  %v1901 = vld [vmem:[%s19 + $0x10] sm:$0xff]
  %v1902 = vld [vmem:[%s19 + $0x18] sm:$0xff]
  %v1903 = vld [vmem:[%s19 + $0x20] sm:$0xff]
  %v1904 = vld [vmem:[%s19 + $0x28] sm:$0xff]
  %v1905 = vld [vmem:[%s19 + $0x30] sm:$0xff]
  %v1906 = vld [vmem:[%s19 + $0x38] sm:$0xff]
  %v1907 = vld [vmem:[%s20] sm:$0x1]
  %v1909 = vperm.slane %v1907, 0
  %vm1911 = vcmask 523264
  %v1913 = vsel %vm1911, %v1897, 0
  %v1916 = vsel %vm1911, %v1898, 0
  %1918 = vmatpush.msra.mxu0 0.0
  %1919 = vmatpush.msra.mxu0 0.0
  %1920 = vmatpush.msra.mxu0 0.0
  %1921 = vmatpush.msra.mxu0 0.0
  %1922 = vmatpush.msra.mxu0 0.0
  %1923 = vmatpush.msra.mxu0 0.0
  %1924 = vmatpush.msra.mxu0 0.0
  %1925 = vmatpush.msra.mxu0 0.0
  %1926 = vmatpush.msra.mxu0 %v1906
  %1927 = vmatpush.msra.mxu0 %v1905
  %1928 = vmatpush.msra.mxu0 %v1904
  %1929 = vmatpush.msra.mxu0 %v1903
  %1930 = vmatpush.msra.mxu0 %v1902
  %1931 = vmatpush.msra.mxu0 %v1901
  %1932 = vmatpush.msra.mxu0 %v1900
  %1933 = vmatpush.msra.mxu0 %v1899
  %1934 = vmatmul.f32.gmra.mxu0 %v1913
  %v1935 = vpop.f32.mrf.mxu0
  %v1936 = vadd.f32 %v1909, %v1935
  %1937 = vmatmul.f32.gmra.mxu0 %v1916
  %v1938 = vpop.f32.mrf.mxu0
  %v1939 = vadd.f32 %v1909, %v1938
  %1940 = vdwg.mxu0
  %v1941 = vadd.f32 %v1936, %v1854
  %v1942 = vadd.f32 %v1939, %v1855
  %s1943 = scalar_lea.vmem %s15, 2
  %v1944 = vld [vmem:[%s1943] sm:$0x1]
  %s1945 = scalar_lea.vmem %s16, 2
  %v1946 = vld [vmem:[%s1945] sm:$0x1]
  %v1947 = vsel %vm121, %v1941, 0.0
  %1948 = vadd.xlane.f32.xlu0 %v1947
  %v1949 = vpop.xlane.xlu0 %1948
  %v1950 = vsel %vm121, %v1942, 0.0
  %1951 = vadd.xlane.f32.xlu0 %v1950
  %v1952 = vpop.xlane.xlu0 %1951
  %v1953 = vmul.f32 %v1949, %v892
  %v1954 = vmul.f32 %v1952, %v892
  %v1955 = vsub.f32 %v1941, %v1953
  %v1956 = vsub.f32 %v1942, %v1954
  %v1957 = vmul.f32 %v1955, %v1955
  %v1958 = vmul.f32 %v1956, %v1956
  %v1959 = vsel %vm121, %v1957, 0.0
  %1960 = vadd.xlane.f32.xlu0 %v1959
  %v1961 = vpop.xlane.xlu0 %1960
  %v1962 = vsel %vm121, %v1958, 0.0
  %1963 = vadd.xlane.f32.xlu0 %v1962
  %v1964 = vpop.xlane.xlu0 %1963
  %v1965 = vmul.f32 %v1961, %v892
  %v1966 = vmul.f32 %v1964, %v892
  %v1967 = vadd.f32 %v1965, 1e-05
  %v1968 = vadd.f32 %v1966, 1e-05
  %v1969 = vrsqrt.pop %v1967
  %v1970 = vmul.f32 %v1969, %v1967
  %v1971 = vmul.f32 %v1970, %v1969
  %v1972 = vmul.f32 0.5, %v1971
  %v1973 = vsub.f32 1.5, %v1972
  %v1974 = vmul.f32 %v1969, %v1973
  %vm1975 = vweird.f32 %v1967
  %vm1976 = vweird.f32 %v1969
  %vm1977 = vmor %vm1975, %vm1976
  %v1978 = vsel %vm1977, %v1969, %v1974
  %v1979 = vrsqrt.pop %v1968
  %v1980 = vmul.f32 %v1979, %v1968
  %v1981 = vmul.f32 %v1980, %v1979
  %v1982 = vmul.f32 0.5, %v1981
  %v1983 = vsub.f32 1.5, %v1982
  %v1984 = vmul.f32 %v1979, %v1983
  %vm1985 = vweird.f32 %v1968
  %vm1986 = vweird.f32 %v1979
  %vm1987 = vmor %vm1985, %vm1986
  %v1988 = vsel %vm1987, %v1979, %v1984
  %v1989 = vmul.f32 %v1955, %v1978
  %v1990 = vmul.f32 %v1956, %v1988
  %v1992 = vperm.slane %v1944, 0
  %v1994 = vmul.f32 %v1989, %v1992
  %v1995 = vmul.f32 %v1990, %v1992
  %v1997 = vperm.slane %v1946, 0
  %v1999 = vadd.f32 %v1994, %v1997
  %v2000 = vadd.f32 %v1995, %v1997
  %s2001 = scalar_lea.vmem %s5, 32
  %v2002 = vld [vmem:[%s2001] sm:$0xff]
  %v2003 = vld [vmem:[%s2001 + $0x8] sm:$0xff]
  %v2004 = vld [vmem:[%s2001 + $0x10] sm:$0xff]
  %v2005 = vld [vmem:[%s2001 + $0x18] sm:$0xff]
  %s2006 = scalar_lea.vmem %s6, 1
  %v2007 = vld [vmem:[%s2006] sm:$0x1]
  %v2009 = vperm.slane %v2007, 0
  %v2012 = vsel %vm121, %v1999, 0
  %v2015 = vsel %vm121, %v2000, 0
  %2017 = vmatpush.msra.mxu0 0.0
  %2018 = vmatpush.msra.mxu0 0.0
  %2019 = vmatpush.msra.mxu0 0.0
  %2020 = vmatpush.msra.mxu0 0.0
  %2021 = vmatpush.msra.mxu0 0.0
  %2022 = vmatpush.msra.mxu0 0.0
  %2023 = vmatpush.msra.mxu0 0.0
  %2024 = vmatpush.msra.mxu0 0.0
  %2025 = vmatpush.msra.mxu0 0.0
  %2026 = vmatpush.msra.mxu0 0.0
  %2027 = vmatpush.msra.mxu0 0.0
  %2028 = vmatpush.msra.mxu0 0.0
  %2029 = vmatpush.msra.mxu0 %v2005
  %2030 = vmatpush.msra.mxu0 %v2004
  %2031 = vmatpush.msra.mxu0 %v2003
  %2032 = vmatpush.msra.mxu0 %v2002
  %2033 = vmatmul.f32.gmra.mxu0 %v2012
  %v2034 = vpop.f32.mrf.mxu0
  %v2035 = vadd.f32 %v2009, %v2034
  %2036 = vmatmul.f32.gmra.mxu0 %v2015
  %v2037 = vpop.f32.mrf.mxu0
  %v2038 = vadd.f32 %v2009, %v2037
  %2039 = vdwg.mxu0
  %s2040 = scalar_lea.vmem %s7, 32
  %v2041 = vld [vmem:[%s2040] sm:$0xff]
  %v2042 = vld [vmem:[%s2040 + $0x8] sm:$0xff]
  %v2043 = vld [vmem:[%s2040 + $0x10] sm:$0xff]
  %v2044 = vld [vmem:[%s2040 + $0x18] sm:$0xff]
  %s2045 = scalar_lea.vmem %s8, 1
  %v2046 = vld [vmem:[%s2045] sm:$0x1]
  %2048 = vrot.lane.b32.xlu0 %v2035, 96
  %v2049 = vpop.permute.xlu0 %2048
  %v2050 = vsel %vm159, %v2035, 0
  %v2052 = vsel %vm159, %v2049, 0
  %2054 = vmatpush.xpose.msra.mxu0 0.0
  %2055 = vmatpush.xpose.msra.mxu0 0.0
  %2056 = vmatpush.xpose.msra.mxu0 0.0
  %2057 = vmatpush.xpose.msra.mxu0 0.0
  %2058 = vmatpush.xpose.msra.mxu0 0.0
  %2059 = vmatpush.xpose.msra.mxu0 0.0
  %2060 = vmatpush.xpose.msra.mxu0 0.0
  %2061 = vmatpush.xpose.msra.mxu0 0.0
  %2062 = vmatpush.xpose.msra.mxu0 0.0
  %2063 = vmatpush.xpose.msra.mxu0 0.0
  %2064 = vmatpush.xpose.msra.mxu0 0.0
  %2065 = vmatpush.xpose.msra.mxu0 0.0
  %2066 = vmatpush.xpose.msra.mxu0 0.0
  %2067 = vmatpush.xpose.msra.mxu0 0.0
  %2068 = vmatpush.xpose.msra.mxu0 0.0
  %2069 = vmatpush.xpose.msra.mxu0 %v2052
  %2070 = vmatmul.f32.gmra.mxu0 %v2050
  %v2071 = vpop.f32.mrf.mxu0
  %v2072 = vadd.f32 0.0, %v2071
  %2073 = vdwg.mxu0
  %v2074 = vsel %vm112, %v2072, -1e+20
  %v2075 = vsel %vm159, %v2074, -inf
  %2076 = vmax.xlane.f32.xlu0 %v2075
  %v2077 = vpop.xlane.xlu0 %2076
  %v2078 = vsub.f32 %v2074, %v2077
  %v2079 = vmul.f32 %v2078, 1.442695
  %v2080 = vpow.pop %v2079
  %v2081 = vsel %vm159, %v2080, 0.0
  %2082 = vadd.xlane.f32.xlu0 %v2081
  %v2083 = vpop.xlane.xlu0 %2082
  %v2084 = vrcp.pop %v2083
  %v2085 = vmul.f32 %v2080, %v2084
  %2086 = vrot.lane.b32.xlu0 %v2035, 64
  %v2087 = vpop.permute.xlu0 %2086
  %v2090 = vsel %vm159, %v2085, 0
  %2092 = vmatpush.msra.mxu0 0.0
  %2093 = vmatpush.msra.mxu0 0.0
  %2094 = vmatpush.msra.mxu0 0.0
  %2095 = vmatpush.msra.mxu0 0.0
  %2096 = vmatpush.msra.mxu0 0.0
  %2097 = vmatpush.msra.mxu0 0.0
  %2098 = vmatpush.msra.mxu0 0.0
  %2099 = vmatpush.msra.mxu0 0.0
  %2100 = vmatpush.msra.mxu0 0.0
  %2101 = vmatpush.msra.mxu0 0.0
  %2102 = vmatpush.msra.mxu0 0.0
  %2103 = vmatpush.msra.mxu0 0.0
  %2104 = vmatpush.msra.mxu0 0.0
  %2105 = vmatpush.msra.mxu0 0.0
  %2106 = vmatpush.msra.mxu0 0.0
  %2107 = vmatpush.msra.mxu0 %v2087
  %2108 = vmatmul.f32.gmra.mxu0 %v2090
  %v2109 = vpop.f32.mrf.mxu0
  %v2110 = vadd.f32 0.0, %v2109
  %2111 = vdwg.mxu0
  %2112 = vrot.lane.b32.xlu0 %v2035, 120
  %v2113 = vpop.permute.xlu0 %2112
  %2114 = vrot.lane.b32.xlu0 %v2035, 88
  %v2115 = vpop.permute.xlu0 %2114
  %v2116 = vsel %vm159, %v2113, 0
  %v2118 = vsel %vm159, %v2115, 0
  %2120 = vmatpush.xpose.msra.mxu0 0.0
  %2121 = vmatpush.xpose.msra.mxu0 0.0
  %2122 = vmatpush.xpose.msra.mxu0 0.0
  %2123 = vmatpush.xpose.msra.mxu0 0.0
  %2124 = vmatpush.xpose.msra.mxu0 0.0
  %2125 = vmatpush.xpose.msra.mxu0 0.0
  %2126 = vmatpush.xpose.msra.mxu0 0.0
  %2127 = vmatpush.xpose.msra.mxu0 0.0
  %2128 = vmatpush.xpose.msra.mxu0 0.0
  %2129 = vmatpush.xpose.msra.mxu0 0.0
  %2130 = vmatpush.xpose.msra.mxu0 0.0
  %2131 = vmatpush.xpose.msra.mxu0 0.0
  %2132 = vmatpush.xpose.msra.mxu0 0.0
  %2133 = vmatpush.xpose.msra.mxu0 0.0
  %2134 = vmatpush.xpose.msra.mxu0 0.0
  %2135 = vmatpush.xpose.msra.mxu0 %v2118
  %2136 = vmatmul.f32.gmra.mxu0 %v2116
  %v2137 = vpop.f32.mrf.mxu0
  %v2138 = vadd.f32 0.0, %v2137
  %2139 = vdwg.mxu0
  %v2140 = vsel %vm112, %v2138, -1e+20
  %v2141 = vsel %vm159, %v2140, -inf
  %2142 = vmax.xlane.f32.xlu0 %v2141
  %v2143 = vpop.xlane.xlu0 %2142
  %v2144 = vsub.f32 %v2140, %v2143
  %v2145 = vmul.f32 %v2144, 1.442695
  %v2146 = vpow.pop %v2145
  %v2147 = vsel %vm159, %v2146, 0.0
  %2148 = vadd.xlane.f32.xlu0 %v2147
  %v2149 = vpop.xlane.xlu0 %2148
  %v2150 = vrcp.pop %v2149
  %v2151 = vmul.f32 %v2146, %v2150
  %2152 = vrot.lane.b32.xlu0 %v2035, 56
  %v2153 = vpop.permute.xlu0 %2152
  %v2156 = vsel %vm159, %v2151, 0
  %2158 = vmatpush.msra.mxu0 0.0
  %2159 = vmatpush.msra.mxu0 0.0
  %2160 = vmatpush.msra.mxu0 0.0
  %2161 = vmatpush.msra.mxu0 0.0
  %2162 = vmatpush.msra.mxu0 0.0
  %2163 = vmatpush.msra.mxu0 0.0
  %2164 = vmatpush.msra.mxu0 0.0
  %2165 = vmatpush.msra.mxu0 0.0
  %2166 = vmatpush.msra.mxu0 0.0
  %2167 = vmatpush.msra.mxu0 0.0
  %2168 = vmatpush.msra.mxu0 0.0
  %2169 = vmatpush.msra.mxu0 0.0
  %2170 = vmatpush.msra.mxu0 0.0
  %2171 = vmatpush.msra.mxu0 0.0
  %2172 = vmatpush.msra.mxu0 0.0
  %2173 = vmatpush.msra.mxu0 %v2153
  %2174 = vmatmul.f32.gmra.mxu0 %v2156
  %v2175 = vpop.f32.mrf.mxu0
  %v2176 = vadd.f32 0.0, %v2175
  %2177 = vdwg.mxu0
  %v2179 = vsel %vm159, %v2176, 0
  %2181 = vmatpush.msra.mxu0 0.0
  %2182 = vmatpush.msra.mxu0 0.0
  %2183 = vmatpush.msra.mxu0 0.0
  %2184 = vmatpush.msra.mxu0 0.0
  %2185 = vmatpush.msra.mxu0 0.0
  %2186 = vmatpush.msra.mxu0 0.0
  %2187 = vmatpush.msra.mxu0 0.0
  %2188 = vmatpush.msra.mxu0 0.0
  %2189 = vmatpush.msra.mxu0 0.0
  %2190 = vmatpush.msra.mxu0 0.0
  %2191 = vmatpush.msra.mxu0 0.0
  %2192 = vmatpush.msra.mxu0 0.0
  %2193 = vmatpush.msra.mxu0 0.0
  %2194 = vmatpush.msra.mxu0 0.0
  %2195 = vmatpush.msra.mxu0 0.0
  %2196 = vmatpush.msra.mxu0 %v2042
  %2197 = vmatmul.f32.gmra.mxu0 %v2179
  %v2198 = vpop.f32.mrf.mxu0
  %v2199 = vadd.f32 0.0, %v2198
  %2200 = vdwg.mxu0
  %v2202 = vsel %vm159, %v2110, 0
  %2204 = vmatpush.msra.mxu0 0.0
  %2205 = vmatpush.msra.mxu0 0.0
  %2206 = vmatpush.msra.mxu0 0.0
  %2207 = vmatpush.msra.mxu0 0.0
  %2208 = vmatpush.msra.mxu0 0.0
  %2209 = vmatpush.msra.mxu0 0.0
  %2210 = vmatpush.msra.mxu0 0.0
  %2211 = vmatpush.msra.mxu0 0.0
  %2212 = vmatpush.msra.mxu0 0.0
  %2213 = vmatpush.msra.mxu0 0.0
  %2214 = vmatpush.msra.mxu0 0.0
  %2215 = vmatpush.msra.mxu0 0.0
  %2216 = vmatpush.msra.mxu0 0.0
  %2217 = vmatpush.msra.mxu0 0.0
  %2218 = vmatpush.msra.mxu0 0.0
  %2219 = vmatpush.msra.mxu0 %v2041
  %2220 = vmatmul.f32.gmra.mxu0 %v2202
  %v2221 = vpop.f32.mrf.mxu0
  %v2222 = vadd.f32 %v2199, %v2221
  %2223 = vdwg.mxu0
  %2224 = vrot.lane.b32.xlu0 %v2035, 112
  %v2225 = vpop.permute.xlu0 %2224
  %2226 = vrot.lane.b32.xlu0 %v2035, 80
  %v2227 = vpop.permute.xlu0 %2226
  %v2228 = vsel %vm159, %v2225, 0
  %v2230 = vsel %vm159, %v2227, 0
  %2232 = vmatpush.xpose.msra.mxu0 0.0
  %2233 = vmatpush.xpose.msra.mxu0 0.0
  %2234 = vmatpush.xpose.msra.mxu0 0.0
  %2235 = vmatpush.xpose.msra.mxu0 0.0
  %2236 = vmatpush.xpose.msra.mxu0 0.0
  %2237 = vmatpush.xpose.msra.mxu0 0.0
  %2238 = vmatpush.xpose.msra.mxu0 0.0
  %2239 = vmatpush.xpose.msra.mxu0 0.0
  %2240 = vmatpush.xpose.msra.mxu0 0.0
  %2241 = vmatpush.xpose.msra.mxu0 0.0
  %2242 = vmatpush.xpose.msra.mxu0 0.0
  %2243 = vmatpush.xpose.msra.mxu0 0.0
  %2244 = vmatpush.xpose.msra.mxu0 0.0
  %2245 = vmatpush.xpose.msra.mxu0 0.0
  %2246 = vmatpush.xpose.msra.mxu0 0.0
  %2247 = vmatpush.xpose.msra.mxu0 %v2230
  %2248 = vmatmul.f32.gmra.mxu0 %v2228
  %v2249 = vpop.f32.mrf.mxu0
  %v2250 = vadd.f32 0.0, %v2249
  %2251 = vdwg.mxu0
  %v2252 = vsel %vm112, %v2250, -1e+20
  %v2253 = vsel %vm159, %v2252, -inf
  %2254 = vmax.xlane.f32.xlu0 %v2253
  %v2255 = vpop.xlane.xlu0 %2254
  %v2256 = vsub.f32 %v2252, %v2255
  %v2257 = vmul.f32 %v2256, 1.442695
  %v2258 = vpow.pop %v2257
  %v2259 = vsel %vm159, %v2258, 0.0
  %2260 = vadd.xlane.f32.xlu0 %v2259
  %v2261 = vpop.xlane.xlu0 %2260
  %v2262 = vrcp.pop %v2261
  %v2263 = vmul.f32 %v2258, %v2262
  %2264 = vrot.lane.b32.xlu0 %v2035, 48
  %v2265 = vpop.permute.xlu0 %2264
  %v2268 = vsel %vm159, %v2263, 0
  %2270 = vmatpush.msra.mxu0 0.0
  %2271 = vmatpush.msra.mxu0 0.0
  %2272 = vmatpush.msra.mxu0 0.0
  %2273 = vmatpush.msra.mxu0 0.0
  %2274 = vmatpush.msra.mxu0 0.0
  %2275 = vmatpush.msra.mxu0 0.0
  %2276 = vmatpush.msra.mxu0 0.0
  %2277 = vmatpush.msra.mxu0 0.0
  %2278 = vmatpush.msra.mxu0 0.0
  %2279 = vmatpush.msra.mxu0 0.0
  %2280 = vmatpush.msra.mxu0 0.0
  %2281 = vmatpush.msra.mxu0 0.0
  %2282 = vmatpush.msra.mxu0 0.0
  %2283 = vmatpush.msra.mxu0 0.0
  %2284 = vmatpush.msra.mxu0 0.0
  %2285 = vmatpush.msra.mxu0 %v2265
  %2286 = vmatmul.f32.gmra.mxu0 %v2268
  %v2287 = vpop.f32.mrf.mxu0
  %v2288 = vadd.f32 0.0, %v2287
  %2289 = vdwg.mxu0
  %v2291 = vsel %vm159, %v2288, 0
  %2293 = vmatpush.msra.mxu0 0.0
  %2294 = vmatpush.msra.mxu0 0.0
  %2295 = vmatpush.msra.mxu0 0.0
  %2296 = vmatpush.msra.mxu0 0.0
  %2297 = vmatpush.msra.mxu0 0.0
  %2298 = vmatpush.msra.mxu0 0.0
  %2299 = vmatpush.msra.mxu0 0.0
  %2300 = vmatpush.msra.mxu0 0.0
  %2301 = vmatpush.msra.mxu0 0.0
  %2302 = vmatpush.msra.mxu0 0.0
  %2303 = vmatpush.msra.mxu0 0.0
  %2304 = vmatpush.msra.mxu0 0.0
  %2305 = vmatpush.msra.mxu0 0.0
  %2306 = vmatpush.msra.mxu0 0.0
  %2307 = vmatpush.msra.mxu0 0.0
  %2308 = vmatpush.msra.mxu0 %v2043
  %2309 = vmatmul.f32.gmra.mxu0 %v2291
  %v2310 = vpop.f32.mrf.mxu0
  %v2311 = vadd.f32 0.0, %v2310
  %2312 = vdwg.mxu0
  %v2313 = vadd.f32 %v2222, %v2311
  %2314 = vrot.lane.b32.xlu0 %v2035, 104
  %v2315 = vpop.permute.xlu0 %2314
  %2316 = vrot.lane.b32.xlu0 %v2035, 72
  %v2317 = vpop.permute.xlu0 %2316
  %v2318 = vsel %vm159, %v2315, 0
  %v2320 = vsel %vm159, %v2317, 0
  %2322 = vmatpush.xpose.msra.mxu0 0.0
  %2323 = vmatpush.xpose.msra.mxu0 0.0
  %2324 = vmatpush.xpose.msra.mxu0 0.0
  %2325 = vmatpush.xpose.msra.mxu0 0.0
  %2326 = vmatpush.xpose.msra.mxu0 0.0
  %2327 = vmatpush.xpose.msra.mxu0 0.0
  %2328 = vmatpush.xpose.msra.mxu0 0.0
  %2329 = vmatpush.xpose.msra.mxu0 0.0
  %2330 = vmatpush.xpose.msra.mxu0 0.0
  %2331 = vmatpush.xpose.msra.mxu0 0.0
  %2332 = vmatpush.xpose.msra.mxu0 0.0
  %2333 = vmatpush.xpose.msra.mxu0 0.0
  %2334 = vmatpush.xpose.msra.mxu0 0.0
  %2335 = vmatpush.xpose.msra.mxu0 0.0
  %2336 = vmatpush.xpose.msra.mxu0 0.0
  %2337 = vmatpush.xpose.msra.mxu0 %v2320
  %2338 = vmatmul.f32.gmra.mxu0 %v2318
  %v2339 = vpop.f32.mrf.mxu0
  %v2340 = vadd.f32 0.0, %v2339
  %2341 = vdwg.mxu0
  %v2342 = vsel %vm112, %v2340, -1e+20
  %v2343 = vsel %vm159, %v2342, -inf
  %2344 = vmax.xlane.f32.xlu0 %v2343
  %v2345 = vpop.xlane.xlu0 %2344
  %v2346 = vsub.f32 %v2342, %v2345
  %v2347 = vmul.f32 %v2346, 1.442695
  %v2348 = vpow.pop %v2347
  %v2349 = vsel %vm159, %v2348, 0.0
  %2350 = vadd.xlane.f32.xlu0 %v2349
  %v2351 = vpop.xlane.xlu0 %2350
  %v2352 = vrcp.pop %v2351
  %v2353 = vmul.f32 %v2348, %v2352
  %2354 = vrot.lane.b32.xlu0 %v2035, 40
  %v2355 = vpop.permute.xlu0 %2354
  %v2358 = vsel %vm159, %v2353, 0
  %2360 = vmatpush.msra.mxu0 0.0
  %2361 = vmatpush.msra.mxu0 0.0
  %2362 = vmatpush.msra.mxu0 0.0
  %2363 = vmatpush.msra.mxu0 0.0
  %2364 = vmatpush.msra.mxu0 0.0
  %2365 = vmatpush.msra.mxu0 0.0
  %2366 = vmatpush.msra.mxu0 0.0
  %2367 = vmatpush.msra.mxu0 0.0
  %2368 = vmatpush.msra.mxu0 0.0
  %2369 = vmatpush.msra.mxu0 0.0
  %2370 = vmatpush.msra.mxu0 0.0
  %2371 = vmatpush.msra.mxu0 0.0
  %2372 = vmatpush.msra.mxu0 0.0
  %2373 = vmatpush.msra.mxu0 0.0
  %2374 = vmatpush.msra.mxu0 0.0
  %2375 = vmatpush.msra.mxu0 %v2355
  %2376 = vmatmul.f32.gmra.mxu0 %v2358
  %v2377 = vpop.f32.mrf.mxu0
  %v2378 = vadd.f32 0.0, %v2377
  %2379 = vdwg.mxu0
  %v2381 = vsel %vm159, %v2378, 0
  %2383 = vmatpush.msra.mxu0 0.0
  %2384 = vmatpush.msra.mxu0 0.0
  %2385 = vmatpush.msra.mxu0 0.0
  %2386 = vmatpush.msra.mxu0 0.0
  %2387 = vmatpush.msra.mxu0 0.0
  %2388 = vmatpush.msra.mxu0 0.0
  %2389 = vmatpush.msra.mxu0 0.0
  %2390 = vmatpush.msra.mxu0 0.0
  %2391 = vmatpush.msra.mxu0 0.0
  %2392 = vmatpush.msra.mxu0 0.0
  %2393 = vmatpush.msra.mxu0 0.0
  %2394 = vmatpush.msra.mxu0 0.0
  %2395 = vmatpush.msra.mxu0 0.0
  %2396 = vmatpush.msra.mxu0 0.0
  %2397 = vmatpush.msra.mxu0 0.0
  %2398 = vmatpush.msra.mxu0 %v2044
  %2399 = vmatmul.f32.gmra.mxu0 %v2381
  %v2400 = vpop.f32.mrf.mxu0
  %v2401 = vadd.f32 0.0, %v2400
  %2402 = vdwg.mxu0
  %v2403 = vadd.f32 %v2313, %v2401
  %2405 = vrot.lane.b32.xlu0 %v2038, 96
  %v2406 = vpop.permute.xlu0 %2405
  %v2407 = vsel %vm159, %v2038, 0
  %v2409 = vsel %vm159, %v2406, 0
  %2411 = vmatpush.xpose.msra.mxu0 0.0
  %2412 = vmatpush.xpose.msra.mxu0 0.0
  %2413 = vmatpush.xpose.msra.mxu0 0.0
  %2414 = vmatpush.xpose.msra.mxu0 0.0
  %2415 = vmatpush.xpose.msra.mxu0 0.0
  %2416 = vmatpush.xpose.msra.mxu0 0.0
  %2417 = vmatpush.xpose.msra.mxu0 0.0
  %2418 = vmatpush.xpose.msra.mxu0 0.0
  %2419 = vmatpush.xpose.msra.mxu0 0.0
  %2420 = vmatpush.xpose.msra.mxu0 0.0
  %2421 = vmatpush.xpose.msra.mxu0 0.0
  %2422 = vmatpush.xpose.msra.mxu0 0.0
  %2423 = vmatpush.xpose.msra.mxu0 0.0
  %2424 = vmatpush.xpose.msra.mxu0 0.0
  %2425 = vmatpush.xpose.msra.mxu0 0.0
  %2426 = vmatpush.xpose.msra.mxu0 %v2409
  %2427 = vmatmul.f32.gmra.mxu0 %v2407
  %v2428 = vpop.f32.mrf.mxu0
  %v2429 = vadd.f32 0.0, %v2428
  %2430 = vdwg.mxu0
  %v2431 = vsel %vm112, %v2429, -1e+20
  %v2432 = vsel %vm159, %v2431, -inf
  %2433 = vmax.xlane.f32.xlu0 %v2432
  %v2434 = vpop.xlane.xlu0 %2433
  %v2435 = vsub.f32 %v2431, %v2434
  %v2436 = vmul.f32 %v2435, 1.442695
  %v2437 = vpow.pop %v2436
  %v2438 = vsel %vm159, %v2437, 0.0
  %2439 = vadd.xlane.f32.xlu0 %v2438
  %v2440 = vpop.xlane.xlu0 %2439
  %v2441 = vrcp.pop %v2440
  %v2442 = vmul.f32 %v2437, %v2441
  %2443 = vrot.lane.b32.xlu0 %v2038, 64
  %v2444 = vpop.permute.xlu0 %2443
  %v2447 = vsel %vm159, %v2442, 0
  %2449 = vmatpush.msra.mxu0 0.0
  %2450 = vmatpush.msra.mxu0 0.0
  %2451 = vmatpush.msra.mxu0 0.0
  %2452 = vmatpush.msra.mxu0 0.0
  %2453 = vmatpush.msra.mxu0 0.0
  %2454 = vmatpush.msra.mxu0 0.0
  %2455 = vmatpush.msra.mxu0 0.0
  %2456 = vmatpush.msra.mxu0 0.0
  %2457 = vmatpush.msra.mxu0 0.0
  %2458 = vmatpush.msra.mxu0 0.0
  %2459 = vmatpush.msra.mxu0 0.0
  %2460 = vmatpush.msra.mxu0 0.0
  %2461 = vmatpush.msra.mxu0 0.0
  %2462 = vmatpush.msra.mxu0 0.0
  %2463 = vmatpush.msra.mxu0 0.0
  %2464 = vmatpush.msra.mxu0 %v2444
  %2465 = vmatmul.f32.gmra.mxu0 %v2447
  %v2466 = vpop.f32.mrf.mxu0
  %v2467 = vadd.f32 0.0, %v2466
  %2468 = vdwg.mxu0
  %2469 = vrot.lane.b32.xlu0 %v2038, 120
  %v2470 = vpop.permute.xlu0 %2469
  %2471 = vrot.lane.b32.xlu0 %v2038, 88
  %v2472 = vpop.permute.xlu0 %2471
  %v2473 = vsel %vm159, %v2470, 0
  %v2475 = vsel %vm159, %v2472, 0
  %2477 = vmatpush.xpose.msra.mxu0 0.0
  %2478 = vmatpush.xpose.msra.mxu0 0.0
  %2479 = vmatpush.xpose.msra.mxu0 0.0
  %2480 = vmatpush.xpose.msra.mxu0 0.0
  %2481 = vmatpush.xpose.msra.mxu0 0.0
  %2482 = vmatpush.xpose.msra.mxu0 0.0
  %2483 = vmatpush.xpose.msra.mxu0 0.0
  %2484 = vmatpush.xpose.msra.mxu0 0.0
  %2485 = vmatpush.xpose.msra.mxu0 0.0
  %2486 = vmatpush.xpose.msra.mxu0 0.0
  %2487 = vmatpush.xpose.msra.mxu0 0.0
  %2488 = vmatpush.xpose.msra.mxu0 0.0
  %2489 = vmatpush.xpose.msra.mxu0 0.0
  %2490 = vmatpush.xpose.msra.mxu0 0.0
  %2491 = vmatpush.xpose.msra.mxu0 0.0
  %2492 = vmatpush.xpose.msra.mxu0 %v2475
  %2493 = vmatmul.f32.gmra.mxu0 %v2473
  %v2494 = vpop.f32.mrf.mxu0
  %v2495 = vadd.f32 0.0, %v2494
  %2496 = vdwg.mxu0
  %v2497 = vsel %vm112, %v2495, -1e+20
  %v2498 = vsel %vm159, %v2497, -inf
  %2499 = vmax.xlane.f32.xlu0 %v2498
  %v2500 = vpop.xlane.xlu0 %2499
  %v2501 = vsub.f32 %v2497, %v2500
  %v2502 = vmul.f32 %v2501, 1.442695
  %v2503 = vpow.pop %v2502
  %v2504 = vsel %vm159, %v2503, 0.0
  %2505 = vadd.xlane.f32.xlu0 %v2504
  %v2506 = vpop.xlane.xlu0 %2505
  %v2507 = vrcp.pop %v2506
  %v2508 = vmul.f32 %v2503, %v2507
  %2509 = vrot.lane.b32.xlu0 %v2038, 56
  %v2510 = vpop.permute.xlu0 %2509
  %v2513 = vsel %vm159, %v2508, 0
  %2515 = vmatpush.msra.mxu0 0.0
  %2516 = vmatpush.msra.mxu0 0.0
  %2517 = vmatpush.msra.mxu0 0.0
  %2518 = vmatpush.msra.mxu0 0.0
  %2519 = vmatpush.msra.mxu0 0.0
  %2520 = vmatpush.msra.mxu0 0.0
  %2521 = vmatpush.msra.mxu0 0.0
  %2522 = vmatpush.msra.mxu0 0.0
  %2523 = vmatpush.msra.mxu0 0.0
  %2524 = vmatpush.msra.mxu0 0.0
  %2525 = vmatpush.msra.mxu0 0.0
  %2526 = vmatpush.msra.mxu0 0.0
  %2527 = vmatpush.msra.mxu0 0.0
  %2528 = vmatpush.msra.mxu0 0.0
  %2529 = vmatpush.msra.mxu0 0.0
  %2530 = vmatpush.msra.mxu0 %v2510
  %2531 = vmatmul.f32.gmra.mxu0 %v2513
  %v2532 = vpop.f32.mrf.mxu0
  %v2533 = vadd.f32 0.0, %v2532
  %2534 = vdwg.mxu0
  %v2536 = vsel %vm159, %v2533, 0
  %2538 = vmatpush.msra.mxu0 0.0
  %2539 = vmatpush.msra.mxu0 0.0
  %2540 = vmatpush.msra.mxu0 0.0
  %2541 = vmatpush.msra.mxu0 0.0
  %2542 = vmatpush.msra.mxu0 0.0
  %2543 = vmatpush.msra.mxu0 0.0
  %2544 = vmatpush.msra.mxu0 0.0
  %2545 = vmatpush.msra.mxu0 0.0
  %2546 = vmatpush.msra.mxu0 0.0
  %2547 = vmatpush.msra.mxu0 0.0
  %2548 = vmatpush.msra.mxu0 0.0
  %2549 = vmatpush.msra.mxu0 0.0
  %2550 = vmatpush.msra.mxu0 0.0
  %2551 = vmatpush.msra.mxu0 0.0
  %2552 = vmatpush.msra.mxu0 0.0
  %2553 = vmatpush.msra.mxu0 %v2042
  %2554 = vmatmul.f32.gmra.mxu0 %v2536
  %v2555 = vpop.f32.mrf.mxu0
  %v2556 = vadd.f32 0.0, %v2555
  %2557 = vdwg.mxu0
  %v2559 = vsel %vm159, %v2467, 0
  %2561 = vmatpush.msra.mxu0 0.0
  %2562 = vmatpush.msra.mxu0 0.0
  %2563 = vmatpush.msra.mxu0 0.0
  %2564 = vmatpush.msra.mxu0 0.0
  %2565 = vmatpush.msra.mxu0 0.0
  %2566 = vmatpush.msra.mxu0 0.0
  %2567 = vmatpush.msra.mxu0 0.0
  %2568 = vmatpush.msra.mxu0 0.0
  %2569 = vmatpush.msra.mxu0 0.0
  %2570 = vmatpush.msra.mxu0 0.0
  %2571 = vmatpush.msra.mxu0 0.0
  %2572 = vmatpush.msra.mxu0 0.0
  %2573 = vmatpush.msra.mxu0 0.0
  %2574 = vmatpush.msra.mxu0 0.0
  %2575 = vmatpush.msra.mxu0 0.0
  %2576 = vmatpush.msra.mxu0 %v2041
  %2577 = vmatmul.f32.gmra.mxu0 %v2559
  %v2578 = vpop.f32.mrf.mxu0
  %v2579 = vadd.f32 %v2556, %v2578
  %2580 = vdwg.mxu0
  %2581 = vrot.lane.b32.xlu0 %v2038, 112
  %v2582 = vpop.permute.xlu0 %2581
  %2583 = vrot.lane.b32.xlu0 %v2038, 80
  %v2584 = vpop.permute.xlu0 %2583
  %v2585 = vsel %vm159, %v2582, 0
  %v2587 = vsel %vm159, %v2584, 0
  %2589 = vmatpush.xpose.msra.mxu0 0.0
  %2590 = vmatpush.xpose.msra.mxu0 0.0
  %2591 = vmatpush.xpose.msra.mxu0 0.0
  %2592 = vmatpush.xpose.msra.mxu0 0.0
  %2593 = vmatpush.xpose.msra.mxu0 0.0
  %2594 = vmatpush.xpose.msra.mxu0 0.0
  %2595 = vmatpush.xpose.msra.mxu0 0.0
  %2596 = vmatpush.xpose.msra.mxu0 0.0
  %2597 = vmatpush.xpose.msra.mxu0 0.0
  %2598 = vmatpush.xpose.msra.mxu0 0.0
  %2599 = vmatpush.xpose.msra.mxu0 0.0
  %2600 = vmatpush.xpose.msra.mxu0 0.0
  %2601 = vmatpush.xpose.msra.mxu0 0.0
  %2602 = vmatpush.xpose.msra.mxu0 0.0
  %2603 = vmatpush.xpose.msra.mxu0 0.0
  %2604 = vmatpush.xpose.msra.mxu0 %v2587
  %2605 = vmatmul.f32.gmra.mxu0 %v2585
  %v2606 = vpop.f32.mrf.mxu0
  %v2607 = vadd.f32 0.0, %v2606
  %2608 = vdwg.mxu0
  %v2609 = vsel %vm112, %v2607, -1e+20
  %v2610 = vsel %vm159, %v2609, -inf
  %2611 = vmax.xlane.f32.xlu0 %v2610
  %v2612 = vpop.xlane.xlu0 %2611
  %v2613 = vsub.f32 %v2609, %v2612
  %v2614 = vmul.f32 %v2613, 1.442695
  %v2615 = vpow.pop %v2614
  %v2616 = vsel %vm159, %v2615, 0.0
  %2617 = vadd.xlane.f32.xlu0 %v2616
  %v2618 = vpop.xlane.xlu0 %2617
  %v2619 = vrcp.pop %v2618
  %v2620 = vmul.f32 %v2615, %v2619
  %2621 = vrot.lane.b32.xlu0 %v2038, 48
  %v2622 = vpop.permute.xlu0 %2621
  %v2625 = vsel %vm159, %v2620, 0
  %2627 = vmatpush.msra.mxu0 0.0
  %2628 = vmatpush.msra.mxu0 0.0
  %2629 = vmatpush.msra.mxu0 0.0
  %2630 = vmatpush.msra.mxu0 0.0
  %2631 = vmatpush.msra.mxu0 0.0
  %2632 = vmatpush.msra.mxu0 0.0
  %2633 = vmatpush.msra.mxu0 0.0
  %2634 = vmatpush.msra.mxu0 0.0
  %2635 = vmatpush.msra.mxu0 0.0
  %2636 = vmatpush.msra.mxu0 0.0
  %2637 = vmatpush.msra.mxu0 0.0
  %2638 = vmatpush.msra.mxu0 0.0
  %2639 = vmatpush.msra.mxu0 0.0
  %2640 = vmatpush.msra.mxu0 0.0
  %2641 = vmatpush.msra.mxu0 0.0
  %2642 = vmatpush.msra.mxu0 %v2622
  %2643 = vmatmul.f32.gmra.mxu0 %v2625
  %v2644 = vpop.f32.mrf.mxu0
  %v2645 = vadd.f32 0.0, %v2644
  %2646 = vdwg.mxu0
  %v2648 = vsel %vm159, %v2645, 0
  %2650 = vmatpush.msra.mxu0 0.0
  %2651 = vmatpush.msra.mxu0 0.0
  %2652 = vmatpush.msra.mxu0 0.0
  %2653 = vmatpush.msra.mxu0 0.0
  %2654 = vmatpush.msra.mxu0 0.0
  %2655 = vmatpush.msra.mxu0 0.0
  %2656 = vmatpush.msra.mxu0 0.0
  %2657 = vmatpush.msra.mxu0 0.0
  %2658 = vmatpush.msra.mxu0 0.0
  %2659 = vmatpush.msra.mxu0 0.0
  %2660 = vmatpush.msra.mxu0 0.0
  %2661 = vmatpush.msra.mxu0 0.0
  %2662 = vmatpush.msra.mxu0 0.0
  %2663 = vmatpush.msra.mxu0 0.0
  %2664 = vmatpush.msra.mxu0 0.0
  %2665 = vmatpush.msra.mxu0 %v2043
  %2666 = vmatmul.f32.gmra.mxu0 %v2648
  %v2667 = vpop.f32.mrf.mxu0
  %v2668 = vadd.f32 0.0, %v2667
  %2669 = vdwg.mxu0
  %v2670 = vadd.f32 %v2579, %v2668
  %2671 = vrot.lane.b32.xlu0 %v2038, 104
  %v2672 = vpop.permute.xlu0 %2671
  %2673 = vrot.lane.b32.xlu0 %v2038, 72
  %v2674 = vpop.permute.xlu0 %2673
  %v2675 = vsel %vm159, %v2672, 0
  %v2677 = vsel %vm159, %v2674, 0
  %2679 = vmatpush.xpose.msra.mxu0 0.0
  %2680 = vmatpush.xpose.msra.mxu0 0.0
  %2681 = vmatpush.xpose.msra.mxu0 0.0
  %2682 = vmatpush.xpose.msra.mxu0 0.0
  %2683 = vmatpush.xpose.msra.mxu0 0.0
  %2684 = vmatpush.xpose.msra.mxu0 0.0
  %2685 = vmatpush.xpose.msra.mxu0 0.0
  %2686 = vmatpush.xpose.msra.mxu0 0.0
  %2687 = vmatpush.xpose.msra.mxu0 0.0
  %2688 = vmatpush.xpose.msra.mxu0 0.0
  %2689 = vmatpush.xpose.msra.mxu0 0.0
  %2690 = vmatpush.xpose.msra.mxu0 0.0
  %2691 = vmatpush.xpose.msra.mxu0 0.0
  %2692 = vmatpush.xpose.msra.mxu0 0.0
  %2693 = vmatpush.xpose.msra.mxu0 0.0
  %2694 = vmatpush.xpose.msra.mxu0 %v2677
  %2695 = vmatmul.f32.gmra.mxu0 %v2675
  %v2696 = vpop.f32.mrf.mxu0
  %v2697 = vadd.f32 0.0, %v2696
  %2698 = vdwg.mxu0
  %v2699 = vsel %vm112, %v2697, -1e+20
  %v2700 = vsel %vm159, %v2699, -inf
  %2701 = vmax.xlane.f32.xlu0 %v2700
  %v2702 = vpop.xlane.xlu0 %2701
  %v2703 = vsub.f32 %v2699, %v2702
  %v2704 = vmul.f32 %v2703, 1.442695
  %v2705 = vpow.pop %v2704
  %v2706 = vsel %vm159, %v2705, 0.0
  %2707 = vadd.xlane.f32.xlu0 %v2706
  %v2708 = vpop.xlane.xlu0 %2707
  %v2709 = vrcp.pop %v2708
  %v2710 = vmul.f32 %v2705, %v2709
  %2711 = vrot.lane.b32.xlu0 %v2038, 40
  %v2712 = vpop.permute.xlu0 %2711
  %v2715 = vsel %vm159, %v2710, 0
  %2717 = vmatpush.msra.mxu0 0.0
  %2718 = vmatpush.msra.mxu0 0.0
  %2719 = vmatpush.msra.mxu0 0.0
  %2720 = vmatpush.msra.mxu0 0.0
  %2721 = vmatpush.msra.mxu0 0.0
  %2722 = vmatpush.msra.mxu0 0.0
  %2723 = vmatpush.msra.mxu0 0.0
  %2724 = vmatpush.msra.mxu0 0.0
  %2725 = vmatpush.msra.mxu0 0.0
  %2726 = vmatpush.msra.mxu0 0.0
  %2727 = vmatpush.msra.mxu0 0.0
  %2728 = vmatpush.msra.mxu0 0.0
  %2729 = vmatpush.msra.mxu0 0.0
  %2730 = vmatpush.msra.mxu0 0.0
  %2731 = vmatpush.msra.mxu0 0.0
  %2732 = vmatpush.msra.mxu0 %v2712
  %2733 = vmatmul.f32.gmra.mxu0 %v2715
  %v2734 = vpop.f32.mrf.mxu0
  %v2735 = vadd.f32 0.0, %v2734
  %2736 = vdwg.mxu0
  %v2738 = vsel %vm159, %v2735, 0
  %2740 = vmatpush.msra.mxu0 0.0
  %2741 = vmatpush.msra.mxu0 0.0
  %2742 = vmatpush.msra.mxu0 0.0
  %2743 = vmatpush.msra.mxu0 0.0
  %2744 = vmatpush.msra.mxu0 0.0
  %2745 = vmatpush.msra.mxu0 0.0
  %2746 = vmatpush.msra.mxu0 0.0
  %2747 = vmatpush.msra.mxu0 0.0
  %2748 = vmatpush.msra.mxu0 0.0
  %2749 = vmatpush.msra.mxu0 0.0
  %2750 = vmatpush.msra.mxu0 0.0
  %2751 = vmatpush.msra.mxu0 0.0
  %2752 = vmatpush.msra.mxu0 0.0
  %2753 = vmatpush.msra.mxu0 0.0
  %2754 = vmatpush.msra.mxu0 0.0
  %2755 = vmatpush.msra.mxu0 %v2044
  %2756 = vmatmul.f32.gmra.mxu0 %v2738
  %v2757 = vpop.f32.mrf.mxu0
  %v2758 = vadd.f32 0.0, %v2757
  %2759 = vdwg.mxu0
  %v2760 = vadd.f32 %v2670, %v2758
  %v2762 = vperm.slane %v2046, 0
  %v2764 = vadd.f32 %v2403, %v2762
  %v2765 = vadd.f32 %v2760, %v2762
  %v2766 = vadd.f32 %v2764, %v1999
  %v2767 = vadd.f32 %v2765, %v2000
  %s2768 = scalar_lea.vmem %s15, 3
  %v2769 = vld [vmem:[%s2768] sm:$0x1]
  %s2770 = scalar_lea.vmem %s16, 3
  %v2771 = vld [vmem:[%s2770] sm:$0x1]
  %v2772 = vsel %vm121, %v2766, 0.0
  %2773 = vadd.xlane.f32.xlu0 %v2772
  %v2774 = vpop.xlane.xlu0 %2773
  %v2775 = vsel %vm121, %v2767, 0.0
  %2776 = vadd.xlane.f32.xlu0 %v2775
  %v2777 = vpop.xlane.xlu0 %2776
  %v2778 = vmul.f32 %v2774, %v892
  %v2779 = vmul.f32 %v2777, %v892
  %v2780 = vsub.f32 %v2766, %v2778
  %v2781 = vsub.f32 %v2767, %v2779
  %v2782 = vmul.f32 %v2780, %v2780
  %v2783 = vmul.f32 %v2781, %v2781
  %v2784 = vsel %vm121, %v2782, 0.0
  %2785 = vadd.xlane.f32.xlu0 %v2784
  %v2786 = vpop.xlane.xlu0 %2785
  %v2787 = vsel %vm121, %v2783, 0.0
  %2788 = vadd.xlane.f32.xlu0 %v2787
  %v2789 = vpop.xlane.xlu0 %2788
  %v2790 = vmul.f32 %v2786, %v892
  %v2791 = vmul.f32 %v2789, %v892
  %v2792 = vadd.f32 %v2790, 1e-05
  %v2793 = vadd.f32 %v2791, 1e-05
  %v2794 = vrsqrt.pop %v2792
  %v2795 = vmul.f32 %v2794, %v2792
  %v2796 = vmul.f32 %v2795, %v2794
  %v2797 = vmul.f32 0.5, %v2796
  %v2798 = vsub.f32 1.5, %v2797
  %v2799 = vmul.f32 %v2794, %v2798
  %vm2800 = vweird.f32 %v2792
  %vm2801 = vweird.f32 %v2794
  %vm2802 = vmor %vm2800, %vm2801
  %v2803 = vsel %vm2802, %v2794, %v2799
  %v2804 = vrsqrt.pop %v2793
  %v2805 = vmul.f32 %v2804, %v2793
  %v2806 = vmul.f32 %v2805, %v2804
  %v2807 = vmul.f32 0.5, %v2806
  %v2808 = vsub.f32 1.5, %v2807
  %v2809 = vmul.f32 %v2804, %v2808
  %vm2810 = vweird.f32 %v2793
  %vm2811 = vweird.f32 %v2804
  %vm2812 = vmor %vm2810, %vm2811
  %v2813 = vsel %vm2812, %v2804, %v2809
  %v2814 = vmul.f32 %v2780, %v2803
  %v2815 = vmul.f32 %v2781, %v2813
  %v2817 = vperm.slane %v2769, 0
  %v2819 = vmul.f32 %v2814, %v2817
  %v2820 = vmul.f32 %v2815, %v2817
  %v2822 = vperm.slane %v2771, 0
  %v2824 = vadd.f32 %v2819, %v2822
  %v2825 = vadd.f32 %v2820, %v2822
  %s2826 = scalar_lea.vmem %s9, 32
  %v2827 = vld [vmem:[%s2826] sm:$0xff]
  %v2828 = vld [vmem:[%s2826 + $0x8] sm:$0xff]
  %v2829 = vld [vmem:[%s2826 + $0x10] sm:$0xff]
  %v2830 = vld [vmem:[%s2826 + $0x18] sm:$0xff]
  %s2831 = scalar_lea.vmem %s10, 1
  %v2832 = vld [vmem:[%s2831] sm:$0x1]
  %v2834 = vperm.slane %v2832, 0
  %v2837 = vsel %vm121, %v2824, 0
  %v2840 = vsel %vm121, %v2825, 0
  %2842 = vmatpush.msra.mxu0 0.0
  %2843 = vmatpush.msra.mxu0 0.0
  %2844 = vmatpush.msra.mxu0 0.0
  %2845 = vmatpush.msra.mxu0 0.0
  %2846 = vmatpush.msra.mxu0 0.0
  %2847 = vmatpush.msra.mxu0 0.0
  %2848 = vmatpush.msra.mxu0 0.0
  %2849 = vmatpush.msra.mxu0 0.0
  %2850 = vmatpush.msra.mxu0 0.0
  %2851 = vmatpush.msra.mxu0 0.0
  %2852 = vmatpush.msra.mxu0 0.0
  %2853 = vmatpush.msra.mxu0 0.0
  %2854 = vmatpush.msra.mxu0 %v2830
  %2855 = vmatpush.msra.mxu0 %v2829
  %2856 = vmatpush.msra.mxu0 %v2828
  %2857 = vmatpush.msra.mxu0 %v2827
  %2858 = vmatmul.f32.gmra.mxu0 %v2837
  %v2859 = vpop.f32.mrf.mxu0
  %v2860 = vadd.f32 %v2834, %v2859
  %2861 = vmatmul.f32.gmra.mxu0 %v2840
  %v2862 = vpop.f32.mrf.mxu0
  %v2863 = vadd.f32 %v2834, %v2862
  %2864 = vdwg.mxu0
  %s2865 = scalar_lea.vmem %s11, 32
  %v2866 = vld [vmem:[%s2865] sm:$0xff]
  %v2867 = vld [vmem:[%s2865 + $0x8] sm:$0xff]
  %v2868 = vld [vmem:[%s2865 + $0x10] sm:$0xff]
  %v2869 = vld [vmem:[%s2865 + $0x18] sm:$0xff]
  %s2870 = scalar_lea.vmem %s12, 1
  %v2871 = vld [vmem:[%s2870] sm:$0x1]
  %v2873 = vperm.slane %v2871, 0
  %2875 = vmatpush.msra.mxu0 0.0
  %2876 = vmatpush.msra.mxu0 0.0
  %2877 = vmatpush.msra.mxu0 0.0
  %2878 = vmatpush.msra.mxu0 0.0
  %2879 = vmatpush.msra.mxu0 0.0
  %2880 = vmatpush.msra.mxu0 0.0
  %2881 = vmatpush.msra.mxu0 0.0
  %2882 = vmatpush.msra.mxu0 0.0
  %2883 = vmatpush.msra.mxu0 0.0
  %2884 = vmatpush.msra.mxu0 0.0
  %2885 = vmatpush.msra.mxu0 0.0
  %2886 = vmatpush.msra.mxu0 0.0
  %2887 = vmatpush.msra.mxu0 %v2869
  %2888 = vmatpush.msra.mxu0 %v2868
  %2889 = vmatpush.msra.mxu0 %v2867
  %2890 = vmatpush.msra.mxu0 %v2866
  %2891 = vmatmul.f32.gmra.mxu0 %v987
  %v2892 = vpop.f32.mrf.mxu0
  %v2893 = vadd.f32 %v2873, %v2892
  %2894 = vmatmul.f32.gmra.mxu0 %v990
  %v2895 = vpop.f32.mrf.mxu0
  %v2896 = vadd.f32 %v2873, %v2895
  %2897 = vmatmul.f32.gmra.mxu0 %v993
  %v2898 = vpop.f32.mrf.mxu0
  %v2899 = vadd.f32 %v2873, %v2898
  %2900 = vmatmul.f32.gmra.mxu0 %v996
  %v2901 = vpop.f32.mrf.mxu0
  %v2902 = vadd.f32 %v2873, %v2901
  %2903 = vdwg.mxu0
  %s2904 = scalar_lea.vmem %s13, 32
  %v2905 = vld [vmem:[%s2904] sm:$0xff]
  %v2906 = vld [vmem:[%s2904 + $0x8] sm:$0xff]
  %v2907 = vld [vmem:[%s2904 + $0x10] sm:$0xff]
  %v2908 = vld [vmem:[%s2904 + $0x18] sm:$0xff]
  %s2909 = scalar_lea.vmem %s14, 1
  %v2910 = vld [vmem:[%s2909] sm:$0x1]
  %v2912 = vsel %vm159, %v2860, 0
  %v2915 = vsel %vm159, %v2893, 0
  %v2918 = vsel %vm159, %v2896, 0
  %2920 = vmatpush.xpose.msra.mxu0 0.0
  %2921 = vmatpush.xpose.msra.mxu0 0.0
  %2922 = vmatpush.xpose.msra.mxu0 0.0
  %2923 = vmatpush.xpose.msra.mxu0 0.0
  %2924 = vmatpush.xpose.msra.mxu0 0.0
  %2925 = vmatpush.xpose.msra.mxu0 0.0
  %2926 = vmatpush.xpose.msra.mxu0 0.0
  %2927 = vmatpush.xpose.msra.mxu0 0.0
  %2928 = vmatpush.xpose.msra.mxu0 0.0
  %2929 = vmatpush.xpose.msra.mxu0 0.0
  %2930 = vmatpush.xpose.msra.mxu0 0.0
  %2931 = vmatpush.xpose.msra.mxu0 0.0
  %2932 = vmatpush.xpose.msra.mxu0 0.0
  %2933 = vmatpush.xpose.msra.mxu0 0.0
  %2934 = vmatpush.xpose.msra.mxu0 %v2918
  %2935 = vmatpush.xpose.msra.mxu0 %v2915
  %2936 = vmatmul.f32.gmra.mxu0 %v2912
  %v2937 = vpop.f32.mrf.mxu0
  %v2938 = vadd.f32 0.0, %v2937
  %2939 = vdwg.mxu0
  %v2940 = vsel %vm1061, %v2938, -inf
  %2941 = vmax.xlane.f32.xlu0 %v2940
  %v2942 = vpop.xlane.xlu0 %2941
  %v2943 = vsub.f32 %v2938, %v2942
  %v2944 = vmul.f32 %v2943, 1.442695
  %v2945 = vpow.pop %v2944
  %v2946 = vsel %vm1061, %v2945, 0.0
  %2947 = vadd.xlane.f32.xlu0 %v2946
  %v2948 = vpop.xlane.xlu0 %2947
  %v2949 = vrcp.pop %v2948
  %v2950 = vmul.f32 %v2945, %v2949
  %2951 = vrot.lane.b32.xlu0 %v2893, 96
  %v2952 = vpop.permute.xlu0 %2951
  %2953 = vrot.lane.b32.xlu0 %v2896, 96
  %v2954 = vpop.permute.xlu0 %2953
  %v2958 = vsel %vm1061, %v2950, 0
  %2960 = vmatpush.msra.mxu0 0.0
  %2961 = vmatpush.msra.mxu0 0.0
  %2962 = vmatpush.msra.mxu0 0.0
  %2963 = vmatpush.msra.mxu0 0.0
  %2964 = vmatpush.msra.mxu0 0.0
  %2965 = vmatpush.msra.mxu0 0.0
  %2966 = vmatpush.msra.mxu0 0.0
  %2967 = vmatpush.msra.mxu0 0.0
  %2968 = vmatpush.msra.mxu0 0.0
  %2969 = vmatpush.msra.mxu0 0.0
  %2970 = vmatpush.msra.mxu0 0.0
  %2971 = vmatpush.msra.mxu0 0.0
  %2972 = vmatpush.msra.mxu0 0.0
  %2973 = vmatpush.msra.mxu0 0.0
  %2974 = vmatpush.msra.mxu0 %v2954
  %2975 = vmatpush.msra.mxu0 %v2952
  %2976 = vmatmul.f32.gmra.mxu0 %v2958
  %v2977 = vpop.f32.mrf.mxu0
  %v2978 = vadd.f32 0.0, %v2977
  %2979 = vdwg.mxu0
  %2980 = vrot.lane.b32.xlu0 %v2860, 120
  %v2981 = vpop.permute.xlu0 %2980
  %2982 = vrot.lane.b32.xlu0 %v2893, 120
  %v2983 = vpop.permute.xlu0 %2982
  %2984 = vrot.lane.b32.xlu0 %v2896, 120
  %v2985 = vpop.permute.xlu0 %2984
  %v2986 = vsel %vm159, %v2981, 0
  %v2988 = vsel %vm159, %v2983, 0
  %v2990 = vsel %vm159, %v2985, 0
  %2992 = vmatpush.xpose.msra.mxu0 0.0
  %2993 = vmatpush.xpose.msra.mxu0 0.0
  %2994 = vmatpush.xpose.msra.mxu0 0.0
  %2995 = vmatpush.xpose.msra.mxu0 0.0
  %2996 = vmatpush.xpose.msra.mxu0 0.0
  %2997 = vmatpush.xpose.msra.mxu0 0.0
  %2998 = vmatpush.xpose.msra.mxu0 0.0
  %2999 = vmatpush.xpose.msra.mxu0 0.0
  %3000 = vmatpush.xpose.msra.mxu0 0.0
  %3001 = vmatpush.xpose.msra.mxu0 0.0
  %3002 = vmatpush.xpose.msra.mxu0 0.0
  %3003 = vmatpush.xpose.msra.mxu0 0.0
  %3004 = vmatpush.xpose.msra.mxu0 0.0
  %3005 = vmatpush.xpose.msra.mxu0 0.0
  %3006 = vmatpush.xpose.msra.mxu0 %v2990
  %3007 = vmatpush.xpose.msra.mxu0 %v2988
  %3008 = vmatmul.f32.gmra.mxu0 %v2986
  %v3009 = vpop.f32.mrf.mxu0
  %v3010 = vadd.f32 0.0, %v3009
  %3011 = vdwg.mxu0
  %v3012 = vsel %vm1061, %v3010, -inf
  %3013 = vmax.xlane.f32.xlu0 %v3012
  %v3014 = vpop.xlane.xlu0 %3013
  %v3015 = vsub.f32 %v3010, %v3014
  %v3016 = vmul.f32 %v3015, 1.442695
  %v3017 = vpow.pop %v3016
  %v3018 = vsel %vm1061, %v3017, 0.0
  %3019 = vadd.xlane.f32.xlu0 %v3018
  %v3020 = vpop.xlane.xlu0 %3019
  %v3021 = vrcp.pop %v3020
  %v3022 = vmul.f32 %v3017, %v3021
  %3023 = vrot.lane.b32.xlu0 %v2893, 88
  %v3024 = vpop.permute.xlu0 %3023
  %3025 = vrot.lane.b32.xlu0 %v2896, 88
  %v3026 = vpop.permute.xlu0 %3025
  %v3030 = vsel %vm1061, %v3022, 0
  %3032 = vmatpush.msra.mxu0 0.0
  %3033 = vmatpush.msra.mxu0 0.0
  %3034 = vmatpush.msra.mxu0 0.0
  %3035 = vmatpush.msra.mxu0 0.0
  %3036 = vmatpush.msra.mxu0 0.0
  %3037 = vmatpush.msra.mxu0 0.0
  %3038 = vmatpush.msra.mxu0 0.0
  %3039 = vmatpush.msra.mxu0 0.0
  %3040 = vmatpush.msra.mxu0 0.0
  %3041 = vmatpush.msra.mxu0 0.0
  %3042 = vmatpush.msra.mxu0 0.0
  %3043 = vmatpush.msra.mxu0 0.0
  %3044 = vmatpush.msra.mxu0 0.0
  %3045 = vmatpush.msra.mxu0 0.0
  %3046 = vmatpush.msra.mxu0 %v3026
  %3047 = vmatpush.msra.mxu0 %v3024
  %3048 = vmatmul.f32.gmra.mxu0 %v3030
  %v3049 = vpop.f32.mrf.mxu0
  %v3050 = vadd.f32 0.0, %v3049
  %3051 = vdwg.mxu0
  %v3053 = vsel %vm159, %v3050, 0
  %3055 = vmatpush.msra.mxu0 0.0
  %3056 = vmatpush.msra.mxu0 0.0
  %3057 = vmatpush.msra.mxu0 0.0
  %3058 = vmatpush.msra.mxu0 0.0
  %3059 = vmatpush.msra.mxu0 0.0
  %3060 = vmatpush.msra.mxu0 0.0
  %3061 = vmatpush.msra.mxu0 0.0
  %3062 = vmatpush.msra.mxu0 0.0
  %3063 = vmatpush.msra.mxu0 0.0
  %3064 = vmatpush.msra.mxu0 0.0
  %3065 = vmatpush.msra.mxu0 0.0
  %3066 = vmatpush.msra.mxu0 0.0
  %3067 = vmatpush.msra.mxu0 0.0
  %3068 = vmatpush.msra.mxu0 0.0
  %3069 = vmatpush.msra.mxu0 0.0
  %3070 = vmatpush.msra.mxu0 %v2906
  %3071 = vmatmul.f32.gmra.mxu0 %v3053
  %v3072 = vpop.f32.mrf.mxu0
  %v3073 = vadd.f32 0.0, %v3072
  %3074 = vdwg.mxu0
  %v3076 = vsel %vm159, %v2978, 0
  %3078 = vmatpush.msra.mxu0 0.0
  %3079 = vmatpush.msra.mxu0 0.0
  %3080 = vmatpush.msra.mxu0 0.0
  %3081 = vmatpush.msra.mxu0 0.0
  %3082 = vmatpush.msra.mxu0 0.0
  %3083 = vmatpush.msra.mxu0 0.0
  %3084 = vmatpush.msra.mxu0 0.0
  %3085 = vmatpush.msra.mxu0 0.0
  %3086 = vmatpush.msra.mxu0 0.0
  %3087 = vmatpush.msra.mxu0 0.0
  %3088 = vmatpush.msra.mxu0 0.0
  %3089 = vmatpush.msra.mxu0 0.0
  %3090 = vmatpush.msra.mxu0 0.0
  %3091 = vmatpush.msra.mxu0 0.0
  %3092 = vmatpush.msra.mxu0 0.0
  %3093 = vmatpush.msra.mxu0 %v2905
  %3094 = vmatmul.f32.gmra.mxu0 %v3076
  %v3095 = vpop.f32.mrf.mxu0
  %v3096 = vadd.f32 %v3073, %v3095
  %3097 = vdwg.mxu0
  %3098 = vrot.lane.b32.xlu0 %v2860, 112
  %v3099 = vpop.permute.xlu0 %3098
  %3100 = vrot.lane.b32.xlu0 %v2893, 112
  %v3101 = vpop.permute.xlu0 %3100
  %3102 = vrot.lane.b32.xlu0 %v2896, 112
  %v3103 = vpop.permute.xlu0 %3102
  %v3104 = vsel %vm159, %v3099, 0
  %v3106 = vsel %vm159, %v3101, 0
  %v3108 = vsel %vm159, %v3103, 0
  %3110 = vmatpush.xpose.msra.mxu0 0.0
  %3111 = vmatpush.xpose.msra.mxu0 0.0
  %3112 = vmatpush.xpose.msra.mxu0 0.0
  %3113 = vmatpush.xpose.msra.mxu0 0.0
  %3114 = vmatpush.xpose.msra.mxu0 0.0
  %3115 = vmatpush.xpose.msra.mxu0 0.0
  %3116 = vmatpush.xpose.msra.mxu0 0.0
  %3117 = vmatpush.xpose.msra.mxu0 0.0
  %3118 = vmatpush.xpose.msra.mxu0 0.0
  %3119 = vmatpush.xpose.msra.mxu0 0.0
  %3120 = vmatpush.xpose.msra.mxu0 0.0
  %3121 = vmatpush.xpose.msra.mxu0 0.0
  %3122 = vmatpush.xpose.msra.mxu0 0.0
  %3123 = vmatpush.xpose.msra.mxu0 0.0
  %3124 = vmatpush.xpose.msra.mxu0 %v3108
  %3125 = vmatpush.xpose.msra.mxu0 %v3106
  %3126 = vmatmul.f32.gmra.mxu0 %v3104
  %v3127 = vpop.f32.mrf.mxu0
  %v3128 = vadd.f32 0.0, %v3127
  %3129 = vdwg.mxu0
  %v3130 = vsel %vm1061, %v3128, -inf
  %3131 = vmax.xlane.f32.xlu0 %v3130
  %v3132 = vpop.xlane.xlu0 %3131
  %v3133 = vsub.f32 %v3128, %v3132
  %v3134 = vmul.f32 %v3133, 1.442695
  %v3135 = vpow.pop %v3134
  %v3136 = vsel %vm1061, %v3135, 0.0
  %3137 = vadd.xlane.f32.xlu0 %v3136
  %v3138 = vpop.xlane.xlu0 %3137
  %v3139 = vrcp.pop %v3138
  %v3140 = vmul.f32 %v3135, %v3139
  %3141 = vrot.lane.b32.xlu0 %v2893, 80
  %v3142 = vpop.permute.xlu0 %3141
  %3143 = vrot.lane.b32.xlu0 %v2896, 80
  %v3144 = vpop.permute.xlu0 %3143
  %v3148 = vsel %vm1061, %v3140, 0
  %3150 = vmatpush.msra.mxu0 0.0
  %3151 = vmatpush.msra.mxu0 0.0
  %3152 = vmatpush.msra.mxu0 0.0
  %3153 = vmatpush.msra.mxu0 0.0
  %3154 = vmatpush.msra.mxu0 0.0
  %3155 = vmatpush.msra.mxu0 0.0
  %3156 = vmatpush.msra.mxu0 0.0
  %3157 = vmatpush.msra.mxu0 0.0
  %3158 = vmatpush.msra.mxu0 0.0
  %3159 = vmatpush.msra.mxu0 0.0
  %3160 = vmatpush.msra.mxu0 0.0
  %3161 = vmatpush.msra.mxu0 0.0
  %3162 = vmatpush.msra.mxu0 0.0
  %3163 = vmatpush.msra.mxu0 0.0
  %3164 = vmatpush.msra.mxu0 %v3144
  %3165 = vmatpush.msra.mxu0 %v3142
  %3166 = vmatmul.f32.gmra.mxu0 %v3148
  %v3167 = vpop.f32.mrf.mxu0
  %v3168 = vadd.f32 0.0, %v3167
  %3169 = vdwg.mxu0
  %v3171 = vsel %vm159, %v3168, 0
  %3173 = vmatpush.msra.mxu0 0.0
  %3174 = vmatpush.msra.mxu0 0.0
  %3175 = vmatpush.msra.mxu0 0.0
  %3176 = vmatpush.msra.mxu0 0.0
  %3177 = vmatpush.msra.mxu0 0.0
  %3178 = vmatpush.msra.mxu0 0.0
  %3179 = vmatpush.msra.mxu0 0.0
  %3180 = vmatpush.msra.mxu0 0.0
  %3181 = vmatpush.msra.mxu0 0.0
  %3182 = vmatpush.msra.mxu0 0.0
  %3183 = vmatpush.msra.mxu0 0.0
  %3184 = vmatpush.msra.mxu0 0.0
  %3185 = vmatpush.msra.mxu0 0.0
  %3186 = vmatpush.msra.mxu0 0.0
  %3187 = vmatpush.msra.mxu0 0.0
  %3188 = vmatpush.msra.mxu0 %v2907
  %3189 = vmatmul.f32.gmra.mxu0 %v3171
  %v3190 = vpop.f32.mrf.mxu0
  %v3191 = vadd.f32 0.0, %v3190
  %3192 = vdwg.mxu0
  %v3193 = vadd.f32 %v3096, %v3191
  %3194 = vrot.lane.b32.xlu0 %v2860, 104
  %v3195 = vpop.permute.xlu0 %3194
  %3196 = vrot.lane.b32.xlu0 %v2893, 104
  %v3197 = vpop.permute.xlu0 %3196
  %3198 = vrot.lane.b32.xlu0 %v2896, 104
  %v3199 = vpop.permute.xlu0 %3198
  %v3200 = vsel %vm159, %v3195, 0
  %v3202 = vsel %vm159, %v3197, 0
  %v3204 = vsel %vm159, %v3199, 0
  %3206 = vmatpush.xpose.msra.mxu0 0.0
  %3207 = vmatpush.xpose.msra.mxu0 0.0
  %3208 = vmatpush.xpose.msra.mxu0 0.0
  %3209 = vmatpush.xpose.msra.mxu0 0.0
  %3210 = vmatpush.xpose.msra.mxu0 0.0
  %3211 = vmatpush.xpose.msra.mxu0 0.0
  %3212 = vmatpush.xpose.msra.mxu0 0.0
  %3213 = vmatpush.xpose.msra.mxu0 0.0
  %3214 = vmatpush.xpose.msra.mxu0 0.0
  %3215 = vmatpush.xpose.msra.mxu0 0.0
  %3216 = vmatpush.xpose.msra.mxu0 0.0
  %3217 = vmatpush.xpose.msra.mxu0 0.0
  %3218 = vmatpush.xpose.msra.mxu0 0.0
  %3219 = vmatpush.xpose.msra.mxu0 0.0
  %3220 = vmatpush.xpose.msra.mxu0 %v3204
  %3221 = vmatpush.xpose.msra.mxu0 %v3202
  %3222 = vmatmul.f32.gmra.mxu0 %v3200
  %v3223 = vpop.f32.mrf.mxu0
  %v3224 = vadd.f32 0.0, %v3223
  %3225 = vdwg.mxu0
  %v3226 = vsel %vm1061, %v3224, -inf
  %3227 = vmax.xlane.f32.xlu0 %v3226
  %v3228 = vpop.xlane.xlu0 %3227
  %v3229 = vsub.f32 %v3224, %v3228
  %v3230 = vmul.f32 %v3229, 1.442695
  %v3231 = vpow.pop %v3230
  %v3232 = vsel %vm1061, %v3231, 0.0
  %3233 = vadd.xlane.f32.xlu0 %v3232
  %v3234 = vpop.xlane.xlu0 %3233
  %v3235 = vrcp.pop %v3234
  %v3236 = vmul.f32 %v3231, %v3235
  %3237 = vrot.lane.b32.xlu0 %v2893, 72
  %v3238 = vpop.permute.xlu0 %3237
  %3239 = vrot.lane.b32.xlu0 %v2896, 72
  %v3240 = vpop.permute.xlu0 %3239
  %v3244 = vsel %vm1061, %v3236, 0
  %3246 = vmatpush.msra.mxu0 0.0
  %3247 = vmatpush.msra.mxu0 0.0
  %3248 = vmatpush.msra.mxu0 0.0
  %3249 = vmatpush.msra.mxu0 0.0
  %3250 = vmatpush.msra.mxu0 0.0
  %3251 = vmatpush.msra.mxu0 0.0
  %3252 = vmatpush.msra.mxu0 0.0
  %3253 = vmatpush.msra.mxu0 0.0
  %3254 = vmatpush.msra.mxu0 0.0
  %3255 = vmatpush.msra.mxu0 0.0
  %3256 = vmatpush.msra.mxu0 0.0
  %3257 = vmatpush.msra.mxu0 0.0
  %3258 = vmatpush.msra.mxu0 0.0
  %3259 = vmatpush.msra.mxu0 0.0
  %3260 = vmatpush.msra.mxu0 %v3240
  %3261 = vmatpush.msra.mxu0 %v3238
  %3262 = vmatmul.f32.gmra.mxu0 %v3244
  %v3263 = vpop.f32.mrf.mxu0
  %v3264 = vadd.f32 0.0, %v3263
  %3265 = vdwg.mxu0
  %v3267 = vsel %vm159, %v3264, 0
  %3269 = vmatpush.msra.mxu0 0.0
  %3270 = vmatpush.msra.mxu0 0.0
  %3271 = vmatpush.msra.mxu0 0.0
  %3272 = vmatpush.msra.mxu0 0.0
  %3273 = vmatpush.msra.mxu0 0.0
  %3274 = vmatpush.msra.mxu0 0.0
  %3275 = vmatpush.msra.mxu0 0.0
  %3276 = vmatpush.msra.mxu0 0.0
  %3277 = vmatpush.msra.mxu0 0.0
  %3278 = vmatpush.msra.mxu0 0.0
  %3279 = vmatpush.msra.mxu0 0.0
  %3280 = vmatpush.msra.mxu0 0.0
  %3281 = vmatpush.msra.mxu0 0.0
  %3282 = vmatpush.msra.mxu0 0.0
  %3283 = vmatpush.msra.mxu0 0.0
  %3284 = vmatpush.msra.mxu0 %v2908
  %3285 = vmatmul.f32.gmra.mxu0 %v3267
  %v3286 = vpop.f32.mrf.mxu0
  %v3287 = vadd.f32 0.0, %v3286
  %3288 = vdwg.mxu0
  %v3289 = vadd.f32 %v3193, %v3287
  %v3291 = vsel %vm159, %v2863, 0
  %v3294 = vsel %vm159, %v2899, 0
  %v3297 = vsel %vm159, %v2902, 0
  %3299 = vmatpush.xpose.msra.mxu0 0.0
  %3300 = vmatpush.xpose.msra.mxu0 0.0
  %3301 = vmatpush.xpose.msra.mxu0 0.0
  %3302 = vmatpush.xpose.msra.mxu0 0.0
  %3303 = vmatpush.xpose.msra.mxu0 0.0
  %3304 = vmatpush.xpose.msra.mxu0 0.0
  %3305 = vmatpush.xpose.msra.mxu0 0.0
  %3306 = vmatpush.xpose.msra.mxu0 0.0
  %3307 = vmatpush.xpose.msra.mxu0 0.0
  %3308 = vmatpush.xpose.msra.mxu0 0.0
  %3309 = vmatpush.xpose.msra.mxu0 0.0
  %3310 = vmatpush.xpose.msra.mxu0 0.0
  %3311 = vmatpush.xpose.msra.mxu0 0.0
  %3312 = vmatpush.xpose.msra.mxu0 0.0
  %3313 = vmatpush.xpose.msra.mxu0 %v3297
  %3314 = vmatpush.xpose.msra.mxu0 %v3294
  %3315 = vmatmul.f32.gmra.mxu0 %v3291
  %v3316 = vpop.f32.mrf.mxu0
  %v3317 = vadd.f32 0.0, %v3316
  %3318 = vdwg.mxu0
  %v3319 = vsel %vm1061, %v3317, -inf
  %3320 = vmax.xlane.f32.xlu0 %v3319
  %v3321 = vpop.xlane.xlu0 %3320
  %v3322 = vsub.f32 %v3317, %v3321
  %v3323 = vmul.f32 %v3322, 1.442695
  %v3324 = vpow.pop %v3323
  %v3325 = vsel %vm1061, %v3324, 0.0
  %3326 = vadd.xlane.f32.xlu0 %v3325
  %v3327 = vpop.xlane.xlu0 %3326
  %v3328 = vrcp.pop %v3327
  %v3329 = vmul.f32 %v3324, %v3328
  %3330 = vrot.lane.b32.xlu0 %v2899, 96
  %v3331 = vpop.permute.xlu0 %3330
  %3332 = vrot.lane.b32.xlu0 %v2902, 96
  %v3333 = vpop.permute.xlu0 %3332
  %v3337 = vsel %vm1061, %v3329, 0
  %3339 = vmatpush.msra.mxu0 0.0
  %3340 = vmatpush.msra.mxu0 0.0
  %3341 = vmatpush.msra.mxu0 0.0
  %3342 = vmatpush.msra.mxu0 0.0
  %3343 = vmatpush.msra.mxu0 0.0
  %3344 = vmatpush.msra.mxu0 0.0
  %3345 = vmatpush.msra.mxu0 0.0
  %3346 = vmatpush.msra.mxu0 0.0
  %3347 = vmatpush.msra.mxu0 0.0
  %3348 = vmatpush.msra.mxu0 0.0
  %3349 = vmatpush.msra.mxu0 0.0
  %3350 = vmatpush.msra.mxu0 0.0
  %3351 = vmatpush.msra.mxu0 0.0
  %3352 = vmatpush.msra.mxu0 0.0
  %3353 = vmatpush.msra.mxu0 %v3333
  %3354 = vmatpush.msra.mxu0 %v3331
  %3355 = vmatmul.f32.gmra.mxu0 %v3337
  %v3356 = vpop.f32.mrf.mxu0
  %v3357 = vadd.f32 0.0, %v3356
  %3358 = vdwg.mxu0
  %3359 = vrot.lane.b32.xlu0 %v2863, 120
  %v3360 = vpop.permute.xlu0 %3359
  %3361 = vrot.lane.b32.xlu0 %v2899, 120
  %v3362 = vpop.permute.xlu0 %3361
  %3363 = vrot.lane.b32.xlu0 %v2902, 120
  %v3364 = vpop.permute.xlu0 %3363
  %v3365 = vsel %vm159, %v3360, 0
  %v3367 = vsel %vm159, %v3362, 0
  %v3369 = vsel %vm159, %v3364, 0
  %3371 = vmatpush.xpose.msra.mxu0 0.0
  %3372 = vmatpush.xpose.msra.mxu0 0.0
  %3373 = vmatpush.xpose.msra.mxu0 0.0
  %3374 = vmatpush.xpose.msra.mxu0 0.0
  %3375 = vmatpush.xpose.msra.mxu0 0.0
  %3376 = vmatpush.xpose.msra.mxu0 0.0
  %3377 = vmatpush.xpose.msra.mxu0 0.0
  %3378 = vmatpush.xpose.msra.mxu0 0.0
  %3379 = vmatpush.xpose.msra.mxu0 0.0
  %3380 = vmatpush.xpose.msra.mxu0 0.0
  %3381 = vmatpush.xpose.msra.mxu0 0.0
  %3382 = vmatpush.xpose.msra.mxu0 0.0
  %3383 = vmatpush.xpose.msra.mxu0 0.0
  %3384 = vmatpush.xpose.msra.mxu0 0.0
  %3385 = vmatpush.xpose.msra.mxu0 %v3369
  %3386 = vmatpush.xpose.msra.mxu0 %v3367
  %3387 = vmatmul.f32.gmra.mxu0 %v3365
  %v3388 = vpop.f32.mrf.mxu0
  %v3389 = vadd.f32 0.0, %v3388
  %3390 = vdwg.mxu0
  %v3391 = vsel %vm1061, %v3389, -inf
  %3392 = vmax.xlane.f32.xlu0 %v3391
  %v3393 = vpop.xlane.xlu0 %3392
  %v3394 = vsub.f32 %v3389, %v3393
  %v3395 = vmul.f32 %v3394, 1.442695
  %v3396 = vpow.pop %v3395
  %v3397 = vsel %vm1061, %v3396, 0.0
  %3398 = vadd.xlane.f32.xlu0 %v3397
  %v3399 = vpop.xlane.xlu0 %3398
  %v3400 = vrcp.pop %v3399
  %v3401 = vmul.f32 %v3396, %v3400
  %3402 = vrot.lane.b32.xlu0 %v2899, 88
  %v3403 = vpop.permute.xlu0 %3402
  %3404 = vrot.lane.b32.xlu0 %v2902, 88
  %v3405 = vpop.permute.xlu0 %3404
  %v3409 = vsel %vm1061, %v3401, 0
  %3411 = vmatpush.msra.mxu0 0.0
  %3412 = vmatpush.msra.mxu0 0.0
  %3413 = vmatpush.msra.mxu0 0.0
  %3414 = vmatpush.msra.mxu0 0.0
  %3415 = vmatpush.msra.mxu0 0.0
  %3416 = vmatpush.msra.mxu0 0.0
  %3417 = vmatpush.msra.mxu0 0.0
  %3418 = vmatpush.msra.mxu0 0.0
  %3419 = vmatpush.msra.mxu0 0.0
  %3420 = vmatpush.msra.mxu0 0.0
  %3421 = vmatpush.msra.mxu0 0.0
  %3422 = vmatpush.msra.mxu0 0.0
  %3423 = vmatpush.msra.mxu0 0.0
  %3424 = vmatpush.msra.mxu0 0.0
  %3425 = vmatpush.msra.mxu0 %v3405
  %3426 = vmatpush.msra.mxu0 %v3403
  %3427 = vmatmul.f32.gmra.mxu0 %v3409
  %v3428 = vpop.f32.mrf.mxu0
  %v3429 = vadd.f32 0.0, %v3428
  %3430 = vdwg.mxu0
  %v3432 = vsel %vm159, %v3429, 0
  %3434 = vmatpush.msra.mxu0 0.0
  %3435 = vmatpush.msra.mxu0 0.0
  %3436 = vmatpush.msra.mxu0 0.0
  %3437 = vmatpush.msra.mxu0 0.0
  %3438 = vmatpush.msra.mxu0 0.0
  %3439 = vmatpush.msra.mxu0 0.0
  %3440 = vmatpush.msra.mxu0 0.0
  %3441 = vmatpush.msra.mxu0 0.0
  %3442 = vmatpush.msra.mxu0 0.0
  %3443 = vmatpush.msra.mxu0 0.0
  %3444 = vmatpush.msra.mxu0 0.0
  %3445 = vmatpush.msra.mxu0 0.0
  %3446 = vmatpush.msra.mxu0 0.0
  %3447 = vmatpush.msra.mxu0 0.0
  %3448 = vmatpush.msra.mxu0 0.0
  %3449 = vmatpush.msra.mxu0 %v2906
  %3450 = vmatmul.f32.gmra.mxu0 %v3432
  %v3451 = vpop.f32.mrf.mxu0
  %v3452 = vadd.f32 0.0, %v3451
  %3453 = vdwg.mxu0
  %v3455 = vsel %vm159, %v3357, 0
  %3457 = vmatpush.msra.mxu0 0.0
  %3458 = vmatpush.msra.mxu0 0.0
  %3459 = vmatpush.msra.mxu0 0.0
  %3460 = vmatpush.msra.mxu0 0.0
  %3461 = vmatpush.msra.mxu0 0.0
  %3462 = vmatpush.msra.mxu0 0.0
  %3463 = vmatpush.msra.mxu0 0.0
  %3464 = vmatpush.msra.mxu0 0.0
  %3465 = vmatpush.msra.mxu0 0.0
  %3466 = vmatpush.msra.mxu0 0.0
  %3467 = vmatpush.msra.mxu0 0.0
  %3468 = vmatpush.msra.mxu0 0.0
  %3469 = vmatpush.msra.mxu0 0.0
  %3470 = vmatpush.msra.mxu0 0.0
  %3471 = vmatpush.msra.mxu0 0.0
  %3472 = vmatpush.msra.mxu0 %v2905
  %3473 = vmatmul.f32.gmra.mxu0 %v3455
  %v3474 = vpop.f32.mrf.mxu0
  %v3475 = vadd.f32 %v3452, %v3474
  %3476 = vdwg.mxu0
  %3477 = vrot.lane.b32.xlu0 %v2863, 112
  %v3478 = vpop.permute.xlu0 %3477
  %3479 = vrot.lane.b32.xlu0 %v2899, 112
  %v3480 = vpop.permute.xlu0 %3479
  %3481 = vrot.lane.b32.xlu0 %v2902, 112
  %v3482 = vpop.permute.xlu0 %3481
  %v3483 = vsel %vm159, %v3478, 0
  %v3485 = vsel %vm159, %v3480, 0
  %v3487 = vsel %vm159, %v3482, 0
  %3489 = vmatpush.xpose.msra.mxu0 0.0
  %3490 = vmatpush.xpose.msra.mxu0 0.0
  %3491 = vmatpush.xpose.msra.mxu0 0.0
  %3492 = vmatpush.xpose.msra.mxu0 0.0
  %3493 = vmatpush.xpose.msra.mxu0 0.0
  %3494 = vmatpush.xpose.msra.mxu0 0.0
  %3495 = vmatpush.xpose.msra.mxu0 0.0
  %3496 = vmatpush.xpose.msra.mxu0 0.0
  %3497 = vmatpush.xpose.msra.mxu0 0.0
  %3498 = vmatpush.xpose.msra.mxu0 0.0
  %3499 = vmatpush.xpose.msra.mxu0 0.0
  %3500 = vmatpush.xpose.msra.mxu0 0.0
  %3501 = vmatpush.xpose.msra.mxu0 0.0
  %3502 = vmatpush.xpose.msra.mxu0 0.0
  %3503 = vmatpush.xpose.msra.mxu0 %v3487
  %3504 = vmatpush.xpose.msra.mxu0 %v3485
  %3505 = vmatmul.f32.gmra.mxu0 %v3483
  %v3506 = vpop.f32.mrf.mxu0
  %v3507 = vadd.f32 0.0, %v3506
  %3508 = vdwg.mxu0
  %v3509 = vsel %vm1061, %v3507, -inf
  %3510 = vmax.xlane.f32.xlu0 %v3509
  %v3511 = vpop.xlane.xlu0 %3510
  %v3512 = vsub.f32 %v3507, %v3511
  %v3513 = vmul.f32 %v3512, 1.442695
  %v3514 = vpow.pop %v3513
  %v3515 = vsel %vm1061, %v3514, 0.0
  %3516 = vadd.xlane.f32.xlu0 %v3515
  %v3517 = vpop.xlane.xlu0 %3516
  %v3518 = vrcp.pop %v3517
  %v3519 = vmul.f32 %v3514, %v3518
  %3520 = vrot.lane.b32.xlu0 %v2899, 80
  %v3521 = vpop.permute.xlu0 %3520
  %3522 = vrot.lane.b32.xlu0 %v2902, 80
  %v3523 = vpop.permute.xlu0 %3522
  %v3527 = vsel %vm1061, %v3519, 0
  %3529 = vmatpush.msra.mxu0 0.0
  %3530 = vmatpush.msra.mxu0 0.0
  %3531 = vmatpush.msra.mxu0 0.0
  %3532 = vmatpush.msra.mxu0 0.0
  %3533 = vmatpush.msra.mxu0 0.0
  %3534 = vmatpush.msra.mxu0 0.0
  %3535 = vmatpush.msra.mxu0 0.0
  %3536 = vmatpush.msra.mxu0 0.0
  %3537 = vmatpush.msra.mxu0 0.0
  %3538 = vmatpush.msra.mxu0 0.0
  %3539 = vmatpush.msra.mxu0 0.0
  %3540 = vmatpush.msra.mxu0 0.0
  %3541 = vmatpush.msra.mxu0 0.0
  %3542 = vmatpush.msra.mxu0 0.0
  %3543 = vmatpush.msra.mxu0 %v3523
  %3544 = vmatpush.msra.mxu0 %v3521
  %3545 = vmatmul.f32.gmra.mxu0 %v3527
  %v3546 = vpop.f32.mrf.mxu0
  %v3547 = vadd.f32 0.0, %v3546
  %3548 = vdwg.mxu0
  %v3550 = vsel %vm159, %v3547, 0
  %3552 = vmatpush.msra.mxu0 0.0
  %3553 = vmatpush.msra.mxu0 0.0
  %3554 = vmatpush.msra.mxu0 0.0
  %3555 = vmatpush.msra.mxu0 0.0
  %3556 = vmatpush.msra.mxu0 0.0
  %3557 = vmatpush.msra.mxu0 0.0
  %3558 = vmatpush.msra.mxu0 0.0
  %3559 = vmatpush.msra.mxu0 0.0
  %3560 = vmatpush.msra.mxu0 0.0
  %3561 = vmatpush.msra.mxu0 0.0
  %3562 = vmatpush.msra.mxu0 0.0
  %3563 = vmatpush.msra.mxu0 0.0
  %3564 = vmatpush.msra.mxu0 0.0
  %3565 = vmatpush.msra.mxu0 0.0
  %3566 = vmatpush.msra.mxu0 0.0
  %3567 = vmatpush.msra.mxu0 %v2907
  %3568 = vmatmul.f32.gmra.mxu0 %v3550
  %v3569 = vpop.f32.mrf.mxu0
  %v3570 = vadd.f32 0.0, %v3569
  %3571 = vdwg.mxu0
  %v3572 = vadd.f32 %v3475, %v3570
  %3573 = vrot.lane.b32.xlu0 %v2863, 104
  %v3574 = vpop.permute.xlu0 %3573
  %3575 = vrot.lane.b32.xlu0 %v2899, 104
  %v3576 = vpop.permute.xlu0 %3575
  %3577 = vrot.lane.b32.xlu0 %v2902, 104
  %v3578 = vpop.permute.xlu0 %3577
  %v3579 = vsel %vm159, %v3574, 0
  %v3581 = vsel %vm159, %v3576, 0
  %v3583 = vsel %vm159, %v3578, 0
  %3585 = vmatpush.xpose.msra.mxu0 0.0
  %3586 = vmatpush.xpose.msra.mxu0 0.0
  %3587 = vmatpush.xpose.msra.mxu0 0.0
  %3588 = vmatpush.xpose.msra.mxu0 0.0
  %3589 = vmatpush.xpose.msra.mxu0 0.0
  %3590 = vmatpush.xpose.msra.mxu0 0.0
  %3591 = vmatpush.xpose.msra.mxu0 0.0
  %3592 = vmatpush.xpose.msra.mxu0 0.0
  %3593 = vmatpush.xpose.msra.mxu0 0.0
  %3594 = vmatpush.xpose.msra.mxu0 0.0
  %3595 = vmatpush.xpose.msra.mxu0 0.0
  %3596 = vmatpush.xpose.msra.mxu0 0.0
  %3597 = vmatpush.xpose.msra.mxu0 0.0
  %3598 = vmatpush.xpose.msra.mxu0 0.0
  %3599 = vmatpush.xpose.msra.mxu0 %v3583
  %3600 = vmatpush.xpose.msra.mxu0 %v3581
  %3601 = vmatmul.f32.gmra.mxu0 %v3579
  %v3602 = vpop.f32.mrf.mxu0
  %v3603 = vadd.f32 0.0, %v3602
  %3604 = vdwg.mxu0
  %v3605 = vsel %vm1061, %v3603, -inf
  %3606 = vmax.xlane.f32.xlu0 %v3605
  %v3607 = vpop.xlane.xlu0 %3606
  %v3608 = vsub.f32 %v3603, %v3607
  %v3609 = vmul.f32 %v3608, 1.442695
  %v3610 = vpow.pop %v3609
  %v3611 = vsel %vm1061, %v3610, 0.0
  %3612 = vadd.xlane.f32.xlu0 %v3611
  %v3613 = vpop.xlane.xlu0 %3612
  %v3614 = vrcp.pop %v3613
  %v3615 = vmul.f32 %v3610, %v3614
  %3616 = vrot.lane.b32.xlu0 %v2899, 72
  %v3617 = vpop.permute.xlu0 %3616
  %3618 = vrot.lane.b32.xlu0 %v2902, 72
  %v3619 = vpop.permute.xlu0 %3618
  %v3623 = vsel %vm1061, %v3615, 0
  %3625 = vmatpush.msra.mxu0 0.0
  %3626 = vmatpush.msra.mxu0 0.0
  %3627 = vmatpush.msra.mxu0 0.0
  %3628 = vmatpush.msra.mxu0 0.0
  %3629 = vmatpush.msra.mxu0 0.0
  %3630 = vmatpush.msra.mxu0 0.0
  %3631 = vmatpush.msra.mxu0 0.0
  %3632 = vmatpush.msra.mxu0 0.0
  %3633 = vmatpush.msra.mxu0 0.0
  %3634 = vmatpush.msra.mxu0 0.0
  %3635 = vmatpush.msra.mxu0 0.0
  %3636 = vmatpush.msra.mxu0 0.0
  %3637 = vmatpush.msra.mxu0 0.0
  %3638 = vmatpush.msra.mxu0 0.0
  %3639 = vmatpush.msra.mxu0 %v3619
  %3640 = vmatpush.msra.mxu0 %v3617
  %3641 = vmatmul.f32.gmra.mxu0 %v3623
  %v3642 = vpop.f32.mrf.mxu0
  %v3643 = vadd.f32 0.0, %v3642
  %3644 = vdwg.mxu0
  %v3646 = vsel %vm159, %v3643, 0
  %3648 = vmatpush.msra.mxu0 0.0
  %3649 = vmatpush.msra.mxu0 0.0
  %3650 = vmatpush.msra.mxu0 0.0
  %3651 = vmatpush.msra.mxu0 0.0
  %3652 = vmatpush.msra.mxu0 0.0
  %3653 = vmatpush.msra.mxu0 0.0
  %3654 = vmatpush.msra.mxu0 0.0
  %3655 = vmatpush.msra.mxu0 0.0
  %3656 = vmatpush.msra.mxu0 0.0
  %3657 = vmatpush.msra.mxu0 0.0
  %3658 = vmatpush.msra.mxu0 0.0
  %3659 = vmatpush.msra.mxu0 0.0
  %3660 = vmatpush.msra.mxu0 0.0
  %3661 = vmatpush.msra.mxu0 0.0
  %3662 = vmatpush.msra.mxu0 0.0
  %3663 = vmatpush.msra.mxu0 %v2908
  %3664 = vmatmul.f32.gmra.mxu0 %v3646
  %v3665 = vpop.f32.mrf.mxu0
  %v3666 = vadd.f32 0.0, %v3665
  %3667 = vdwg.mxu0
  %v3668 = vadd.f32 %v3572, %v3666
  %v3670 = vperm.slane %v2910, 0
  %v3672 = vadd.f32 %v3289, %v3670
  %v3673 = vadd.f32 %v3668, %v3670
  %v3674 = vadd.f32 %v3672, %v2824
  %v3675 = vadd.f32 %v3673, %v2825
  %s3676 = scalar_lea.vmem %s15, 4
  %v3677 = vld [vmem:[%s3676] sm:$0x1]
  %s3678 = scalar_lea.vmem %s16, 4
  %v3679 = vld [vmem:[%s3678] sm:$0x1]
  %v3680 = vsel %vm121, %v3674, 0.0
  %3681 = vadd.xlane.f32.xlu0 %v3680
  %v3682 = vpop.xlane.xlu0 %3681
  %v3683 = vsel %vm121, %v3675, 0.0
  %3684 = vadd.xlane.f32.xlu0 %v3683
  %v3685 = vpop.xlane.xlu0 %3684
  %v3686 = vmul.f32 %v3682, %v892
  %v3687 = vmul.f32 %v3685, %v892
  %v3688 = vsub.f32 %v3674, %v3686
  %v3689 = vsub.f32 %v3675, %v3687
  %v3690 = vmul.f32 %v3688, %v3688
  %v3691 = vmul.f32 %v3689, %v3689
  %v3692 = vsel %vm121, %v3690, 0.0
  %3693 = vadd.xlane.f32.xlu0 %v3692
  %v3694 = vpop.xlane.xlu0 %3693
  %v3695 = vsel %vm121, %v3691, 0.0
  %3696 = vadd.xlane.f32.xlu0 %v3695
  %v3697 = vpop.xlane.xlu0 %3696
  %v3698 = vmul.f32 %v3694, %v892
  %v3699 = vmul.f32 %v3697, %v892
  %v3700 = vadd.f32 %v3698, 1e-05
  %v3701 = vadd.f32 %v3699, 1e-05
  %v3702 = vrsqrt.pop %v3700
  %v3703 = vmul.f32 %v3702, %v3700
  %v3704 = vmul.f32 %v3703, %v3702
  %v3705 = vmul.f32 0.5, %v3704
  %v3706 = vsub.f32 1.5, %v3705
  %v3707 = vmul.f32 %v3702, %v3706
  %vm3708 = vweird.f32 %v3700
  %vm3709 = vweird.f32 %v3702
  %vm3710 = vmor %vm3708, %vm3709
  %v3711 = vsel %vm3710, %v3702, %v3707
  %v3712 = vrsqrt.pop %v3701
  %v3713 = vmul.f32 %v3712, %v3701
  %v3714 = vmul.f32 %v3713, %v3712
  %v3715 = vmul.f32 0.5, %v3714
  %v3716 = vsub.f32 1.5, %v3715
  %v3717 = vmul.f32 %v3712, %v3716
  %vm3718 = vweird.f32 %v3701
  %vm3719 = vweird.f32 %v3712
  %vm3720 = vmor %vm3718, %vm3719
  %v3721 = vsel %vm3720, %v3712, %v3717
  %v3722 = vmul.f32 %v3688, %v3711
  %v3723 = vmul.f32 %v3689, %v3721
  %v3725 = vperm.slane %v3677, 0
  %v3727 = vmul.f32 %v3722, %v3725
  %v3728 = vmul.f32 %v3723, %v3725
  %v3730 = vperm.slane %v3679, 0
  %v3732 = vadd.f32 %v3727, %v3730
  %v3733 = vadd.f32 %v3728, %v3730
  %s3734 = scalar_lea.vmem %s17, 32
  %v3735 = vld [vmem:[%s3734] sm:$0xff]
  %v3736 = vld [vmem:[%s3734 + $0x8] sm:$0xff]
  %v3737 = vld [vmem:[%s3734 + $0x10] sm:$0xff]
  %v3738 = vld [vmem:[%s3734 + $0x18] sm:$0xff]
  %s3739 = scalar_lea.vmem %s18, 1
  %v3740 = vld [vmem:[%s3739] sm:$0x1]
  %v3742 = vperm.slane %v3740, 0
  %v3745 = vsel %vm121, %v3732, 0
  %v3748 = vsel %vm121, %v3733, 0
  %3750 = vmatpush.msra.mxu0 0.0
  %3751 = vmatpush.msra.mxu0 0.0
  %3752 = vmatpush.msra.mxu0 0.0
  %3753 = vmatpush.msra.mxu0 0.0
  %3754 = vmatpush.msra.mxu0 0.0
  %3755 = vmatpush.msra.mxu0 0.0
  %3756 = vmatpush.msra.mxu0 0.0
  %3757 = vmatpush.msra.mxu0 0.0
  %3758 = vmatpush.msra.mxu0 0.0
  %3759 = vmatpush.msra.mxu0 0.0
  %3760 = vmatpush.msra.mxu0 0.0
  %3761 = vmatpush.msra.mxu0 0.0
  %3762 = vmatpush.msra.mxu0 %v3738
  %3763 = vmatpush.msra.mxu0 %v3737
  %3764 = vmatpush.msra.mxu0 %v3736
  %3765 = vmatpush.msra.mxu0 %v3735
  %3766 = vmatmul.f32.gmra.mxu0 %v3745
  %v3767 = vpop.f32.mrf.mxu0
  %v3768 = vadd.f32 %v3742, %v3767
  %3769 = vmatmul.f32.gmra.mxu0 %v3748
  %v3770 = vpop.f32.mrf.mxu0
  %v3771 = vadd.f32 %v3742, %v3770
  %3772 = vdwg.mxu0
  %vm3773 = vcmp.ge.f32.partialorder %v3768, 0.0
  %vm3774 = vcmp.ge.f32.partialorder %v3771, 0.0
  %v3775 = vmul.f32 %v3768, 0.05
  %v3776 = vmul.f32 %v3771, 0.05
  %v3777 = vsel %vm3773, %v3768, %v3775
  %v3778 = vsel %vm3774, %v3771, %v3776
  %s3779 = scalar_lea.vmem %s19, 64
  %v3780 = vld [vmem:[%s3779] sm:$0xff]
  %v3781 = vld [vmem:[%s3779 + $0x8] sm:$0xff]
  %v3782 = vld [vmem:[%s3779 + $0x10] sm:$0xff]
  %v3783 = vld [vmem:[%s3779 + $0x18] sm:$0xff]
  %v3784 = vld [vmem:[%s3779 + $0x20] sm:$0xff]
  %v3785 = vld [vmem:[%s3779 + $0x28] sm:$0xff]
  %v3786 = vld [vmem:[%s3779 + $0x30] sm:$0xff]
  %v3787 = vld [vmem:[%s3779 + $0x38] sm:$0xff]
  %s3788 = scalar_lea.vmem %s20, 1
  %v3789 = vld [vmem:[%s3788] sm:$0x1]
  %v3791 = vperm.slane %v3789, 0
  %v3794 = vsel %vm1911, %v3777, 0
  %v3797 = vsel %vm1911, %v3778, 0
  %3799 = vmatpush.msra.mxu0 0.0
  %3800 = vmatpush.msra.mxu0 0.0
  %3801 = vmatpush.msra.mxu0 0.0
  %3802 = vmatpush.msra.mxu0 0.0
  %3803 = vmatpush.msra.mxu0 0.0
  %3804 = vmatpush.msra.mxu0 0.0
  %3805 = vmatpush.msra.mxu0 0.0
  %3806 = vmatpush.msra.mxu0 0.0
  %3807 = vmatpush.msra.mxu0 %v3787
  %3808 = vmatpush.msra.mxu0 %v3786
  %3809 = vmatpush.msra.mxu0 %v3785
  %3810 = vmatpush.msra.mxu0 %v3784
  %3811 = vmatpush.msra.mxu0 %v3783
  %3812 = vmatpush.msra.mxu0 %v3782
  %3813 = vmatpush.msra.mxu0 %v3781
  %3814 = vmatpush.msra.mxu0 %v3780
  %3815 = vmatmul.f32.gmra.mxu0 %v3794
  %v3816 = vpop.f32.mrf.mxu0
  %v3817 = vadd.f32 %v3791, %v3816
  %3818 = vmatmul.f32.gmra.mxu0 %v3797
  %v3819 = vpop.f32.mrf.mxu0
  %v3820 = vadd.f32 %v3791, %v3819
  %3821 = vdwg.mxu0
  %v3822 = vadd.f32 %v3817, %v3732
  %v3823 = vadd.f32 %v3820, %v3733
  %s3824 = scalar_lea.vmem %s15, 5
  %v3825 = vld [vmem:[%s3824] sm:$0x1]
  %s3826 = scalar_lea.vmem %s16, 5
  %v3827 = vld [vmem:[%s3826] sm:$0x1]
  %v3828 = vsel %vm121, %v3822, 0.0
  %3829 = vadd.xlane.f32.xlu0 %v3828
  %v3830 = vpop.xlane.xlu0 %3829
  %v3831 = vsel %vm121, %v3823, 0.0
  %3832 = vadd.xlane.f32.xlu0 %v3831
  %v3833 = vpop.xlane.xlu0 %3832
  %v3834 = vmul.f32 %v3830, %v892
  %v3835 = vmul.f32 %v3833, %v892
  %v3836 = vsub.f32 %v3822, %v3834
  %v3837 = vsub.f32 %v3823, %v3835
  %v3838 = vmul.f32 %v3836, %v3836
  %v3839 = vmul.f32 %v3837, %v3837
  %v3840 = vsel %vm121, %v3838, 0.0
  %3841 = vadd.xlane.f32.xlu0 %v3840
  %v3842 = vpop.xlane.xlu0 %3841
  %v3843 = vsel %vm121, %v3839, 0.0
  %3844 = vadd.xlane.f32.xlu0 %v3843
  %v3845 = vpop.xlane.xlu0 %3844
  %v3846 = vmul.f32 %v3842, %v892
  %v3847 = vmul.f32 %v3845, %v892
  %v3848 = vadd.f32 %v3846, 1e-05
  %v3849 = vadd.f32 %v3847, 1e-05
  %v3850 = vrsqrt.pop %v3848
  %v3851 = vmul.f32 %v3850, %v3848
  %v3852 = vmul.f32 %v3851, %v3850
  %v3853 = vmul.f32 0.5, %v3852
  %v3854 = vsub.f32 1.5, %v3853
  %v3855 = vmul.f32 %v3850, %v3854
  %vm3856 = vweird.f32 %v3848
  %vm3857 = vweird.f32 %v3850
  %vm3858 = vmor %vm3856, %vm3857
  %v3859 = vsel %vm3858, %v3850, %v3855
  %v3860 = vrsqrt.pop %v3849
  %v3861 = vmul.f32 %v3860, %v3849
  %v3862 = vmul.f32 %v3861, %v3860
  %v3863 = vmul.f32 0.5, %v3862
  %v3864 = vsub.f32 1.5, %v3863
  %v3865 = vmul.f32 %v3860, %v3864
  %vm3866 = vweird.f32 %v3849
  %vm3867 = vweird.f32 %v3860
  %vm3868 = vmor %vm3866, %vm3867
  %v3869 = vsel %vm3868, %v3860, %v3865
  %v3870 = vmul.f32 %v3836, %v3859
  %v3871 = vmul.f32 %v3837, %v3869
  %v3873 = vperm.slane %v3825, 0
  %v3875 = vmul.f32 %v3870, %v3873
  %v3876 = vmul.f32 %v3871, %v3873
  %v3878 = vperm.slane %v3827, 0
  %v3880 = vadd.f32 %v3875, %v3878
  %v3881 = vadd.f32 %v3876, %v3878
  %v3882 = vld [vmem:[%s21] sm:$0xff]
  %v3883 = vld [vmem:[%s21 + $0x8] sm:$0xff]
  %v3884 = vld [vmem:[%s21 + $0x10] sm:$0xff]
  %v3885 = vld [vmem:[%s21 + $0x18] sm:$0xff]
  %v3886 = vld [vmem:[#allocation2] sm:$0x1]
  %v3888 = vperm.slane %v3886, 0
  %v3891 = vsel %vm121, %v3880, 0
  %v3894 = vsel %vm121, %v3881, 0
  %3896 = vmatpush.msra.mxu0 0.0
  %3897 = vmatpush.msra.mxu0 0.0
  %3898 = vmatpush.msra.mxu0 0.0
  %3899 = vmatpush.msra.mxu0 0.0
  %3900 = vmatpush.msra.mxu0 0.0
  %3901 = vmatpush.msra.mxu0 0.0
  %3902 = vmatpush.msra.mxu0 0.0
  %3903 = vmatpush.msra.mxu0 0.0
  %3904 = vmatpush.msra.mxu0 0.0
  %3905 = vmatpush.msra.mxu0 0.0
  %3906 = vmatpush.msra.mxu0 0.0
  %3907 = vmatpush.msra.mxu0 0.0
  %3908 = vmatpush.msra.mxu0 %v3885
  %3909 = vmatpush.msra.mxu0 %v3884
  %3910 = vmatpush.msra.mxu0 %v3883
  %3911 = vmatpush.msra.mxu0 %v3882
  %3912 = vmatmul.f32.gmra.mxu0 %v3891
  %v3913 = vpop.f32.mrf.mxu0
  %v3914 = vadd.f32 %v3888, %v3913
  %3915 = vmatmul.f32.gmra.mxu0 %v3894
  %v3916 = vpop.f32.mrf.mxu0
  %v3917 = vadd.f32 %v3888, %v3916
  %3918 = vdwg.mxu0
  %vm3919 = vcmask 7168
  %3920 = vst.msk [vmem:[%s23] sm:$0xff] %vm3919, %v3914
  %3921 = vst.msk [vmem:[%s23 + $0x8] sm:$0xff] %vm3919, %v3917
  // Predicated region
  $region94: #{decoder_forward.1} parent=0 // pred_check
    _
  $region95: #{decoder_forward.1} parent=0 // pred_check_branch
    %3923 = sbr.rel (0) target = $region97
  $region96: #{decoder_forward.1} parent=0 // pred_region
    _
  $region97: #{decoder_forward.1} parent=0 // pred_fallthru
    _
  // Predicated region
  $region98: #{decoder_forward.1} parent=0 // pred_check
    _
  $region99: #{decoder_forward.1} parent=0 // pred_check_branch
    %3925 = sbr.rel (0) target = $region101
  $region100: #{decoder_forward.1} parent=0 // pred_region
    _
  $region101: #{decoder_forward.1} parent=0 // pred_fallthru
    _

</llo_original>
